<compile_context>
chip_gen: v7x
topology: tpu7x:2x2x1
jax: 0.10.0
libtpu: 0.0.40
codegen_flags: <defaults>
</compile_context>

<pallas_src>
import functools

import jax
import jax.numpy as jnp
from jax.experimental import pallas as pl
from jax.experimental.pallas import tpu as pltpu


def _polnet_lstm_kernel(
    xs_ref,        # (T*B, OB)      flattened observations
    nmask_ref,     # (T*B, CELL)    precomputed (1 - mask), lane-broadcast
    h0_ref, c0_ref,                  # (B, CELL)
    w_in_ref, b_in_ref,              # (OB, H), (1, H)
    w_ih_ref,                        # (H, 4*CELL)
    w_hh_ref,                        # (CELL, 4*CELL)
    b_gates_ref,                     # (1, 4*CELL)  == b_ih + b_hh
    w_mean_ref, b_mean_ref,          # (CELL, ACP), (1, ACP)   (zero-padded to lane width)
    means_ref,                       # out: (T*B, ACP)
    h_out_ref, c_out_ref,            # out: (B, CELL)
    xg_scr,                          # scratch: (T*B, 4*CELL)
    hid_scr,                         # scratch: (T*B, CELL)
    *, T, B, cell,
):
    # ---- hoisted, time-invariant projections (two big matmuls) -------------
    x_proj = jnp.maximum(
        jnp.dot(xs_ref[...], w_in_ref[...], preferred_element_type=jnp.float32)
        + b_in_ref[...],
        0.0,
    )                                                          # (T*B, H)
    xg_scr[...] = (
        jnp.dot(x_proj, w_ih_ref[...], preferred_element_type=jnp.float32)
        + b_gates_ref[...]
    )                                                          # (T*B, 4*CELL)

    # ---- sequential LSTMCell recurrence (PyTorch gate order: i, f, g, o) ---
    def step(t, carry):
        h, c = carry
        row = pl.multiple_of(t * B, B)
        nm = nmask_ref[pl.ds(row, B), :]                       # (B, CELL)
        h = h * nm
        c = c * nm
        gates = xg_scr[pl.ds(row, B), :] + jnp.dot(
            h, w_hh_ref[...], preferred_element_type=jnp.float32
        )                                                      # (B, 4*CELL)
        i_g = jax.nn.sigmoid(gates[:, 0 * cell:1 * cell])
        f_g = jax.nn.sigmoid(gates[:, 1 * cell:2 * cell])
        g_g = jnp.tanh(gates[:, 2 * cell:3 * cell])
        o_g = jax.nn.sigmoid(gates[:, 3 * cell:4 * cell])
        c_new = f_g * c + i_g * g_g
        h_new = o_g * jnp.tanh(c_new)
        hid_scr[pl.ds(row, B), :] = h_new
        return (h_new, c_new)

    h_f, c_f = jax.lax.fori_loop(
        0, T, step, (h0_ref[...], c0_ref[...]), unroll=True
    )

    # ---- single writeback of final state ------------------------------------
    h_out_ref[...] = h_f
    c_out_ref[...] = c_f

    # ---- output head on the full hidden buffer, one lane-dense store -------
    means_ref[...] = jnp.tanh(
        jnp.dot(hid_scr[...], w_mean_ref[...], preferred_element_type=jnp.float32)
        + b_mean_ref[...]
    )


def polnet_lstm_forward(xs, hs, h_masks, params):
    """Pallas implementation of PolNetLSTM.forward (Box / continuous branch)."""
    T, B, OB = xs.shape
    h0, c0 = hs
    cell = h0.shape[-1]
    h_size = params["w_in"].shape[1]
    ac = params["w_mean"].shape[1]
    assert params["w_ih"].shape == (h_size, 4 * cell)

    # ---- batch padding to a multiple of 8 (sublanes) -----------------------
    b_pad = (-B) % 8
    bp = B + b_pad
    if b_pad:
        xs_p = jnp.pad(xs, ((0, 0), (0, b_pad), (0, 0)))
        hm_p = jnp.pad(h_masks, ((0, 0), (0, b_pad), (0, 0)))
        h0_p = jnp.pad(h0, ((0, b_pad), (0, 0)))
        c0_p = jnp.pad(c0, ((0, b_pad), (0, 0)))
    else:
        xs_p, hm_p, h0_p, c0_p = xs, h_masks, h0, c0

    # ---- action-dim padding to lane width (128) for dense output stores ----
    acp = max(128, -(-ac // 128) * 128)
    w_mean_p = jnp.pad(params["w_mean"], ((0, 0), (0, acp - ac)))
    b_mean_p = jnp.pad(params["b_mean"], ((0, 0), (0, acp - ac)))

    # ---- host-side prep: flatten time*batch, precompute (1 - mask), fold biases
    xs2 = xs_p.reshape(T * bp, OB)
    nmask = jnp.broadcast_to(1.0 - hm_p, (T, bp, cell)).reshape(T * bp, cell)
    b_gates = params["b_ih"] + params["b_hh"]

    full = lambda shape: pl.BlockSpec(shape, lambda i: tuple(0 for _ in shape))

    kernel = functools.partial(_polnet_lstm_kernel, T=T, B=bp, cell=cell)

    out_shapes = (
        jax.ShapeDtypeStruct((T * bp, acp), jnp.float32),   # means (padded, flat)
        jax.ShapeDtypeStruct((bp, cell), jnp.float32),      # h final
        jax.ShapeDtypeStruct((bp, cell), jnp.float32),      # c final
    )

    grid_spec = pltpu.PrefetchScalarGridSpec(
        num_scalar_prefetch=0,
        grid=(1,),
        in_specs=[
            full((T * bp, OB)),          # xs (flattened)
            full((T * bp, cell)),        # (1 - mask), lane-broadcast
            full((bp, cell)),            # h0
            full((bp, cell)),            # c0
            full((OB, h_size)),          # w_in
            full((1, h_size)),           # b_in
            full((h_size, 4 * cell)),    # w_ih
            full((cell, 4 * cell)),      # w_hh
            full((1, 4 * cell)),         # b_ih + b_hh
            full((cell, acp)),           # w_mean (padded)
            full((1, acp)),              # b_mean (padded)
        ],
        out_specs=[
            full((T * bp, acp)),         # means
            full((bp, cell)),            # h final
            full((bp, cell)),            # c final
        ],
        scratch_shapes=[
            pltpu.VMEM((T * bp, 4 * cell), jnp.float32),   # hoisted x-side gates
            pltpu.VMEM((T * bp, cell), jnp.float32),       # all hidden states
        ],
    )

    means_p, h_f, c_f = pl.pallas_call(
        kernel,
        out_shape=out_shapes,
        grid_spec=grid_spec,
        compiler_params=pltpu.CompilerParams(
            dimension_semantics=("arbitrary",),   # single sequential invocation
        ),
    )(
        xs2, nmask, h0_p, c0_p,
        params["w_in"], params["b_in"],
        params["w_ih"], params["w_hh"], b_gates,
        w_mean_p, b_mean_p,
    )

    means = means_p.reshape(T, bp, acp)[:, :B, :ac]
    # log_std is a constant broadcast of a parameter -> no kernel work needed.
    log_std = jnp.broadcast_to(params["log_std"].reshape(1, 1, ac), (T, B, ac))
    return means, log_std, (h_f[:B], c_f[:B])


def _reference_forward(xs, hs, h_masks, params):
    """Pure-JAX reference mirroring the PyTorch module semantics."""
    h, c = hs
    cs = h.shape[-1]
    x_proj = jax.nn.relu(xs @ params["w_in"] + params["b_in"])  # (T, B, H)

    def step(carry, inp):
        h, c = carry
        x, mask = inp
        h = h * (1.0 - mask)
        c = c * (1.0 - mask)
        gates = x @ params["w_ih"] + params["b_ih"] + h @ params["w_hh"] + params["b_hh"]
        i = jax.nn.sigmoid(gates[:, 0 * cs:1 * cs])
        f = jax.nn.sigmoid(gates[:, 1 * cs:2 * cs])
        g = jnp.tanh(gates[:, 2 * cs:3 * cs])
        o = jax.nn.sigmoid(gates[:, 3 * cs:4 * cs])
        c_new = f * c + i * g
        h_new = o * jnp.tanh(c_new)
        return (h_new, c_new), h_new

    (h_f, c_f), hiddens = jax.lax.scan(step, (h, c), (x_proj, h_masks))
    means = jnp.tanh(hiddens @ params["w_mean"] + params["b_mean"])
    log_std = jnp.broadcast_to(params["log_std"].reshape(1, 1, -1), means.shape)
    return means, log_std, (h_f, c_f)


if __name__ == "__main__":
    # Small, module-consistent shapes (module defaults are h=1024, cell=512;
    # we use lane/sublane-aligned small versions).
    T, B = 8, 8           # seq length, batch
    OB = 16               # ob_space.shape[0]
    H = 128               # h_size
    CELL = 128            # cell_size
    AC = 6                # ac_space.shape[0] (Box)

    key = jax.random.PRNGKey(0)
    keys = jax.random.split(key, 12)

    params = {
        # pre-transposed (in_features, out_features)
        "w_in":   jax.random.normal(keys[0], (OB, H), jnp.float32) * 0.1,
        "b_in":   jax.random.normal(keys[1], (1, H), jnp.float32) * 0.1,
        "w_ih":   jax.random.normal(keys[2], (H, 4 * CELL), jnp.float32) * 0.1,
        "b_ih":   jax.random.normal(keys[3], (1, 4 * CELL), jnp.float32) * 0.1,
        "w_hh":   jax.random.normal(keys[4], (CELL, 4 * CELL), jnp.float32) * 0.1,
        "b_hh":   jax.random.normal(keys[5], (1, 4 * CELL), jnp.float32) * 0.1,
        # mini_weight_init -> tiny weights, zero bias
        "w_mean": jax.random.normal(keys[6], (CELL, AC), jnp.float32) * 1e-2,
        "b_mean": jnp.zeros((1, AC), jnp.float32),
        # log_std_param = randn * 1e-10 - 1  ~= -1
        "log_std": jax.random.normal(keys[7], (1, AC), jnp.float32) * 1e-10 - 1.0,
    }

    xs = jax.random.normal(keys[8], (T, B, OB), jnp.float32)
    h0 = jax.random.normal(keys[9], (B, CELL), jnp.float32) * 0.5
    c0 = jax.random.normal(keys[10], (B, CELL), jnp.float32) * 0.5
    # binary episode-reset masks, shape (T, B, 1)
    h_masks = (jax.random.uniform(keys[11], (T, B, 1)) < 0.2).astype(jnp.float32)

    means, log_std, (h_f, c_f) = polnet_lstm_forward(xs, (h0, c0), h_masks, params)
    jax.block_until_ready((means, log_std, h_f, c_f))

    # Sanity check against a pure-JAX reference.
    r_means, r_log_std, (r_h, r_c) = _reference_forward(xs, (h0, c0), h_masks, params)
    assert means.shape == (T, B, AC) and log_std.shape == (T, B, AC)
    assert h_f.shape == (B, CELL) and c_f.shape == (B, CELL)
    assert jnp.allclose(means, r_means, atol=2e-2, rtol=2e-2)
    assert jnp.allclose(log_std, r_log_std, atol=1e-5)
    assert jnp.allclose(h_f, r_h, atol=2e-2, rtol=2e-2)
    assert jnp.allclose(c_f, r_c, atol=2e-2, rtol=2e-2)

    print("KERNEL_OK")
</pallas_src>

<mosaic_0001>
module attributes {stable_mosaic.version = 11 : i64} {
  func.func @_polnet_lstm_kernel(%arg0: i32, %arg1: memref<64x16xf32, #tpu.memory_space<vmem>>, %arg2: memref<64x128xf32, #tpu.memory_space<vmem>>, %arg3: memref<8x128xf32, #tpu.memory_space<vmem>>, %arg4: memref<8x128xf32, #tpu.memory_space<vmem>>, %arg5: memref<16x128xf32, #tpu.memory_space<vmem>>, %arg6: memref<1x128xf32, #tpu.memory_space<vmem>>, %arg7: memref<128x512xf32, #tpu.memory_space<vmem>>, %arg8: memref<128x512xf32, #tpu.memory_space<vmem>>, %arg9: memref<1x512xf32, #tpu.memory_space<vmem>>, %arg10: memref<128x128xf32, #tpu.memory_space<vmem>>, %arg11: memref<1x128xf32, #tpu.memory_space<vmem>>, %arg12: memref<64x128xf32, #tpu.memory_space<vmem>>, %arg13: memref<8x128xf32, #tpu.memory_space<vmem>>, %arg14: memref<8x128xf32, #tpu.memory_space<vmem>>, %arg15: memref<64x512xf32, #tpu.memory_space<vmem>>, %arg16: memref<64x128xf32, #tpu.memory_space<vmem>>) attributes {dimension_semantics = [#tpu.dimension_semantics<arbitrary>], iteration_bounds = array<i64: 1>, scalar_prefetch = 0 : i64, scratch_operands = 2 : i64, tpu.core_type = #tpu.core_type<tc>, window_params = [{pipeline_mode = #tpu.pipeline_mode<synchronous>, transform_indices = @transform_0, window_bounds = array<i64: 64, 16>}, {pipeline_mode = #tpu.pipeline_mode<synchronous>, transform_indices = @transform_1, window_bounds = array<i64: 64, 128>}, {pipeline_mode = #tpu.pipeline_mode<synchronous>, transform_indices = @transform_2, window_bounds = array<i64: 8, 128>}, {pipeline_mode = #tpu.pipeline_mode<synchronous>, transform_indices = @transform_3, window_bounds = array<i64: 8, 128>}, {pipeline_mode = #tpu.pipeline_mode<synchronous>, transform_indices = @transform_4, window_bounds = array<i64: 16, 128>}, {pipeline_mode = #tpu.pipeline_mode<synchronous>, transform_indices = @transform_5, window_bounds = array<i64: 1, 128>}, {pipeline_mode = #tpu.pipeline_mode<synchronous>, transform_indices = @transform_6, window_bounds = array<i64: 128, 512>}, {pipeline_mode = #tpu.pipeline_mode<synchronous>, transform_indices = @transform_7, window_bounds = array<i64: 128, 512>}, {pipeline_mode = #tpu.pipeline_mode<synchronous>, transform_indices = @transform_8, window_bounds = array<i64: 1, 512>}, {pipeline_mode = #tpu.pipeline_mode<synchronous>, transform_indices = @transform_9, window_bounds = array<i64: 128, 128>}, {pipeline_mode = #tpu.pipeline_mode<synchronous>, transform_indices = @transform_10, window_bounds = array<i64: 1, 128>}, {pipeline_mode = #tpu.pipeline_mode<synchronous>, transform_indices = @transform_11, window_bounds = array<i64: 64, 128>}, {pipeline_mode = #tpu.pipeline_mode<synchronous>, transform_indices = @transform_12, window_bounds = array<i64: 8, 128>}, {pipeline_mode = #tpu.pipeline_mode<synchronous>, transform_indices = @transform_13, window_bounds = array<i64: 8, 128>}]} {
    %c0 = arith.constant 0 : index
    %c0_0 = arith.constant 0 : index
    %0 = vector.load %arg1[%c0, %c0_0] : memref<64x16xf32, #tpu.memory_space<vmem>>, vector<64x16xf32>
    %c0_1 = arith.constant 0 : index
    %c0_2 = arith.constant 0 : index
    %1 = vector.load %arg5[%c0_1, %c0_2] : memref<16x128xf32, #tpu.memory_space<vmem>>, vector<16x128xf32>
    %cst = arith.constant dense<0.000000e+00> : vector<64x128xf32>
    %2 = tpu.matmul %0, %1, %cst {dimension_numbers = #tpu.dot_dimension_numbers<[1], [0], [0], [1], [0, 0, 1, 1], [], []>} : vector<64x16xf32>, vector<16x128xf32>, vector<64x128xf32> -> vector<64x128xf32>
    %c0_3 = arith.constant 0 : index
    %c0_4 = arith.constant 0 : index
    %3 = vector.load %arg6[%c0_3, %c0_4] : memref<1x128xf32, #tpu.memory_space<vmem>>, vector<1x128xf32>
    %4 = vector.broadcast %3 : vector<1x128xf32> to vector<64x128xf32>
    %5 = arith.addf %2, %4 : vector<64x128xf32>
    %cst_5 = arith.constant 0.000000e+00 : f32
    %6 = vector.broadcast %cst_5 : f32 to vector<64x128xf32>
    %7 = arith.maximumf %5, %6 : vector<64x128xf32>
    %c0_6 = arith.constant 0 : index
    %c0_7 = arith.constant 0 : index
    %8 = vector.load %arg7[%c0_6, %c0_7] : memref<128x512xf32, #tpu.memory_space<vmem>>, vector<128x512xf32>
    %cst_8 = arith.constant dense<0.000000e+00> : vector<64x512xf32>
    %9 = tpu.matmul %7, %8, %cst_8 {dimension_numbers = #tpu.dot_dimension_numbers<[1], [0], [0], [1], [0, 0, 1, 1], [], []>} : vector<64x128xf32>, vector<128x512xf32>, vector<64x512xf32> -> vector<64x512xf32>
    %c0_9 = arith.constant 0 : index
    %c0_10 = arith.constant 0 : index
    %10 = vector.load %arg9[%c0_9, %c0_10] : memref<1x512xf32, #tpu.memory_space<vmem>>, vector<1x512xf32>
    %11 = vector.broadcast %10 : vector<1x512xf32> to vector<64x512xf32>
    %12 = arith.addf %9, %11 : vector<64x512xf32>
    %c0_11 = arith.constant 0 : index
    %c0_12 = arith.constant 0 : index
    %13 = vector.load %arg15[%c0_11, %c0_12] : memref<64x512xf32, #tpu.memory_space<vmem>>, vector<64x512xf32>
    tpu.vector_store %arg15[%c0_11, %c0_12], %12 {strides = array<i32>} : memref<64x512xf32, #tpu.memory_space<vmem>>, vector<64x512xf32>,
    %c0_13 = arith.constant 0 : index
    %c0_14 = arith.constant 0 : index
    %14 = vector.load %arg3[%c0_13, %c0_14] : memref<8x128xf32, #tpu.memory_space<vmem>>, vector<8x128xf32>
    %c0_15 = arith.constant 0 : index
    %c0_16 = arith.constant 0 : index
    %15 = vector.load %arg4[%c0_15, %c0_16] : memref<8x128xf32, #tpu.memory_space<vmem>>, vector<8x128xf32>
    %c0_i32 = arith.constant 0 : i32
    %c8_i32 = arith.constant 8 : i32
    %16 = arith.muli %c0_i32, %c8_i32 : i32
    %17 = tpu.assume_multiple %16, 8 : i32
    %18 = arith.index_cast %17 : i32 to index
    %c0_17 = arith.constant 0 : index
    %19 = vector.load %arg2[%18, %c0_17] : memref<64x128xf32, #tpu.memory_space<vmem>>, vector<8x128xf32>
    %20 = arith.mulf %14, %19 : vector<8x128xf32>
    %21 = arith.mulf %15, %19 : vector<8x128xf32>
    %22 = arith.index_cast %17 : i32 to index
    %c0_18 = arith.constant 0 : index
    %23 = vector.load %arg15[%22, %c0_18] : memref<64x512xf32, #tpu.memory_space<vmem>>, vector<8x512xf32>
    %c0_19 = arith.constant 0 : index
    %c0_20 = arith.constant 0 : index
    %24 = vector.load %arg8[%c0_19, %c0_20] : memref<128x512xf32, #tpu.memory_space<vmem>>, vector<128x512xf32>
    %cst_21 = arith.constant dense<0.000000e+00> : vector<8x512xf32>
    %25 = tpu.matmul %20, %24, %cst_21 {dimension_numbers = #tpu.dot_dimension_numbers<[1], [0], [0], [1], [0, 0, 1, 1], [], []>} : vector<8x128xf32>, vector<128x512xf32>, vector<8x512xf32> -> vector<8x512xf32>
    %26 = arith.addf %23, %25 : vector<8x512xf32>
    %27 = vector.extract_strided_slice %26 {offsets = [0, 0], sizes = [8, 128], strides = [1, 1]} : vector<8x512xf32> to vector<8x128xf32>
    %28 = arith.negf %27 : vector<8x128xf32>
    %29 = math.exp %28 : vector<8x128xf32>
    %cst_22 = arith.constant 1.000000e+00 : f32
    %30 = vector.broadcast %cst_22 : f32 to vector<8x128xf32>
    %31 = arith.addf %30, %29 : vector<8x128xf32>
    %32 = arith.divf %30, %31 : vector<8x128xf32>
    %33 = vector.extract_strided_slice %26 {offsets = [0, 128], sizes = [8, 128], strides = [1, 1]} : vector<8x512xf32> to vector<8x128xf32>
    %34 = arith.negf %33 : vector<8x128xf32>
    %35 = math.exp %34 : vector<8x128xf32>
    %cst_23 = arith.constant 1.000000e+00 : f32
    %36 = vector.broadcast %cst_23 : f32 to vector<8x128xf32>
    %37 = arith.addf %36, %35 : vector<8x128xf32>
    %38 = arith.divf %36, %37 : vector<8x128xf32>
    %39 = vector.extract_strided_slice %26 {offsets = [0, 256], sizes = [8, 128], strides = [1, 1]} : vector<8x512xf32> to vector<8x128xf32>
    %40 = math.tanh %39 : vector<8x128xf32>
    %41 = vector.extract_strided_slice %26 {offsets = [0, 384], sizes = [8, 128], strides = [1, 1]} : vector<8x512xf32> to vector<8x128xf32>
    %42 = arith.negf %41 : vector<8x128xf32>
    %43 = math.exp %42 : vector<8x128xf32>
    %cst_24 = arith.constant 1.000000e+00 : f32
    %44 = vector.broadcast %cst_24 : f32 to vector<8x128xf32>
    %45 = arith.addf %44, %43 : vector<8x128xf32>
    %46 = arith.divf %44, %45 : vector<8x128xf32>
    %47 = arith.mulf %38, %21 : vector<8x128xf32>
    %48 = arith.mulf %32, %40 : vector<8x128xf32>
    %49 = arith.addf %47, %48 : vector<8x128xf32>
    %50 = math.tanh %49 : vector<8x128xf32>
    %51 = arith.mulf %46, %50 : vector<8x128xf32>
    %52 = arith.index_cast %17 : i32 to index
    %c0_25 = arith.constant 0 : index
    %53 = vector.load %arg16[%52, %c0_25] : memref<64x128xf32, #tpu.memory_space<vmem>>, vector<8x128xf32>
    tpu.vector_store %arg16[%52, %c0_25], %51 {strides = array<i32>} : memref<64x128xf32, #tpu.memory_space<vmem>>, vector<8x128xf32>,
    %c1_i32 = arith.constant 1 : i32
    %c8_i32_26 = arith.constant 8 : i32
    %54 = arith.muli %c1_i32, %c8_i32_26 : i32
    %55 = tpu.assume_multiple %54, 8 : i32
    %56 = arith.index_cast %55 : i32 to index
    %c0_27 = arith.constant 0 : index
    %57 = vector.load %arg2[%56, %c0_27] : memref<64x128xf32, #tpu.memory_space<vmem>>, vector<8x128xf32>
    %58 = arith.mulf %51, %57 : vector<8x128xf32>
    %59 = arith.mulf %49, %57 : vector<8x128xf32>
    %60 = arith.index_cast %55 : i32 to index
    %c0_28 = arith.constant 0 : index
    %61 = vector.load %arg15[%60, %c0_28] : memref<64x512xf32, #tpu.memory_space<vmem>>, vector<8x512xf32>
    %c0_29 = arith.constant 0 : index
    %c0_30 = arith.constant 0 : index
    %62 = vector.load %arg8[%c0_29, %c0_30] : memref<128x512xf32, #tpu.memory_space<vmem>>, vector<128x512xf32>
    %cst_31 = arith.constant dense<0.000000e+00> : vector<8x512xf32>
    %63 = tpu.matmul %58, %62, %cst_31 {dimension_numbers = #tpu.dot_dimension_numbers<[1], [0], [0], [1], [0, 0, 1, 1], [], []>} : vector<8x128xf32>, vector<128x512xf32>, vector<8x512xf32> -> vector<8x512xf32>
    %64 = arith.addf %61, %63 : vector<8x512xf32>
    %65 = vector.extract_strided_slice %64 {offsets = [0, 0], sizes = [8, 128], strides = [1, 1]} : vector<8x512xf32> to vector<8x128xf32>
    %66 = arith.negf %65 : vector<8x128xf32>
    %67 = math.exp %66 : vector<8x128xf32>
    %cst_32 = arith.constant 1.000000e+00 : f32
    %68 = vector.broadcast %cst_32 : f32 to vector<8x128xf32>
    %69 = arith.addf %68, %67 : vector<8x128xf32>
    %70 = arith.divf %68, %69 : vector<8x128xf32>
    %71 = vector.extract_strided_slice %64 {offsets = [0, 128], sizes = [8, 128], strides = [1, 1]} : vector<8x512xf32> to vector<8x128xf32>
    %72 = arith.negf %71 : vector<8x128xf32>
    %73 = math.exp %72 : vector<8x128xf32>
    %cst_33 = arith.constant 1.000000e+00 : f32
    %74 = vector.broadcast %cst_33 : f32 to vector<8x128xf32>
    %75 = arith.addf %74, %73 : vector<8x128xf32>
    %76 = arith.divf %74, %75 : vector<8x128xf32>
    %77 = vector.extract_strided_slice %64 {offsets = [0, 256], sizes = [8, 128], strides = [1, 1]} : vector<8x512xf32> to vector<8x128xf32>
    %78 = math.tanh %77 : vector<8x128xf32>
    %79 = vector.extract_strided_slice %64 {offsets = [0, 384], sizes = [8, 128], strides = [1, 1]} : vector<8x512xf32> to vector<8x128xf32>
    %80 = arith.negf %79 : vector<8x128xf32>
    %81 = math.exp %80 : vector<8x128xf32>
    %cst_34 = arith.constant 1.000000e+00 : f32
    %82 = vector.broadcast %cst_34 : f32 to vector<8x128xf32>
    %83 = arith.addf %82, %81 : vector<8x128xf32>
    %84 = arith.divf %82, %83 : vector<8x128xf32>
    %85 = arith.mulf %76, %59 : vector<8x128xf32>
    %86 = arith.mulf %70, %78 : vector<8x128xf32>
    %87 = arith.addf %85, %86 : vector<8x128xf32>
    %88 = math.tanh %87 : vector<8x128xf32>
    %89 = arith.mulf %84, %88 : vector<8x128xf32>
    %90 = arith.index_cast %55 : i32 to index
    %c0_35 = arith.constant 0 : index
    %91 = vector.load %arg16[%90, %c0_35] : memref<64x128xf32, #tpu.memory_space<vmem>>, vector<8x128xf32>
    tpu.vector_store %arg16[%90, %c0_35], %89 {strides = array<i32>} : memref<64x128xf32, #tpu.memory_space<vmem>>, vector<8x128xf32>,
    %c2_i32 = arith.constant 2 : i32
    %c8_i32_36 = arith.constant 8 : i32
    %92 = arith.muli %c2_i32, %c8_i32_36 : i32
    %93 = tpu.assume_multiple %92, 8 : i32
    %94 = arith.index_cast %93 : i32 to index
    %c0_37 = arith.constant 0 : index
    %95 = vector.load %arg2[%94, %c0_37] : memref<64x128xf32, #tpu.memory_space<vmem>>, vector<8x128xf32>
    %96 = arith.mulf %89, %95 : vector<8x128xf32>
    %97 = arith.mulf %87, %95 : vector<8x128xf32>
    %98 = arith.index_cast %93 : i32 to index
    %c0_38 = arith.constant 0 : index
    %99 = vector.load %arg15[%98, %c0_38] : memref<64x512xf32, #tpu.memory_space<vmem>>, vector<8x512xf32>
    %c0_39 = arith.constant 0 : index
    %c0_40 = arith.constant 0 : index
    %100 = vector.load %arg8[%c0_39, %c0_40] : memref<128x512xf32, #tpu.memory_space<vmem>>, vector<128x512xf32>
    %cst_41 = arith.constant dense<0.000000e+00> : vector<8x512xf32>
    %101 = tpu.matmul %96, %100, %cst_41 {dimension_numbers = #tpu.dot_dimension_numbers<[1], [0], [0], [1], [0, 0, 1, 1], [], []>} : vector<8x128xf32>, vector<128x512xf32>, vector<8x512xf32> -> vector<8x512xf32>
    %102 = arith.addf %99, %101 : vector<8x512xf32>
    %103 = vector.extract_strided_slice %102 {offsets = [0, 0], sizes = [8, 128], strides = [1, 1]} : vector<8x512xf32> to vector<8x128xf32>
    %104 = arith.negf %103 : vector<8x128xf32>
    %105 = math.exp %104 : vector<8x128xf32>
    %cst_42 = arith.constant 1.000000e+00 : f32
    %106 = vector.broadcast %cst_42 : f32 to vector<8x128xf32>
    %107 = arith.addf %106, %105 : vector<8x128xf32>
    %108 = arith.divf %106, %107 : vector<8x128xf32>
    %109 = vector.extract_strided_slice %102 {offsets = [0, 128], sizes = [8, 128], strides = [1, 1]} : vector<8x512xf32> to vector<8x128xf32>
    %110 = arith.negf %109 : vector<8x128xf32>
    %111 = math.exp %110 : vector<8x128xf32>
    %cst_43 = arith.constant 1.000000e+00 : f32
    %112 = vector.broadcast %cst_43 : f32 to vector<8x128xf32>
    %113 = arith.addf %112, %111 : vector<8x128xf32>
    %114 = arith.divf %112, %113 : vector<8x128xf32>
    %115 = vector.extract_strided_slice %102 {offsets = [0, 256], sizes = [8, 128], strides = [1, 1]} : vector<8x512xf32> to vector<8x128xf32>
    %116 = math.tanh %115 : vector<8x128xf32>
    %117 = vector.extract_strided_slice %102 {offsets = [0, 384], sizes = [8, 128], strides = [1, 1]} : vector<8x512xf32> to vector<8x128xf32>
    %118 = arith.negf %117 : vector<8x128xf32>
    %119 = math.exp %118 : vector<8x128xf32>
    %cst_44 = arith.constant 1.000000e+00 : f32
    %120 = vector.broadcast %cst_44 : f32 to vector<8x128xf32>
    %121 = arith.addf %120, %119 : vector<8x128xf32>
    %122 = arith.divf %120, %121 : vector<8x128xf32>
    %123 = arith.mulf %114, %97 : vector<8x128xf32>
    %124 = arith.mulf %108, %116 : vector<8x128xf32>
    %125 = arith.addf %123, %124 : vector<8x128xf32>
    %126 = math.tanh %125 : vector<8x128xf32>
    %127 = arith.mulf %122, %126 : vector<8x128xf32>
    %128 = arith.index_cast %93 : i32 to index
    %c0_45 = arith.constant 0 : index
    %129 = vector.load %arg16[%128, %c0_45] : memref<64x128xf32, #tpu.memory_space<vmem>>, vector<8x128xf32>
    tpu.vector_store %arg16[%128, %c0_45], %127 {strides = array<i32>} : memref<64x128xf32, #tpu.memory_space<vmem>>, vector<8x128xf32>,
    %c3_i32 = arith.constant 3 : i32
    %c8_i32_46 = arith.constant 8 : i32
    %130 = arith.muli %c3_i32, %c8_i32_46 : i32
    %131 = tpu.assume_multiple %130, 8 : i32
    %132 = arith.index_cast %131 : i32 to index
    %c0_47 = arith.constant 0 : index
    %133 = vector.load %arg2[%132, %c0_47] : memref<64x128xf32, #tpu.memory_space<vmem>>, vector<8x128xf32>
    %134 = arith.mulf %127, %133 : vector<8x128xf32>
    %135 = arith.mulf %125, %133 : vector<8x128xf32>
    %136 = arith.index_cast %131 : i32 to index
    %c0_48 = arith.constant 0 : index
    %137 = vector.load %arg15[%136, %c0_48] : memref<64x512xf32, #tpu.memory_space<vmem>>, vector<8x512xf32>
    %c0_49 = arith.constant 0 : index
    %c0_50 = arith.constant 0 : index
    %138 = vector.load %arg8[%c0_49, %c0_50] : memref<128x512xf32, #tpu.memory_space<vmem>>, vector<128x512xf32>
    %cst_51 = arith.constant dense<0.000000e+00> : vector<8x512xf32>
    %139 = tpu.matmul %134, %138, %cst_51 {dimension_numbers = #tpu.dot_dimension_numbers<[1], [0], [0], [1], [0, 0, 1, 1], [], []>} : vector<8x128xf32>, vector<128x512xf32>, vector<8x512xf32> -> vector<8x512xf32>
    %140 = arith.addf %137, %139 : vector<8x512xf32>
    %141 = vector.extract_strided_slice %140 {offsets = [0, 0], sizes = [8, 128], strides = [1, 1]} : vector<8x512xf32> to vector<8x128xf32>
    %142 = arith.negf %141 : vector<8x128xf32>
    %143 = math.exp %142 : vector<8x128xf32>
    %cst_52 = arith.constant 1.000000e+00 : f32
    %144 = vector.broadcast %cst_52 : f32 to vector<8x128xf32>
    %145 = arith.addf %144, %143 : vector<8x128xf32>
    %146 = arith.divf %144, %145 : vector<8x128xf32>
    %147 = vector.extract_strided_slice %140 {offsets = [0, 128], sizes = [8, 128], strides = [1, 1]} : vector<8x512xf32> to vector<8x128xf32>
    %148 = arith.negf %147 : vector<8x128xf32>
    %149 = math.exp %148 : vector<8x128xf32>
    %cst_53 = arith.constant 1.000000e+00 : f32
    %150 = vector.broadcast %cst_53 : f32 to vector<8x128xf32>
    %151 = arith.addf %150, %149 : vector<8x128xf32>
    %152 = arith.divf %150, %151 : vector<8x128xf32>
    %153 = vector.extract_strided_slice %140 {offsets = [0, 256], sizes = [8, 128], strides = [1, 1]} : vector<8x512xf32> to vector<8x128xf32>
    %154 = math.tanh %153 : vector<8x128xf32>
    %155 = vector.extract_strided_slice %140 {offsets = [0, 384], sizes = [8, 128], strides = [1, 1]} : vector<8x512xf32> to vector<8x128xf32>
    %156 = arith.negf %155 : vector<8x128xf32>
    %157 = math.exp %156 : vector<8x128xf32>
    %cst_54 = arith.constant 1.000000e+00 : f32
    %158 = vector.broadcast %cst_54 : f32 to vector<8x128xf32>
    %159 = arith.addf %158, %157 : vector<8x128xf32>
    %160 = arith.divf %158, %159 : vector<8x128xf32>
    %161 = arith.mulf %152, %135 : vector<8x128xf32>
    %162 = arith.mulf %146, %154 : vector<8x128xf32>
    %163 = arith.addf %161, %162 : vector<8x128xf32>
    %164 = math.tanh %163 : vector<8x128xf32>
    %165 = arith.mulf %160, %164 : vector<8x128xf32>
    %166 = arith.index_cast %131 : i32 to index
    %c0_55 = arith.constant 0 : index
    %167 = vector.load %arg16[%166, %c0_55] : memref<64x128xf32, #tpu.memory_space<vmem>>, vector<8x128xf32>
    tpu.vector_store %arg16[%166, %c0_55], %165 {strides = array<i32>} : memref<64x128xf32, #tpu.memory_space<vmem>>, vector<8x128xf32>,
    %c4_i32 = arith.constant 4 : i32
    %c8_i32_56 = arith.constant 8 : i32
    %168 = arith.muli %c4_i32, %c8_i32_56 : i32
    %169 = tpu.assume_multiple %168, 8 : i32
    %170 = arith.index_cast %169 : i32 to index
    %c0_57 = arith.constant 0 : index
    %171 = vector.load %arg2[%170, %c0_57] : memref<64x128xf32, #tpu.memory_space<vmem>>, vector<8x128xf32>
    %172 = arith.mulf %165, %171 : vector<8x128xf32>
    %173 = arith.mulf %163, %171 : vector<8x128xf32>
    %174 = arith.index_cast %169 : i32 to index
    %c0_58 = arith.constant 0 : index
    %175 = vector.load %arg15[%174, %c0_58] : memref<64x512xf32, #tpu.memory_space<vmem>>, vector<8x512xf32>
    %c0_59 = arith.constant 0 : index
    %c0_60 = arith.constant 0 : index
    %176 = vector.load %arg8[%c0_59, %c0_60] : memref<128x512xf32, #tpu.memory_space<vmem>>, vector<128x512xf32>
    %cst_61 = arith.constant dense<0.000000e+00> : vector<8x512xf32>
    %177 = tpu.matmul %172, %176, %cst_61 {dimension_numbers = #tpu.dot_dimension_numbers<[1], [0], [0], [1], [0, 0, 1, 1], [], []>} : vector<8x128xf32>, vector<128x512xf32>, vector<8x512xf32> -> vector<8x512xf32>
    %178 = arith.addf %175, %177 : vector<8x512xf32>
    %179 = vector.extract_strided_slice %178 {offsets = [0, 0], sizes = [8, 128], strides = [1, 1]} : vector<8x512xf32> to vector<8x128xf32>
    %180 = arith.negf %179 : vector<8x128xf32>
    %181 = math.exp %180 : vector<8x128xf32>
    %cst_62 = arith.constant 1.000000e+00 : f32
    %182 = vector.broadcast %cst_62 : f32 to vector<8x128xf32>
    %183 = arith.addf %182, %181 : vector<8x128xf32>
    %184 = arith.divf %182, %183 : vector<8x128xf32>
    %185 = vector.extract_strided_slice %178 {offsets = [0, 128], sizes = [8, 128], strides = [1, 1]} : vector<8x512xf32> to vector<8x128xf32>
    %186 = arith.negf %185 : vector<8x128xf32>
    %187 = math.exp %186 : vector<8x128xf32>
    %cst_63 = arith.constant 1.000000e+00 : f32
    %188 = vector.broadcast %cst_63 : f32 to vector<8x128xf32>
    %189 = arith.addf %188, %187 : vector<8x128xf32>
    %190 = arith.divf %188, %189 : vector<8x128xf32>
    %191 = vector.extract_strided_slice %178 {offsets = [0, 256], sizes = [8, 128], strides = [1, 1]} : vector<8x512xf32> to vector<8x128xf32>
    %192 = math.tanh %191 : vector<8x128xf32>
    %193 = vector.extract_strided_slice %178 {offsets = [0, 384], sizes = [8, 128], strides = [1, 1]} : vector<8x512xf32> to vector<8x128xf32>
    %194 = arith.negf %193 : vector<8x128xf32>
    %195 = math.exp %194 : vector<8x128xf32>
    %cst_64 = arith.constant 1.000000e+00 : f32
    %196 = vector.broadcast %cst_64 : f32 to vector<8x128xf32>
    %197 = arith.addf %196, %195 : vector<8x128xf32>
    %198 = arith.divf %196, %197 : vector<8x128xf32>
    %199 = arith.mulf %190, %173 : vector<8x128xf32>
    %200 = arith.mulf %184, %192 : vector<8x128xf32>
    %201 = arith.addf %199, %200 : vector<8x128xf32>
    %202 = math.tanh %201 : vector<8x128xf32>
    %203 = arith.mulf %198, %202 : vector<8x128xf32>
    %204 = arith.index_cast %169 : i32 to index
    %c0_65 = arith.constant 0 : index
    %205 = vector.load %arg16[%204, %c0_65] : memref<64x128xf32, #tpu.memory_space<vmem>>, vector<8x128xf32>
    tpu.vector_store %arg16[%204, %c0_65], %203 {strides = array<i32>} : memref<64x128xf32, #tpu.memory_space<vmem>>, vector<8x128xf32>,
    %c5_i32 = arith.constant 5 : i32
    %c8_i32_66 = arith.constant 8 : i32
    %206 = arith.muli %c5_i32, %c8_i32_66 : i32
    %207 = tpu.assume_multiple %206, 8 : i32
    %208 = arith.index_cast %207 : i32 to index
    %c0_67 = arith.constant 0 : index
    %209 = vector.load %arg2[%208, %c0_67] : memref<64x128xf32, #tpu.memory_space<vmem>>, vector<8x128xf32>
    %210 = arith.mulf %203, %209 : vector<8x128xf32>
    %211 = arith.mulf %201, %209 : vector<8x128xf32>
    %212 = arith.index_cast %207 : i32 to index
    %c0_68 = arith.constant 0 : index
    %213 = vector.load %arg15[%212, %c0_68] : memref<64x512xf32, #tpu.memory_space<vmem>>, vector<8x512xf32>
    %c0_69 = arith.constant 0 : index
    %c0_70 = arith.constant 0 : index
    %214 = vector.load %arg8[%c0_69, %c0_70] : memref<128x512xf32, #tpu.memory_space<vmem>>, vector<128x512xf32>
    %cst_71 = arith.constant dense<0.000000e+00> : vector<8x512xf32>
    %215 = tpu.matmul %210, %214, %cst_71 {dimension_numbers = #tpu.dot_dimension_numbers<[1], [0], [0], [1], [0, 0, 1, 1], [], []>} : vector<8x128xf32>, vector<128x512xf32>, vector<8x512xf32> -> vector<8x512xf32>
    %216 = arith.addf %213, %215 : vector<8x512xf32>
    %217 = vector.extract_strided_slice %216 {offsets = [0, 0], sizes = [8, 128], strides = [1, 1]} : vector<8x512xf32> to vector<8x128xf32>
    %218 = arith.negf %217 : vector<8x128xf32>
    %219 = math.exp %218 : vector<8x128xf32>
    %cst_72 = arith.constant 1.000000e+00 : f32
    %220 = vector.broadcast %cst_72 : f32 to vector<8x128xf32>
    %221 = arith.addf %220, %219 : vector<8x128xf32>
    %222 = arith.divf %220, %221 : vector<8x128xf32>
    %223 = vector.extract_strided_slice %216 {offsets = [0, 128], sizes = [8, 128], strides = [1, 1]} : vector<8x512xf32> to vector<8x128xf32>
    %224 = arith.negf %223 : vector<8x128xf32>
    %225 = math.exp %224 : vector<8x128xf32>
    %cst_73 = arith.constant 1.000000e+00 : f32
    %226 = vector.broadcast %cst_73 : f32 to vector<8x128xf32>
    %227 = arith.addf %226, %225 : vector<8x128xf32>
    %228 = arith.divf %226, %227 : vector<8x128xf32>
    %229 = vector.extract_strided_slice %216 {offsets = [0, 256], sizes = [8, 128], strides = [1, 1]} : vector<8x512xf32> to vector<8x128xf32>
    %230 = math.tanh %229 : vector<8x128xf32>
    %231 = vector.extract_strided_slice %216 {offsets = [0, 384], sizes = [8, 128], strides = [1, 1]} : vector<8x512xf32> to vector<8x128xf32>
    %232 = arith.negf %231 : vector<8x128xf32>
    %233 = math.exp %232 : vector<8x128xf32>
    %cst_74 = arith.constant 1.000000e+00 : f32
    %234 = vector.broadcast %cst_74 : f32 to vector<8x128xf32>
    %235 = arith.addf %234, %233 : vector<8x128xf32>
    %236 = arith.divf %234, %235 : vector<8x128xf32>
    %237 = arith.mulf %228, %211 : vector<8x128xf32>
    %238 = arith.mulf %222, %230 : vector<8x128xf32>
    %239 = arith.addf %237, %238 : vector<8x128xf32>
    %240 = math.tanh %239 : vector<8x128xf32>
    %241 = arith.mulf %236, %240 : vector<8x128xf32>
    %242 = arith.index_cast %207 : i32 to index
    %c0_75 = arith.constant 0 : index
    %243 = vector.load %arg16[%242, %c0_75] : memref<64x128xf32, #tpu.memory_space<vmem>>, vector<8x128xf32>
    tpu.vector_store %arg16[%242, %c0_75], %241 {strides = array<i32>} : memref<64x128xf32, #tpu.memory_space<vmem>>, vector<8x128xf32>,
    %c6_i32 = arith.constant 6 : i32
    %c8_i32_76 = arith.constant 8 : i32
    %244 = arith.muli %c6_i32, %c8_i32_76 : i32
    %245 = tpu.assume_multiple %244, 8 : i32
    %246 = arith.index_cast %245 : i32 to index
    %c0_77 = arith.constant 0 : index
    %247 = vector.load %arg2[%246, %c0_77] : memref<64x128xf32, #tpu.memory_space<vmem>>, vector<8x128xf32>
    %248 = arith.mulf %241, %247 : vector<8x128xf32>
    %249 = arith.mulf %239, %247 : vector<8x128xf32>
    %250 = arith.index_cast %245 : i32 to index
    %c0_78 = arith.constant 0 : index
    %251 = vector.load %arg15[%250, %c0_78] : memref<64x512xf32, #tpu.memory_space<vmem>>, vector<8x512xf32>
    %c0_79 = arith.constant 0 : index
    %c0_80 = arith.constant 0 : index
    %252 = vector.load %arg8[%c0_79, %c0_80] : memref<128x512xf32, #tpu.memory_space<vmem>>, vector<128x512xf32>
    %cst_81 = arith.constant dense<0.000000e+00> : vector<8x512xf32>
    %253 = tpu.matmul %248, %252, %cst_81 {dimension_numbers = #tpu.dot_dimension_numbers<[1], [0], [0], [1], [0, 0, 1, 1], [], []>} : vector<8x128xf32>, vector<128x512xf32>, vector<8x512xf32> -> vector<8x512xf32>
    %254 = arith.addf %251, %253 : vector<8x512xf32>
    %255 = vector.extract_strided_slice %254 {offsets = [0, 0], sizes = [8, 128], strides = [1, 1]} : vector<8x512xf32> to vector<8x128xf32>
    %256 = arith.negf %255 : vector<8x128xf32>
    %257 = math.exp %256 : vector<8x128xf32>
    %cst_82 = arith.constant 1.000000e+00 : f32
    %258 = vector.broadcast %cst_82 : f32 to vector<8x128xf32>
    %259 = arith.addf %258, %257 : vector<8x128xf32>
    %260 = arith.divf %258, %259 : vector<8x128xf32>
    %261 = vector.extract_strided_slice %254 {offsets = [0, 128], sizes = [8, 128], strides = [1, 1]} : vector<8x512xf32> to vector<8x128xf32>
    %262 = arith.negf %261 : vector<8x128xf32>
    %263 = math.exp %262 : vector<8x128xf32>
    %cst_83 = arith.constant 1.000000e+00 : f32
    %264 = vector.broadcast %cst_83 : f32 to vector<8x128xf32>
    %265 = arith.addf %264, %263 : vector<8x128xf32>
    %266 = arith.divf %264, %265 : vector<8x128xf32>
    %267 = vector.extract_strided_slice %254 {offsets = [0, 256], sizes = [8, 128], strides = [1, 1]} : vector<8x512xf32> to vector<8x128xf32>
    %268 = math.tanh %267 : vector<8x128xf32>
    %269 = vector.extract_strided_slice %254 {offsets = [0, 384], sizes = [8, 128], strides = [1, 1]} : vector<8x512xf32> to vector<8x128xf32>
    %270 = arith.negf %269 : vector<8x128xf32>
    %271 = math.exp %270 : vector<8x128xf32>
    %cst_84 = arith.constant 1.000000e+00 : f32
    %272 = vector.broadcast %cst_84 : f32 to vector<8x128xf32>
    %273 = arith.addf %272, %271 : vector<8x128xf32>
    %274 = arith.divf %272, %273 : vector<8x128xf32>
    %275 = arith.mulf %266, %249 : vector<8x128xf32>
    %276 = arith.mulf %260, %268 : vector<8x128xf32>
    %277 = arith.addf %275, %276 : vector<8x128xf32>
    %278 = math.tanh %277 : vector<8x128xf32>
    %279 = arith.mulf %274, %278 : vector<8x128xf32>
    %280 = arith.index_cast %245 : i32 to index
    %c0_85 = arith.constant 0 : index
    %281 = vector.load %arg16[%280, %c0_85] : memref<64x128xf32, #tpu.memory_space<vmem>>, vector<8x128xf32>
    tpu.vector_store %arg16[%280, %c0_85], %279 {strides = array<i32>} : memref<64x128xf32, #tpu.memory_space<vmem>>, vector<8x128xf32>,
    %c7_i32 = arith.constant 7 : i32
    %c8_i32_86 = arith.constant 8 : i32
    %282 = arith.muli %c7_i32, %c8_i32_86 : i32
    %283 = tpu.assume_multiple %282, 8 : i32
    %284 = arith.index_cast %283 : i32 to index
    %c0_87 = arith.constant 0 : index
    %285 = vector.load %arg2[%284, %c0_87] : memref<64x128xf32, #tpu.memory_space<vmem>>, vector<8x128xf32>
    %286 = arith.mulf %279, %285 : vector<8x128xf32>
    %287 = arith.mulf %277, %285 : vector<8x128xf32>
    %288 = arith.index_cast %283 : i32 to index
    %c0_88 = arith.constant 0 : index
    %289 = vector.load %arg15[%288, %c0_88] : memref<64x512xf32, #tpu.memory_space<vmem>>, vector<8x512xf32>
    %c0_89 = arith.constant 0 : index
    %c0_90 = arith.constant 0 : index
    %290 = vector.load %arg8[%c0_89, %c0_90] : memref<128x512xf32, #tpu.memory_space<vmem>>, vector<128x512xf32>
    %cst_91 = arith.constant dense<0.000000e+00> : vector<8x512xf32>
    %291 = tpu.matmul %286, %290, %cst_91 {dimension_numbers = #tpu.dot_dimension_numbers<[1], [0], [0], [1], [0, 0, 1, 1], [], []>} : vector<8x128xf32>, vector<128x512xf32>, vector<8x512xf32> -> vector<8x512xf32>
    %292 = arith.addf %289, %291 : vector<8x512xf32>
    %293 = vector.extract_strided_slice %292 {offsets = [0, 0], sizes = [8, 128], strides = [1, 1]} : vector<8x512xf32> to vector<8x128xf32>
    %294 = arith.negf %293 : vector<8x128xf32>
    %295 = math.exp %294 : vector<8x128xf32>
    %cst_92 = arith.constant 1.000000e+00 : f32
    %296 = vector.broadcast %cst_92 : f32 to vector<8x128xf32>
    %297 = arith.addf %296, %295 : vector<8x128xf32>
    %298 = arith.divf %296, %297 : vector<8x128xf32>
    %299 = vector.extract_strided_slice %292 {offsets = [0, 128], sizes = [8, 128], strides = [1, 1]} : vector<8x512xf32> to vector<8x128xf32>
    %300 = arith.negf %299 : vector<8x128xf32>
    %301 = math.exp %300 : vector<8x128xf32>
    %cst_93 = arith.constant 1.000000e+00 : f32
    %302 = vector.broadcast %cst_93 : f32 to vector<8x128xf32>
    %303 = arith.addf %302, %301 : vector<8x128xf32>
    %304 = arith.divf %302, %303 : vector<8x128xf32>
    %305 = vector.extract_strided_slice %292 {offsets = [0, 256], sizes = [8, 128], strides = [1, 1]} : vector<8x512xf32> to vector<8x128xf32>
    %306 = math.tanh %305 : vector<8x128xf32>
    %307 = vector.extract_strided_slice %292 {offsets = [0, 384], sizes = [8, 128], strides = [1, 1]} : vector<8x512xf32> to vector<8x128xf32>
    %308 = arith.negf %307 : vector<8x128xf32>
    %309 = math.exp %308 : vector<8x128xf32>
    %cst_94 = arith.constant 1.000000e+00 : f32
    %310 = vector.broadcast %cst_94 : f32 to vector<8x128xf32>
    %311 = arith.addf %310, %309 : vector<8x128xf32>
    %312 = arith.divf %310, %311 : vector<8x128xf32>
    %313 = arith.mulf %304, %287 : vector<8x128xf32>
    %314 = arith.mulf %298, %306 : vector<8x128xf32>
    %315 = arith.addf %313, %314 : vector<8x128xf32>
    %316 = math.tanh %315 : vector<8x128xf32>
    %317 = arith.mulf %312, %316 : vector<8x128xf32>
    %318 = arith.index_cast %283 : i32 to index
    %c0_95 = arith.constant 0 : index
    %319 = vector.load %arg16[%318, %c0_95] : memref<64x128xf32, #tpu.memory_space<vmem>>, vector<8x128xf32>
    tpu.vector_store %arg16[%318, %c0_95], %317 {strides = array<i32>} : memref<64x128xf32, #tpu.memory_space<vmem>>, vector<8x128xf32>,
    %c8_i32_96 = arith.constant 8 : i32
    %c0_97 = arith.constant 0 : index
    %c0_98 = arith.constant 0 : index
    %320 = vector.load %arg13[%c0_97, %c0_98] : memref<8x128xf32, #tpu.memory_space<vmem>>, vector<8x128xf32>
    tpu.vector_store %arg13[%c0_97, %c0_98], %317 {strides = array<i32>} : memref<8x128xf32, #tpu.memory_space<vmem>>, vector<8x128xf32>,
    %c0_99 = arith.constant 0 : index
    %c0_100 = arith.constant 0 : index
    %321 = vector.load %arg14[%c0_99, %c0_100] : memref<8x128xf32, #tpu.memory_space<vmem>>, vector<8x128xf32>
    tpu.vector_store %arg14[%c0_99, %c0_100], %315 {strides = array<i32>} : memref<8x128xf32, #tpu.memory_space<vmem>>, vector<8x128xf32>,
    %c0_101 = arith.constant 0 : index
    %c0_102 = arith.constant 0 : index
    %322 = vector.load %arg16[%c0_101, %c0_102] : memref<64x128xf32, #tpu.memory_space<vmem>>, vector<64x128xf32>
    %c0_103 = arith.constant 0 : index
    %c0_104 = arith.constant 0 : index
    %323 = vector.load %arg10[%c0_103, %c0_104] : memref<128x128xf32, #tpu.memory_space<vmem>>, vector<128x128xf32>
    %cst_105 = arith.constant dense<0.000000e+00> : vector<64x128xf32>
    %324 = tpu.matmul %322, %323, %cst_105 {dimension_numbers = #tpu.dot_dimension_numbers<[1], [0], [0], [1], [0, 0, 1, 1], [], []>} : vector<64x128xf32>, vector<128x128xf32>, vector<64x128xf32> -> vector<64x128xf32>
    %c0_106 = arith.constant 0 : index
    %c0_107 = arith.constant 0 : index
    %325 = vector.load %arg11[%c0_106, %c0_107] : memref<1x128xf32, #tpu.memory_space<vmem>>, vector<1x128xf32>
    %326 = vector.broadcast %325 : vector<1x128xf32> to vector<64x128xf32>
    %327 = arith.addf %324, %326 : vector<64x128xf32>
    %328 = math.tanh %327 : vector<64x128xf32>
    %c0_108 = arith.constant 0 : index
    %c0_109 = arith.constant 0 : index
    %329 = vector.load %arg12[%c0_108, %c0_109] : memref<64x128xf32, #tpu.memory_space<vmem>>, vector<64x128xf32>
    tpu.vector_store %arg12[%c0_108, %c0_109], %328 {strides = array<i32>} : memref<64x128xf32, #tpu.memory_space<vmem>>, vector<64x128xf32>,
    return
  }
  func.func @transform_0(%arg0: i32) -> (i32, i32) {
    %c0_i32 = arith.constant 0 : i32
    %c0_i32_0 = arith.constant 0 : i32
    %c0_i32_1 = arith.constant 0 : i32
    return %c0_i32, %c0_i32_0 : i32, i32
  }
  func.func @transform_1(%arg0: i32) -> (i32, i32) {
    %c0_i32 = arith.constant 0 : i32
    %c0_i32_0 = arith.constant 0 : i32
    %c0_i32_1 = arith.constant 0 : i32
    return %c0_i32, %c0_i32_0 : i32, i32
  }
  func.func @transform_2(%arg0: i32) -> (i32, i32) {
    %c0_i32 = arith.constant 0 : i32
    %c0_i32_0 = arith.constant 0 : i32
    %c0_i32_1 = arith.constant 0 : i32
    return %c0_i32, %c0_i32_0 : i32, i32
  }
  func.func @transform_3(%arg0: i32) -> (i32, i32) {
    %c0_i32 = arith.constant 0 : i32
    %c0_i32_0 = arith.constant 0 : i32
    %c0_i32_1 = arith.constant 0 : i32
    return %c0_i32, %c0_i32_0 : i32, i32
  }
  func.func @transform_4(%arg0: i32) -> (i32, i32) {
    %c0_i32 = arith.constant 0 : i32
    %c0_i32_0 = arith.constant 0 : i32
    %c0_i32_1 = arith.constant 0 : i32
    return %c0_i32, %c0_i32_0 : i32, i32
  }
  func.func @transform_5(%arg0: i32) -> (i32, i32) {
    %c0_i32 = arith.constant 0 : i32
    %c0_i32_0 = arith.constant 0 : i32
    %c0_i32_1 = arith.constant 0 : i32
    return %c0_i32, %c0_i32_0 : i32, i32
  }
  func.func @transform_6(%arg0: i32) -> (i32, i32) {
    %c0_i32 = arith.constant 0 : i32
    %c0_i32_0 = arith.constant 0 : i32
    %c0_i32_1 = arith.constant 0 : i32
    return %c0_i32, %c0_i32_0 : i32, i32
  }
  func.func @transform_7(%arg0: i32) -> (i32, i32) {
    %c0_i32 = arith.constant 0 : i32
    %c0_i32_0 = arith.constant 0 : i32
    %c0_i32_1 = arith.constant 0 : i32
    return %c0_i32, %c0_i32_0 : i32, i32
  }
  func.func @transform_8(%arg0: i32) -> (i32, i32) {
    %c0_i32 = arith.constant 0 : i32
    %c0_i32_0 = arith.constant 0 : i32
    %c0_i32_1 = arith.constant 0 : i32
    return %c0_i32, %c0_i32_0 : i32, i32
  }
  func.func @transform_9(%arg0: i32) -> (i32, i32) {
    %c0_i32 = arith.constant 0 : i32
    %c0_i32_0 = arith.constant 0 : i32
    %c0_i32_1 = arith.constant 0 : i32
    return %c0_i32, %c0_i32_0 : i32, i32
  }
  func.func @transform_10(%arg0: i32) -> (i32, i32) {
    %c0_i32 = arith.constant 0 : i32
    %c0_i32_0 = arith.constant 0 : i32
    %c0_i32_1 = arith.constant 0 : i32
    return %c0_i32, %c0_i32_0 : i32, i32
  }
  func.func @transform_11(%arg0: i32) -> (i32, i32) {
    %c0_i32 = arith.constant 0 : i32
    %c0_i32_0 = arith.constant 0 : i32
    %c0_i32_1 = arith.constant 0 : i32
    return %c0_i32, %c0_i32_0 : i32, i32
  }
  func.func @transform_12(%arg0: i32) -> (i32, i32) {
    %c0_i32 = arith.constant 0 : i32
    %c0_i32_0 = arith.constant 0 : i32
    %c0_i32_1 = arith.constant 0 : i32
    return %c0_i32, %c0_i32_0 : i32, i32
  }
  func.func @transform_13(%arg0: i32) -> (i32, i32) {
    %c0_i32 = arith.constant 0 : i32
    %c0_i32_0 = arith.constant 0 : i32
    %c0_i32_1 = arith.constant 0 : i32
    return %c0_i32, %c0_i32_0 : i32, i32
  }
}

</mosaic_0001>

<llo_original>
// kernel: tpu_custom_call.1
$region0: #{tpu_custom_call.1}
  #allocation0 [shape = 'u32[]', space=smem, size = 0x4, offset = 0x4, fixed_abs, tag = 'smem constant byte address 0x4 - core index']
  #allocation1 [shape = 'u32[144,128]{1,0:T(1,128)}', space=vmem, size = 0x12000, scoped, tag = 'internal scratch']
  #allocation2 [shape = 'f32[64,512]{1,0:T(8,128)}', space=vmem, size = 0x20000, scoped, tag = 'scratch operand']
  #allocation3 [shape = 'f32[64,128]{1,0:T(8,128)}', space=vmem, size = 0x8000, scoped, tag = 'scratch operand']
  %s0 = inlined_call_operand.vmem [shape: f32[64,16], index: 0, kind: input, shape index: {}]
  %s1 = inlined_call_operand.vmem [shape: f32[64,128], index: 1, kind: input, shape index: {}]
  %s2 = inlined_call_operand.hbm [shape: f32[8,128], index: 2, kind: input, shape index: {}]
  %s3 = inlined_call_operand.vmem [shape: f32[8,128], index: 3, kind: input, shape index: {}]
  %s4 = inlined_call_operand.vmem [shape: f32[16,128], index: 4, kind: input, shape index: {}]
  %s5 = inlined_call_operand.vmem [shape: f32[1,128], index: 5, kind: input, shape index: {}]
  %s6 = inlined_call_operand.hbm [shape: f32[128,512], index: 6, kind: input, shape index: {}]
  %s7 = inlined_call_operand.hbm [shape: f32[128,512], index: 7, kind: input, shape index: {}]
  %s8 = inlined_call_operand.vmem [shape: f32[1,512], index: 8, kind: input, shape index: {}]
  %s9 = inlined_call_operand.hbm [shape: f32[128,128], index: 9, kind: input, shape index: {}]
  %s10 = inlined_call_operand.vmem [shape: f32[1,128], index: 10, kind: input, shape index: {}]
  %s11 = inlined_call_operand.hbm [shape: f32[64,128], index: 11, kind: output, shape index: {0}]
  %s12 = inlined_call_operand.hbm [shape: f32[8,128], index: 12, kind: output, shape index: {1}]
  %s13 = inlined_call_operand.hbm [shape: f32[8,128], index: 13, kind: output, shape index: {2}]
  %14 = xla_tuple %s11, %s12, %s13
  %s15 = sld [smem:[#allocation0]]
  $region86: #{tpu_custom_call.1} parent=0
    _
  %s17 = ssub.s32 1, %s15
  %s18 = scalar_select 0, %s17, %s15
  $region1: #{tpu_custom_call.1} parent=0
    #allocation4 [shape = 'u8[4096]{0}', space=vmem, size = 0x1000, scoped, tag = 'input window, operand 2, single buffered']
    #allocation5 [shape = 's32[1]{0}', space=sflag, size = 0x4, scoped, tag = 'scoped memory for tpu_custom_call.1']
    #allocation6 [shape = 's32[1]{0}', space=sflag, size = 0x4, scoped, tag = 'scoped memory for tpu_custom_call.1']
    #allocation7 [shape = 'u8[262144]{0}', space=vmem, size = 0x40000, scoped, tag = 'input window, operand 6, single buffered']
    #allocation8 [shape = 's32[1]{0}', space=sflag, size = 0x4, scoped, tag = 'scoped memory for tpu_custom_call.1']
    #allocation9 [shape = 'u8[262144]{0}', space=vmem, size = 0x40000, scoped, tag = 'input window, operand 7, single buffered']
    #allocation10 [shape = 'u8[65536]{0}', space=vmem, size = 0x10000, scoped, tag = 'input window, operand 9, single buffered']
    #allocation11 [shape = 's32[1]{0}', space=sflag, size = 0x4, scoped, tag = 'scoped memory for tpu_custom_call.1']
    #allocation12 [shape = 'u8[32768]{0}', space=vmem, size = 0x8000, scoped, tag = 'output window, operand 0, single buffered']
    #allocation13 [shape = 'u8[4096]{0}', space=vmem, size = 0x1000, scoped, tag = 'output window, operand 1, single buffered']
    #allocation14 [shape = 's32[1]{0}', space=sflag, size = 0x4, scoped, tag = 'scoped memory for tpu_custom_call.1']
    #allocation15 [shape = 'u8[4096]{0}', space=vmem, size = 0x1000, scoped, tag = 'output window, operand 2, single buffered']
    %19 = vsyncpa [#allocation5], 0
    %20 = vsyncpa [#allocation8], 0
    %21 = vsyncpa [#allocation11], 0
    %22 = vsyncpa [#allocation6], 0
    %23 = vsyncpa [#allocation14], 0
    // Predicated region
    $region2: #{tpu_custom_call.1} parent=1 // pred_check
      _
    $region3: #{tpu_custom_call.1} parent=1 // pred_check_branch
      %25 = sbr.rel (0) target = $region5
    $region4: #{tpu_custom_call.1} parent=1 // pred_region
      _
    $region5: #{tpu_custom_call.1} parent=1 // pred_fallthru
      _
    // Predicated region
    $region6: #{tpu_custom_call.1} parent=1 // pred_check
      _
    $region7: #{tpu_custom_call.1} parent=1 // pred_check_branch
      %27 = sbr.rel (0) target = $region9
    $region8: #{tpu_custom_call.1} parent=1 // pred_region
      _
    $region9: #{tpu_custom_call.1} parent=1 // pred_fallthru
      _
    // Predicated region
    $region10: #{tpu_custom_call.1} parent=1 // pred_check
      _
    $region11: #{tpu_custom_call.1} parent=1 // pred_check_branch
      %29 = sbr.rel (0) target = $region13
    $region12: #{tpu_custom_call.1} parent=1 // pred_region
      %s31 = ssub.s32 128, 128
      %32 = vsyncadd [#allocation5], %s31
      %s34 = sshll.u32 [#allocation4], 4
      %s35 = int_to_ptr.vmem [resolvable:$true] %s34
      %37 = dma.hbm_to_vmem [thread:$0]  %s2, 128, %s35, [#allocation5]
    $region13: #{tpu_custom_call.1} parent=1 // pred_fallthru
      _
    // Predicated region
    $region14: #{tpu_custom_call.1} parent=1 // pred_check
      _
    $region15: #{tpu_custom_call.1} parent=1 // pred_check_branch
      %39 = sbr.rel (0) target = $region17
    $region16: #{tpu_custom_call.1} parent=1 // pred_region
      _
    $region17: #{tpu_custom_call.1} parent=1 // pred_fallthru
      _
    // Predicated region
    $region18: #{tpu_custom_call.1} parent=1 // pred_check
      _
    $region19: #{tpu_custom_call.1} parent=1 // pred_check_branch
      %41 = sbr.rel (0) target = $region21
    $region20: #{tpu_custom_call.1} parent=1 // pred_region
      _
    $region21: #{tpu_custom_call.1} parent=1 // pred_fallthru
      _
    // Predicated region
    $region22: #{tpu_custom_call.1} parent=1 // pred_check
      _
    $region23: #{tpu_custom_call.1} parent=1 // pred_check_branch
      %43 = sbr.rel (0) target = $region25
    $region24: #{tpu_custom_call.1} parent=1 // pred_region
      _
    $region25: #{tpu_custom_call.1} parent=1 // pred_fallthru
      _
    // Predicated region
    $region26: #{tpu_custom_call.1} parent=1 // pred_check
      _
    $region27: #{tpu_custom_call.1} parent=1 // pred_check_branch
      %45 = sbr.rel (0) target = $region29
    $region28: #{tpu_custom_call.1} parent=1 // pred_region
      %s47 = ssub.s32 8192, 8192
      %48 = vsyncadd [#allocation8], %s47
      %s49 = sshll.u32 [#allocation7], 4
      %s50 = int_to_ptr.vmem [resolvable:$true] %s49
      %55 = dma.hbm_to_vmem [thread:$0]  %s6, 8192, %s50, [#allocation8], 512, 512, 32
    $region29: #{tpu_custom_call.1} parent=1 // pred_fallthru
      _
    // Predicated region
    $region30: #{tpu_custom_call.1} parent=1 // pred_check
      _
    $region31: #{tpu_custom_call.1} parent=1 // pred_check_branch
      %57 = sbr.rel (0) target = $region33
    $region32: #{tpu_custom_call.1} parent=1 // pred_region
      %s59 = ssub.s32 8192, 8192
      %60 = vsyncadd [#allocation8], %s59
      %s61 = sshll.u32 [#allocation9], 4
      %s62 = int_to_ptr.vmem [resolvable:$true] %s61
      %67 = dma.hbm_to_vmem [thread:$0]  %s7, 8192, %s62, [#allocation8], 512, 512, 32
    $region33: #{tpu_custom_call.1} parent=1 // pred_fallthru
      _
    // Predicated region
    $region34: #{tpu_custom_call.1} parent=1 // pred_check
      _
    $region35: #{tpu_custom_call.1} parent=1 // pred_check_branch
      %69 = sbr.rel (0) target = $region37
    $region36: #{tpu_custom_call.1} parent=1 // pred_region
      _
    $region37: #{tpu_custom_call.1} parent=1 // pred_fallthru
      _
    // Predicated region
    $region38: #{tpu_custom_call.1} parent=1 // pred_check
      _
    $region39: #{tpu_custom_call.1} parent=1 // pred_check_branch
      %71 = sbr.rel (0) target = $region41
    $region40: #{tpu_custom_call.1} parent=1 // pred_region
      %s73 = ssub.s32 2048, 2048
      %74 = vsyncadd [#allocation11], %s73
      %s75 = sshll.u32 [#allocation10], 4
      %s76 = int_to_ptr.vmem [resolvable:$true] %s75
      %81 = dma.hbm_to_vmem [thread:$0]  %s9, 2048, %s76, [#allocation11], 128, 128, 8
    $region41: #{tpu_custom_call.1} parent=1 // pred_fallthru
      _
    // Predicated region
    $region42: #{tpu_custom_call.1} parent=1 // pred_check
      _
    $region43: #{tpu_custom_call.1} parent=1 // pred_check_branch
      %83 = sbr.rel (0) target = $region45
    $region44: #{tpu_custom_call.1} parent=1 // pred_region
      _
    $region45: #{tpu_custom_call.1} parent=1 // pred_fallthru
      _
    // Predicated region
    $region46: #{tpu_custom_call.1} parent=1 // pred_check
      _
    $region47: #{tpu_custom_call.1} parent=1 // pred_check_branch
      %85 = sbr.rel (0) target = $region49
    $region48: #{tpu_custom_call.1} parent=1 // pred_region
      %86 = dma.done [#allocation5], 128
    $region49: #{tpu_custom_call.1} parent=1 // pred_fallthru
      _
    // Predicated region
    $region50: #{tpu_custom_call.1} parent=1 // pred_check
      _
    $region51: #{tpu_custom_call.1} parent=1 // pred_check_branch
      %88 = sbr.rel (0) target = $region53
    $region52: #{tpu_custom_call.1} parent=1 // pred_region
      %89 = dma.done [#allocation8], 8192
    $region53: #{tpu_custom_call.1} parent=1 // pred_fallthru
      _
    // Predicated region
    $region54: #{tpu_custom_call.1} parent=1 // pred_check
      _
    $region55: #{tpu_custom_call.1} parent=1 // pred_check_branch
      %91 = sbr.rel (0) target = $region57
    $region56: #{tpu_custom_call.1} parent=1 // pred_region
      %92 = dma.done [#allocation8], 8192
    $region57: #{tpu_custom_call.1} parent=1 // pred_fallthru
      _
    // Predicated region
    $region58: #{tpu_custom_call.1} parent=1 // pred_check
      _
    $region59: #{tpu_custom_call.1} parent=1 // pred_check_branch
      %94 = sbr.rel (0) target = $region61
    $region60: #{tpu_custom_call.1} parent=1 // pred_region
      %95 = dma.done [#allocation11], 2048
    $region61: #{tpu_custom_call.1} parent=1 // pred_fallthru
      _
    %v96 = vld [vmem:[%s0] sm:$0xff]
    %v97 = vld [vmem:[%s0 + $0x8] sm:$0xff]
    %v98 = vld [vmem:[%s0 + $0x10] sm:$0xff]
    %v99 = vld [vmem:[%s0 + $0x18] sm:$0xff]
    %v100 = vld [vmem:[%s0 + $0x20] sm:$0xff]
    %v101 = vld [vmem:[%s0 + $0x28] sm:$0xff]
    %v102 = vld [vmem:[%s0 + $0x30] sm:$0xff]
    %v103 = vld [vmem:[%s0 + $0x38] sm:$0xff]
    %v104 = vld [vmem:[%s4] sm:$0xff]
    %v105 = vld [vmem:[%s4 + $0x8] sm:$0xff]
    %v106 = vld [vmem:[%s5] sm:$0x1]
    %v108 = vlaneseq
    %v109 = vshrl.u32 %v108, 7
    %v110 = vsub.s32 0, %v109
    %v111 = vrot.slane %v106, %v110
    %vm113 = vcmask 130048
    %v115 = vsel %vm113, %v96, 0
    %v118 = vsel %vm113, %v97, 0
    %v121 = vsel %vm113, %v98, 0
    %v124 = vsel %vm113, %v99, 0
    %v127 = vsel %vm113, %v100, 0
    %v130 = vsel %vm113, %v101, 0
    %v133 = vsel %vm113, %v102, 0
    %v136 = vsel %vm113, %v103, 0
    %138 = vmatprep.subr.mxu0 0.0
    %139 = vmatpush1.msra.mxu0 %v104
    %140 = vmatprep.subr.mxu0 0.0
    %141 = vmatpush1.msra.mxu0 %v105
    %142 = vmatprep.subr.mxu0 0.0
    %143 = vmatpush1.msra.mxu0 0.0
    %144 = vmatprep.subr.mxu0 0.0
    %145 = vmatpush1.msra.mxu0 0.0
    %146 = vmatprep.subr.mxu0 0.0
    %147 = vmatpush1.msra.mxu0 0.0
    %148 = vmatprep.subr.mxu0 0.0
    %149 = vmatpush1.msra.mxu0 0.0
    %150 = vmatprep.subr.mxu0 0.0
    %151 = vmatpush1.msra.mxu0 0.0
    %152 = vmatprep.subr.mxu0 0.0
    %153 = vmatpush1.msra.mxu0 0.0
    %154 = vmatprep.subr.mxu0 0.0
    %155 = vmatpush1.msra.mxu0 0.0
    %156 = vmatprep.subr.mxu0 0.0
    %157 = vmatpush1.msra.mxu0 0.0
    %158 = vmatprep.subr.mxu0 0.0
    %159 = vmatpush1.msra.mxu0 0.0
    %160 = vmatprep.subr.mxu0 0.0
    %161 = vmatpush1.msra.mxu0 0.0
    %162 = vmatprep.subr.mxu0 0.0
    %163 = vmatpush1.msra.mxu0 0.0
    %164 = vmatprep.subr.mxu0 0.0
    %165 = vmatpush1.msra.mxu0 0.0
    %166 = vmatprep.subr.mxu0 0.0
    %167 = vmatpush1.msra.mxu0 0.0
    %168 = vmatprep.subr.mxu0 0.0
    %169 = vmatpush1.msra.mxu0 0.0
    %170 = vmatprep.subr.mxu0 0.0
    %171 = vmatpush1.msra.mxu0 0.0
    %172 = vmatprep.subr.mxu0 0.0
    %173 = vmatpush1.msra.mxu0 0.0
    %174 = vmatprep.subr.mxu0 0.0
    %175 = vmatpush1.msra.mxu0 0.0
    %176 = vmatprep.subr.mxu0 0.0
    %177 = vmatpush1.msra.mxu0 0.0
    %178 = vmatprep.subr.mxu0 0.0
    %179 = vmatpush1.msra.mxu0 0.0
    %180 = vmatprep.subr.mxu0 0.0
    %181 = vmatpush1.msra.mxu0 0.0
    %182 = vmatprep.subr.mxu0 0.0
    %183 = vmatpush1.msra.mxu0 0.0
    %184 = vmatprep.subr.mxu0 0.0
    %185 = vmatpush1.msra.mxu0 0.0
    %186 = vmatprep.subr.mxu0 0.0
    %187 = vmatpush1.msra.mxu0 0.0
    %188 = vmatprep.subr.mxu0 0.0
    %189 = vmatpush1.msra.mxu0 0.0
    %190 = vmatprep.subr.mxu0 0.0
    %191 = vmatpush1.msra.mxu0 0.0
    %192 = vmatprep.subr.mxu0 0.0
    %193 = vmatpush1.msra.mxu0 0.0
    %194 = vmatprep.subr.mxu0 0.0
    %195 = vmatpush1.msra.mxu0 0.0
    %196 = vmatprep.subr.mxu0 0.0
    %197 = vmatpush1.msra.mxu0 0.0
    %198 = vmatprep.subr.mxu0 0.0
    %199 = vmatpush1.msra.mxu0 0.0
    %200 = vmatprep.subr.mxu0 0.0
    %201 = vmatpush1.msra.mxu0 0.0
    %202 = vmatprep.mubr.f32.mxu0 0.0
    %203 = vmatmul.mubr.f32.gmra.mrb[0].mxu0 %v115
    %v204 = vpop.f32.mrb[0].mxu0
    %v205 = vadd.f32 %v111, %v204
    %v206 = vpop.f32.mrb[0].mxu0
    %207 = vmatprep.mubr.f32.mxu0 0.0
    %208 = vmatmul.mubr.f32.gmra.mrb[0].mxu0 %v118
    %v209 = vpop.f32.mrb[0].mxu0
    %v210 = vadd.f32 %v111, %v209
    %v211 = vpop.f32.mrb[0].mxu0
    %212 = vmatprep.mubr.f32.mxu0 0.0
    %213 = vmatmul.mubr.f32.gmra.mrb[0].mxu0 %v121
    %v214 = vpop.f32.mrb[0].mxu0
    %v215 = vadd.f32 %v111, %v214
    %v216 = vpop.f32.mrb[0].mxu0
    %217 = vmatprep.mubr.f32.mxu0 0.0
    %218 = vmatmul.mubr.f32.gmra.mrb[0].mxu0 %v124
    %v219 = vpop.f32.mrb[0].mxu0
    %v220 = vadd.f32 %v111, %v219
    %v221 = vpop.f32.mrb[0].mxu0
    %222 = vmatprep.mubr.f32.mxu0 0.0
    %223 = vmatmul.mubr.f32.gmra.mrb[0].mxu0 %v127
    %v224 = vpop.f32.mrb[0].mxu0
    %v225 = vadd.f32 %v111, %v224
    %v226 = vpop.f32.mrb[0].mxu0
    %227 = vmatprep.mubr.f32.mxu0 0.0
    %228 = vmatmul.mubr.f32.gmra.mrb[0].mxu0 %v130
    %v229 = vpop.f32.mrb[0].mxu0
    %v230 = vadd.f32 %v111, %v229
    %v231 = vpop.f32.mrb[0].mxu0
    %232 = vmatprep.mubr.f32.mxu0 0.0
    %233 = vmatmul.mubr.f32.gmra.mrb[0].mxu0 %v133
    %v234 = vpop.f32.mrb[0].mxu0
    %v235 = vadd.f32 %v111, %v234
    %v236 = vpop.f32.mrb[0].mxu0
    %237 = vmatprep.mubr.f32.mxu0 0.0
    %238 = vmatmul.mubr.f32.gmra.mrb[0].mxu0 %v136
    %v239 = vpop.f32.mrb[0].mxu0
    %v240 = vadd.f32 %v111, %v239
    %v241 = vpop.f32.mrb[0].mxu0
    %242 = vdwg.mxu0
    %v243 = vmax.f32 %v205, 0.0
    %v244 = vmax.f32 %v210, 0.0
    %v245 = vmax.f32 %v215, 0.0
    %v246 = vmax.f32 %v220, 0.0
    %v247 = vmax.f32 %v225, 0.0
    %v248 = vmax.f32 %v230, 0.0
    %v249 = vmax.f32 %v235, 0.0
    %v250 = vmax.f32 %v240, 0.0
    %v251 = vld [vmem:[#allocation7] sm:$0xff]
    %v252 = vld [vmem:[#allocation7 + $0x8] sm:$0xff]
    %v253 = vld [vmem:[#allocation7 + $0x10] sm:$0xff]
    %v254 = vld [vmem:[#allocation7 + $0x18] sm:$0xff]
    %v255 = vld [vmem:[#allocation7 + $0x20] sm:$0xff]
    %v256 = vld [vmem:[#allocation7 + $0x28] sm:$0xff]
    %v257 = vld [vmem:[#allocation7 + $0x30] sm:$0xff]
    %v258 = vld [vmem:[#allocation7 + $0x38] sm:$0xff]
    %v259 = vld [vmem:[#allocation7 + $0x40] sm:$0xff]
    %v260 = vld [vmem:[#allocation7 + $0x48] sm:$0xff]
    %v261 = vld [vmem:[#allocation7 + $0x50] sm:$0xff]
    %v262 = vld [vmem:[#allocation7 + $0x58] sm:$0xff]
    %v263 = vld [vmem:[#allocation7 + $0x60] sm:$0xff]
    %v264 = vld [vmem:[#allocation7 + $0x68] sm:$0xff]
    %v265 = vld [vmem:[#allocation7 + $0x70] sm:$0xff]
    %v266 = vld [vmem:[#allocation7 + $0x78] sm:$0xff]
    %v267 = vld [vmem:[#allocation7 + $0x80] sm:$0xff]
    %v268 = vld [vmem:[#allocation7 + $0x88] sm:$0xff]
    %v269 = vld [vmem:[#allocation7 + $0x90] sm:$0xff]
    %v270 = vld [vmem:[#allocation7 + $0x98] sm:$0xff]
    %v271 = vld [vmem:[#allocation7 + $0xa0] sm:$0xff]
    %v272 = vld [vmem:[#allocation7 + $0xa8] sm:$0xff]
    %v273 = vld [vmem:[#allocation7 + $0xb0] sm:$0xff]
    %v274 = vld [vmem:[#allocation7 + $0xb8] sm:$0xff]
    %v275 = vld [vmem:[#allocation7 + $0xc0] sm:$0xff]
    %v276 = vld [vmem:[#allocation7 + $0xc8] sm:$0xff]
    %v277 = vld [vmem:[#allocation7 + $0xd0] sm:$0xff]
    %v278 = vld [vmem:[#allocation7 + $0xd8] sm:$0xff]
    %v279 = vld [vmem:[#allocation7 + $0xe0] sm:$0xff]
    %v280 = vld [vmem:[#allocation7 + $0xe8] sm:$0xff]
    %v281 = vld [vmem:[#allocation7 + $0xf0] sm:$0xff]
    %v282 = vld [vmem:[#allocation7 + $0xf8] sm:$0xff]
    %v283 = vld [vmem:[#allocation7 + $0x100] sm:$0xff]
    %v284 = vld [vmem:[#allocation7 + $0x108] sm:$0xff]
    %v285 = vld [vmem:[#allocation7 + $0x110] sm:$0xff]
    %v286 = vld [vmem:[#allocation7 + $0x118] sm:$0xff]
    %v287 = vld [vmem:[#allocation7 + $0x120] sm:$0xff]
    %v288 = vld [vmem:[#allocation7 + $0x128] sm:$0xff]
    %v289 = vld [vmem:[#allocation7 + $0x130] sm:$0xff]
    %v290 = vld [vmem:[#allocation7 + $0x138] sm:$0xff]
    %v291 = vld [vmem:[#allocation7 + $0x140] sm:$0xff]
    %v292 = vld [vmem:[#allocation7 + $0x148] sm:$0xff]
    %v293 = vld [vmem:[#allocation7 + $0x150] sm:$0xff]
    %v294 = vld [vmem:[#allocation7 + $0x158] sm:$0xff]
    %v295 = vld [vmem:[#allocation7 + $0x160] sm:$0xff]
    %v296 = vld [vmem:[#allocation7 + $0x168] sm:$0xff]
    %v297 = vld [vmem:[#allocation7 + $0x170] sm:$0xff]
    %v298 = vld [vmem:[#allocation7 + $0x178] sm:$0xff]
    %v299 = vld [vmem:[#allocation7 + $0x180] sm:$0xff]
    %v300 = vld [vmem:[#allocation7 + $0x188] sm:$0xff]
    %v301 = vld [vmem:[#allocation7 + $0x190] sm:$0xff]
    %v302 = vld [vmem:[#allocation7 + $0x198] sm:$0xff]
    %v303 = vld [vmem:[#allocation7 + $0x1a0] sm:$0xff]
    %v304 = vld [vmem:[#allocation7 + $0x1a8] sm:$0xff]
    %v305 = vld [vmem:[#allocation7 + $0x1b0] sm:$0xff]
    %v306 = vld [vmem:[#allocation7 + $0x1b8] sm:$0xff]
    %v307 = vld [vmem:[#allocation7 + $0x1c0] sm:$0xff]
    %v308 = vld [vmem:[#allocation7 + $0x1c8] sm:$0xff]
    %v309 = vld [vmem:[#allocation7 + $0x1d0] sm:$0xff]
    %v310 = vld [vmem:[#allocation7 + $0x1d8] sm:$0xff]
    %v311 = vld [vmem:[#allocation7 + $0x1e0] sm:$0xff]
    %v312 = vld [vmem:[#allocation7 + $0x1e8] sm:$0xff]
    %v313 = vld [vmem:[#allocation7 + $0x1f0] sm:$0xff]
    %v314 = vld [vmem:[#allocation7 + $0x1f8] sm:$0xff]
    %v315 = vld [vmem:[%s8] sm:$0xf]
    %v317 = vlaneseq
    %v318 = vshrl.u32 %v317, 7
    %v319 = vsub.s32 0, %v318
    %v320 = vrot.slane %v315, %v319
    %v321 = vlaneseq
    %v322 = vshrl.u32 %v321, 7
    %v323 = vsub.s32 1, %v322
    %v324 = vrot.slane %v315, %v323
    %v325 = vlaneseq
    %v326 = vshrl.u32 %v325, 7
    %v327 = vsub.s32 2, %v326
    %v328 = vrot.slane %v315, %v327
    %v329 = vlaneseq
    %v330 = vshrl.u32 %v329, 7
    %v331 = vsub.s32 3, %v330
    %v332 = vrot.slane %v315, %v331
    %337 = vmatprep.subr.mxu0 %v252
    %338 = vmatpush1.msra.mxu0 %v251
    %339 = vmatprep.subr.mxu0 %v256
    %340 = vmatpush1.msra.mxu0 %v255
    %341 = vmatprep.subr.mxu0 %v260
    %342 = vmatpush1.msra.mxu0 %v259
    %343 = vmatprep.subr.mxu0 %v264
    %344 = vmatpush1.msra.mxu0 %v263
    %345 = vmatprep.subr.mxu0 %v268
    %346 = vmatpush1.msra.mxu0 %v267
    %347 = vmatprep.subr.mxu0 %v272
    %348 = vmatpush1.msra.mxu0 %v271
    %349 = vmatprep.subr.mxu0 %v276
    %350 = vmatpush1.msra.mxu0 %v275
    %351 = vmatprep.subr.mxu0 %v280
    %352 = vmatpush1.msra.mxu0 %v279
    %353 = vmatprep.subr.mxu0 %v284
    %354 = vmatpush1.msra.mxu0 %v283
    %355 = vmatprep.subr.mxu0 %v288
    %356 = vmatpush1.msra.mxu0 %v287
    %357 = vmatprep.subr.mxu0 %v292
    %358 = vmatpush1.msra.mxu0 %v291
    %359 = vmatprep.subr.mxu0 %v296
    %360 = vmatpush1.msra.mxu0 %v295
    %361 = vmatprep.subr.mxu0 %v300
    %362 = vmatpush1.msra.mxu0 %v299
    %363 = vmatprep.subr.mxu0 %v304
    %364 = vmatpush1.msra.mxu0 %v303
    %365 = vmatprep.subr.mxu0 %v308
    %366 = vmatpush1.msra.mxu0 %v307
    %367 = vmatprep.subr.mxu0 %v312
    %368 = vmatpush1.msra.mxu0 %v311
    %369 = vmatprep.subr.mxu0 0.0
    %370 = vmatpush1.msra.mxu0 0.0
    %371 = vmatprep.subr.mxu0 0.0
    %372 = vmatpush1.msra.mxu0 0.0
    %373 = vmatprep.subr.mxu0 0.0
    %374 = vmatpush1.msra.mxu0 0.0
    %375 = vmatprep.subr.mxu0 0.0
    %376 = vmatpush1.msra.mxu0 0.0
    %377 = vmatprep.subr.mxu0 0.0
    %378 = vmatpush1.msra.mxu0 0.0
    %379 = vmatprep.subr.mxu0 0.0
    %380 = vmatpush1.msra.mxu0 0.0
    %381 = vmatprep.subr.mxu0 0.0
    %382 = vmatpush1.msra.mxu0 0.0
    %383 = vmatprep.subr.mxu0 0.0
    %384 = vmatpush1.msra.mxu0 0.0
    %385 = vmatprep.subr.mxu0 0.0
    %386 = vmatpush1.msra.mxu0 0.0
    %387 = vmatprep.subr.mxu0 0.0
    %388 = vmatpush1.msra.mxu0 0.0
    %389 = vmatprep.subr.mxu0 0.0
    %390 = vmatpush1.msra.mxu0 0.0
    %391 = vmatprep.subr.mxu0 0.0
    %392 = vmatpush1.msra.mxu0 0.0
    %393 = vmatprep.subr.mxu0 0.0
    %394 = vmatpush1.msra.mxu0 0.0
    %395 = vmatprep.subr.mxu0 0.0
    %396 = vmatpush1.msra.mxu0 0.0
    %397 = vmatprep.subr.mxu0 0.0
    %398 = vmatpush1.msra.mxu0 0.0
    %399 = vmatprep.subr.mxu0 0.0
    %400 = vmatpush1.msra.mxu0 0.0
    %401 = vmatprep.mubr.f32.mxu0 0.0
    %402 = vmatmul.mubr.f32.gmra.mrb[0].mxu0 %v243
    %v403 = vpop.f32.mrb[0].mxu0
    %v404 = vadd.f32 %v320, %v403
    %v405 = vpop.f32.mrb[0].mxu0
    %v406 = vadd.f32 %v324, %v405
    %407 = vmatprep.mubr.f32.mxu0 0.0
    %408 = vmatmul.mubr.f32.gmra.mrb[0].mxu0 %v244
    %v409 = vpop.f32.mrb[0].mxu0
    %v410 = vadd.f32 %v320, %v409
    %v411 = vpop.f32.mrb[0].mxu0
    %v412 = vadd.f32 %v324, %v411
    %413 = vmatprep.mubr.f32.mxu0 0.0
    %414 = vmatmul.mubr.f32.gmra.mrb[0].mxu0 %v245
    %v415 = vpop.f32.mrb[0].mxu0
    %v416 = vadd.f32 %v320, %v415
    %v417 = vpop.f32.mrb[0].mxu0
    %v418 = vadd.f32 %v324, %v417
    %419 = vmatprep.mubr.f32.mxu0 0.0
    %420 = vmatmul.mubr.f32.gmra.mrb[0].mxu0 %v246
    %v421 = vpop.f32.mrb[0].mxu0
    %v422 = vadd.f32 %v320, %v421
    %v423 = vpop.f32.mrb[0].mxu0
    %v424 = vadd.f32 %v324, %v423
    %425 = vmatprep.mubr.f32.mxu0 0.0
    %426 = vmatmul.mubr.f32.gmra.mrb[0].mxu0 %v247
    %v427 = vpop.f32.mrb[0].mxu0
    %v428 = vadd.f32 %v320, %v427
    %v429 = vpop.f32.mrb[0].mxu0
    %v430 = vadd.f32 %v324, %v429
    %431 = vmatprep.mubr.f32.mxu0 0.0
    %432 = vmatmul.mubr.f32.gmra.mrb[0].mxu0 %v248
    %v433 = vpop.f32.mrb[0].mxu0
    %v434 = vadd.f32 %v320, %v433
    %v435 = vpop.f32.mrb[0].mxu0
    %v436 = vadd.f32 %v324, %v435
    %437 = vmatprep.mubr.f32.mxu0 0.0
    %438 = vmatmul.mubr.f32.gmra.mrb[0].mxu0 %v249
    %v439 = vpop.f32.mrb[0].mxu0
    %v440 = vadd.f32 %v320, %v439
    %v441 = vpop.f32.mrb[0].mxu0
    %v442 = vadd.f32 %v324, %v441
    %443 = vmatprep.mubr.f32.mxu0 0.0
    %444 = vmatmul.mubr.f32.gmra.mrb[0].mxu0 %v250
    %v445 = vpop.f32.mrb[0].mxu0
    %v446 = vadd.f32 %v320, %v445
    %v447 = vpop.f32.mrb[0].mxu0
    %v448 = vadd.f32 %v324, %v447
    %449 = vdwg.mxu0
    %450 = vmatprep.subr.mxu0 %v254
    %451 = vmatpush1.msra.mxu0 %v253
    %452 = vmatprep.subr.mxu0 %v258
    %453 = vmatpush1.msra.mxu0 %v257
    %454 = vmatprep.subr.mxu0 %v262
    %455 = vmatpush1.msra.mxu0 %v261
    %456 = vmatprep.subr.mxu0 %v266
    %457 = vmatpush1.msra.mxu0 %v265
    %458 = vmatprep.subr.mxu0 %v270
    %459 = vmatpush1.msra.mxu0 %v269
    %460 = vmatprep.subr.mxu0 %v274
    %461 = vmatpush1.msra.mxu0 %v273
    %462 = vmatprep.subr.mxu0 %v278
    %463 = vmatpush1.msra.mxu0 %v277
    %464 = vmatprep.subr.mxu0 %v282
    %465 = vmatpush1.msra.mxu0 %v281
    %466 = vmatprep.subr.mxu0 %v286
    %467 = vmatpush1.msra.mxu0 %v285
    %468 = vmatprep.subr.mxu0 %v290
    %469 = vmatpush1.msra.mxu0 %v289
    %470 = vmatprep.subr.mxu0 %v294
    %471 = vmatpush1.msra.mxu0 %v293
    %472 = vmatprep.subr.mxu0 %v298
    %473 = vmatpush1.msra.mxu0 %v297
    %474 = vmatprep.subr.mxu0 %v302
    %475 = vmatpush1.msra.mxu0 %v301
    %476 = vmatprep.subr.mxu0 %v306
    %477 = vmatpush1.msra.mxu0 %v305
    %478 = vmatprep.subr.mxu0 %v310
    %479 = vmatpush1.msra.mxu0 %v309
    %480 = vmatprep.subr.mxu0 %v314
    %481 = vmatpush1.msra.mxu0 %v313
    %482 = vmatprep.subr.mxu0 0.0
    %483 = vmatpush1.msra.mxu0 0.0
    %484 = vmatprep.subr.mxu0 0.0
    %485 = vmatpush1.msra.mxu0 0.0
    %486 = vmatprep.subr.mxu0 0.0
    %487 = vmatpush1.msra.mxu0 0.0
    %488 = vmatprep.subr.mxu0 0.0
    %489 = vmatpush1.msra.mxu0 0.0
    %490 = vmatprep.subr.mxu0 0.0
    %491 = vmatpush1.msra.mxu0 0.0
    %492 = vmatprep.subr.mxu0 0.0
    %493 = vmatpush1.msra.mxu0 0.0
    %494 = vmatprep.subr.mxu0 0.0
    %495 = vmatpush1.msra.mxu0 0.0
    %496 = vmatprep.subr.mxu0 0.0
    %497 = vmatpush1.msra.mxu0 0.0
    %498 = vmatprep.subr.mxu0 0.0
    %499 = vmatpush1.msra.mxu0 0.0
    %500 = vmatprep.subr.mxu0 0.0
    %501 = vmatpush1.msra.mxu0 0.0
    %502 = vmatprep.subr.mxu0 0.0
    %503 = vmatpush1.msra.mxu0 0.0
    %504 = vmatprep.subr.mxu0 0.0
    %505 = vmatpush1.msra.mxu0 0.0
    %506 = vmatprep.subr.mxu0 0.0
    %507 = vmatpush1.msra.mxu0 0.0
    %508 = vmatprep.subr.mxu0 0.0
    %509 = vmatpush1.msra.mxu0 0.0
    %510 = vmatprep.subr.mxu0 0.0
    %511 = vmatpush1.msra.mxu0 0.0
    %512 = vmatprep.subr.mxu0 0.0
    %513 = vmatpush1.msra.mxu0 0.0
    %514 = vmatprep.mubr.f32.mxu0 0.0
    %515 = vmatmul.mubr.f32.gmra.mrb[0].mxu0 %v243
    %v516 = vpop.f32.mrb[0].mxu0
    %v517 = vadd.f32 %v328, %v516
    %v518 = vpop.f32.mrb[0].mxu0
    %v519 = vadd.f32 %v332, %v518
    %520 = vmatprep.mubr.f32.mxu0 0.0
    %521 = vmatmul.mubr.f32.gmra.mrb[0].mxu0 %v244
    %v522 = vpop.f32.mrb[0].mxu0
    %v523 = vadd.f32 %v328, %v522
    %v524 = vpop.f32.mrb[0].mxu0
    %v525 = vadd.f32 %v332, %v524
    %526 = vmatprep.mubr.f32.mxu0 0.0
    %527 = vmatmul.mubr.f32.gmra.mrb[0].mxu0 %v245
    %v528 = vpop.f32.mrb[0].mxu0
    %v529 = vadd.f32 %v328, %v528
    %v530 = vpop.f32.mrb[0].mxu0
    %v531 = vadd.f32 %v332, %v530
    %532 = vmatprep.mubr.f32.mxu0 0.0
    %533 = vmatmul.mubr.f32.gmra.mrb[0].mxu0 %v246
    %v534 = vpop.f32.mrb[0].mxu0
    %v535 = vadd.f32 %v328, %v534
    %v536 = vpop.f32.mrb[0].mxu0
    %v537 = vadd.f32 %v332, %v536
    %538 = vmatprep.mubr.f32.mxu0 0.0
    %539 = vmatmul.mubr.f32.gmra.mrb[0].mxu0 %v247
    %v540 = vpop.f32.mrb[0].mxu0
    %v541 = vadd.f32 %v328, %v540
    %v542 = vpop.f32.mrb[0].mxu0
    %v543 = vadd.f32 %v332, %v542
    %544 = vmatprep.mubr.f32.mxu0 0.0
    %545 = vmatmul.mubr.f32.gmra.mrb[0].mxu0 %v248
    %v546 = vpop.f32.mrb[0].mxu0
    %v547 = vadd.f32 %v328, %v546
    %v548 = vpop.f32.mrb[0].mxu0
    %v549 = vadd.f32 %v332, %v548
    %550 = vmatprep.mubr.f32.mxu0 0.0
    %551 = vmatmul.mubr.f32.gmra.mrb[0].mxu0 %v249
    %v552 = vpop.f32.mrb[0].mxu0
    %v553 = vadd.f32 %v328, %v552
    %v554 = vpop.f32.mrb[0].mxu0
    %v555 = vadd.f32 %v332, %v554
    %556 = vmatprep.mubr.f32.mxu0 0.0
    %557 = vmatmul.mubr.f32.gmra.mrb[0].mxu0 %v250
    %v558 = vpop.f32.mrb[0].mxu0
    %v559 = vadd.f32 %v328, %v558
    %v560 = vpop.f32.mrb[0].mxu0
    %v561 = vadd.f32 %v332, %v560
    %562 = vdwg.mxu0
    %563 = vst [vmem:[#allocation2] sm:$0xff] %v404
    %564 = vst [vmem:[#allocation2 + $0x8] sm:$0xff] %v406
    %565 = vst [vmem:[#allocation2 + $0x10] sm:$0xff] %v517
    %566 = vst [vmem:[#allocation2 + $0x18] sm:$0xff] %v519
    %567 = vst [vmem:[#allocation2 + $0x20] sm:$0xff] %v410
    %568 = vst [vmem:[#allocation2 + $0x28] sm:$0xff] %v412
    %569 = vst [vmem:[#allocation2 + $0x30] sm:$0xff] %v523
    %570 = vst [vmem:[#allocation2 + $0x38] sm:$0xff] %v525
    %571 = vst [vmem:[#allocation2 + $0x40] sm:$0xff] %v416
    %572 = vst [vmem:[#allocation2 + $0x48] sm:$0xff] %v418
    %573 = vst [vmem:[#allocation2 + $0x50] sm:$0xff] %v529
    %574 = vst [vmem:[#allocation2 + $0x58] sm:$0xff] %v531
    %575 = vst [vmem:[#allocation2 + $0x60] sm:$0xff] %v422
    %576 = vst [vmem:[#allocation2 + $0x68] sm:$0xff] %v424
    %577 = vst [vmem:[#allocation2 + $0x70] sm:$0xff] %v535
    %578 = vst [vmem:[#allocation2 + $0x78] sm:$0xff] %v537
    %579 = vst [vmem:[#allocation2 + $0x80] sm:$0xff] %v428
    %580 = vst [vmem:[#allocation2 + $0x88] sm:$0xff] %v430
    %581 = vst [vmem:[#allocation2 + $0x90] sm:$0xff] %v541
    %582 = vst [vmem:[#allocation2 + $0x98] sm:$0xff] %v543
    %583 = vst [vmem:[#allocation2 + $0xa0] sm:$0xff] %v434
    %584 = vst [vmem:[#allocation2 + $0xa8] sm:$0xff] %v436
    %585 = vst [vmem:[#allocation2 + $0xb0] sm:$0xff] %v547
    %586 = vst [vmem:[#allocation2 + $0xb8] sm:$0xff] %v549
    %587 = vst [vmem:[#allocation2 + $0xc0] sm:$0xff] %v440
    %588 = vst [vmem:[#allocation2 + $0xc8] sm:$0xff] %v442
    %589 = vst [vmem:[#allocation2 + $0xd0] sm:$0xff] %v553
    %590 = vst [vmem:[#allocation2 + $0xd8] sm:$0xff] %v555
    %591 = vst [vmem:[#allocation2 + $0xe0] sm:$0xff] %v446
    %592 = vst [vmem:[#allocation2 + $0xe8] sm:$0xff] %v448
    %593 = vst [vmem:[#allocation2 + $0xf0] sm:$0xff] %v559
    %594 = vst [vmem:[#allocation2 + $0xf8] sm:$0xff] %v561
    %v595 = vld [vmem:[#allocation4] sm:$0xff]
    %v596 = vld [vmem:[%s3] sm:$0xff]
    %v597 = vld [vmem:[%s1] sm:$0xff]
    %v598 = vmul.f32 %v595, %v597
    %v599 = vmul.f32 %v596, %v597
    %s600 = smul.u32 0, 4
    %s601 = smul.addr %s600, 8
    %s602 = scalar_lea.vmem [#allocation2], %s601
    %v603 = vld [vmem:[%s602] sm:$0xff]
    %v604 = vld [vmem:[%s602 + $0x8] sm:$0xff]
    %v605 = vld [vmem:[%s602 + $0x10] sm:$0xff]
    %v606 = vld [vmem:[%s602 + $0x18] sm:$0xff]
    %v607 = vld [vmem:[#allocation9] sm:$0xff]
    %v608 = vld [vmem:[#allocation9 + $0x8] sm:$0xff]
    %v609 = vld [vmem:[#allocation9 + $0x10] sm:$0xff]
    %v610 = vld [vmem:[#allocation9 + $0x18] sm:$0xff]
    %v611 = vld [vmem:[#allocation9 + $0x20] sm:$0xff]
    %v612 = vld [vmem:[#allocation9 + $0x28] sm:$0xff]
    %v613 = vld [vmem:[#allocation9 + $0x30] sm:$0xff]
    %v614 = vld [vmem:[#allocation9 + $0x38] sm:$0xff]
    %v615 = vld [vmem:[#allocation9 + $0x40] sm:$0xff]
    %v616 = vld [vmem:[#allocation9 + $0x48] sm:$0xff]
    %v617 = vld [vmem:[#allocation9 + $0x50] sm:$0xff]
    %v618 = vld [vmem:[#allocation9 + $0x58] sm:$0xff]
    %v619 = vld [vmem:[#allocation9 + $0x60] sm:$0xff]
    %v620 = vld [vmem:[#allocation9 + $0x68] sm:$0xff]
    %v621 = vld [vmem:[#allocation9 + $0x70] sm:$0xff]
    %v622 = vld [vmem:[#allocation9 + $0x78] sm:$0xff]
    %v623 = vld [vmem:[#allocation9 + $0x80] sm:$0xff]
    %v624 = vld [vmem:[#allocation9 + $0x88] sm:$0xff]
    %v625 = vld [vmem:[#allocation9 + $0x90] sm:$0xff]
    %v626 = vld [vmem:[#allocation9 + $0x98] sm:$0xff]
    %v627 = vld [vmem:[#allocation9 + $0xa0] sm:$0xff]
    %v628 = vld [vmem:[#allocation9 + $0xa8] sm:$0xff]
    %v629 = vld [vmem:[#allocation9 + $0xb0] sm:$0xff]
    %v630 = vld [vmem:[#allocation9 + $0xb8] sm:$0xff]
    %v631 = vld [vmem:[#allocation9 + $0xc0] sm:$0xff]
    %v632 = vld [vmem:[#allocation9 + $0xc8] sm:$0xff]
    %v633 = vld [vmem:[#allocation9 + $0xd0] sm:$0xff]
    %v634 = vld [vmem:[#allocation9 + $0xd8] sm:$0xff]
    %v635 = vld [vmem:[#allocation9 + $0xe0] sm:$0xff]
    %v636 = vld [vmem:[#allocation9 + $0xe8] sm:$0xff]
    %v637 = vld [vmem:[#allocation9 + $0xf0] sm:$0xff]
    %v638 = vld [vmem:[#allocation9 + $0xf8] sm:$0xff]
    %v639 = vld [vmem:[#allocation9 + $0x100] sm:$0xff]
    %v640 = vld [vmem:[#allocation9 + $0x108] sm:$0xff]
    %v641 = vld [vmem:[#allocation9 + $0x110] sm:$0xff]
    %v642 = vld [vmem:[#allocation9 + $0x118] sm:$0xff]
    %v643 = vld [vmem:[#allocation9 + $0x120] sm:$0xff]
    %v644 = vld [vmem:[#allocation9 + $0x128] sm:$0xff]
    %v645 = vld [vmem:[#allocation9 + $0x130] sm:$0xff]
    %v646 = vld [vmem:[#allocation9 + $0x138] sm:$0xff]
    %v647 = vld [vmem:[#allocation9 + $0x140] sm:$0xff]
    %v648 = vld [vmem:[#allocation9 + $0x148] sm:$0xff]
    %v649 = vld [vmem:[#allocation9 + $0x150] sm:$0xff]
    %v650 = vld [vmem:[#allocation9 + $0x158] sm:$0xff]
    %v651 = vld [vmem:[#allocation9 + $0x160] sm:$0xff]
    %v652 = vld [vmem:[#allocation9 + $0x168] sm:$0xff]
    %v653 = vld [vmem:[#allocation9 + $0x170] sm:$0xff]
    %v654 = vld [vmem:[#allocation9 + $0x178] sm:$0xff]
    %v655 = vld [vmem:[#allocation9 + $0x180] sm:$0xff]
    %v656 = vld [vmem:[#allocation9 + $0x188] sm:$0xff]
    %v657 = vld [vmem:[#allocation9 + $0x190] sm:$0xff]
    %v658 = vld [vmem:[#allocation9 + $0x198] sm:$0xff]
    %v659 = vld [vmem:[#allocation9 + $0x1a0] sm:$0xff]
    %v660 = vld [vmem:[#allocation9 + $0x1a8] sm:$0xff]
    %v661 = vld [vmem:[#allocation9 + $0x1b0] sm:$0xff]
    %v662 = vld [vmem:[#allocation9 + $0x1b8] sm:$0xff]
    %v663 = vld [vmem:[#allocation9 + $0x1c0] sm:$0xff]
    %v664 = vld [vmem:[#allocation9 + $0x1c8] sm:$0xff]
    %v665 = vld [vmem:[#allocation9 + $0x1d0] sm:$0xff]
    %v666 = vld [vmem:[#allocation9 + $0x1d8] sm:$0xff]
    %v667 = vld [vmem:[#allocation9 + $0x1e0] sm:$0xff]
    %v668 = vld [vmem:[#allocation9 + $0x1e8] sm:$0xff]
    %v669 = vld [vmem:[#allocation9 + $0x1f0] sm:$0xff]
    %v670 = vld [vmem:[#allocation9 + $0x1f8] sm:$0xff]
    %671 = vmatprep.subr.mxu0 %v608
    %672 = vmatpush1.msra.mxu0 %v607
    %673 = vmatprep.subr.mxu0 %v612
    %674 = vmatpush1.msra.mxu0 %v611
    %675 = vmatprep.subr.mxu0 %v616
    %676 = vmatpush1.msra.mxu0 %v615
    %677 = vmatprep.subr.mxu0 %v620
    %678 = vmatpush1.msra.mxu0 %v619
    %679 = vmatprep.subr.mxu0 %v624
    %680 = vmatpush1.msra.mxu0 %v623
    %681 = vmatprep.subr.mxu0 %v628
    %682 = vmatpush1.msra.mxu0 %v627
    %683 = vmatprep.subr.mxu0 %v632
    %684 = vmatpush1.msra.mxu0 %v631
    %685 = vmatprep.subr.mxu0 %v636
    %686 = vmatpush1.msra.mxu0 %v635
    %687 = vmatprep.subr.mxu0 %v640
    %688 = vmatpush1.msra.mxu0 %v639
    %689 = vmatprep.subr.mxu0 %v644
    %690 = vmatpush1.msra.mxu0 %v643
    %691 = vmatprep.subr.mxu0 %v648
    %692 = vmatpush1.msra.mxu0 %v647
    %693 = vmatprep.subr.mxu0 %v652
    %694 = vmatpush1.msra.mxu0 %v651
    %695 = vmatprep.subr.mxu0 %v656
    %696 = vmatpush1.msra.mxu0 %v655
    %697 = vmatprep.subr.mxu0 %v660
    %698 = vmatpush1.msra.mxu0 %v659
    %699 = vmatprep.subr.mxu0 %v664
    %700 = vmatpush1.msra.mxu0 %v663
    %701 = vmatprep.subr.mxu0 %v668
    %702 = vmatpush1.msra.mxu0 %v667
    %703 = vmatprep.subr.mxu0 0.0
    %704 = vmatpush1.msra.mxu0 0.0
    %705 = vmatprep.subr.mxu0 0.0
    %706 = vmatpush1.msra.mxu0 0.0
    %707 = vmatprep.subr.mxu0 0.0
    %708 = vmatpush1.msra.mxu0 0.0
    %709 = vmatprep.subr.mxu0 0.0
    %710 = vmatpush1.msra.mxu0 0.0
    %711 = vmatprep.subr.mxu0 0.0
    %712 = vmatpush1.msra.mxu0 0.0
    %713 = vmatprep.subr.mxu0 0.0
    %714 = vmatpush1.msra.mxu0 0.0
    %715 = vmatprep.subr.mxu0 0.0
    %716 = vmatpush1.msra.mxu0 0.0
    %717 = vmatprep.subr.mxu0 0.0
    %718 = vmatpush1.msra.mxu0 0.0
    %719 = vmatprep.subr.mxu0 0.0
    %720 = vmatpush1.msra.mxu0 0.0
    %721 = vmatprep.subr.mxu0 0.0
    %722 = vmatpush1.msra.mxu0 0.0
    %723 = vmatprep.subr.mxu0 0.0
    %724 = vmatpush1.msra.mxu0 0.0
    %725 = vmatprep.subr.mxu0 0.0
    %726 = vmatpush1.msra.mxu0 0.0
    %727 = vmatprep.subr.mxu0 0.0
    %728 = vmatpush1.msra.mxu0 0.0
    %729 = vmatprep.subr.mxu0 0.0
    %730 = vmatpush1.msra.mxu0 0.0
    %731 = vmatprep.subr.mxu0 0.0
    %732 = vmatpush1.msra.mxu0 0.0
    %733 = vmatprep.subr.mxu0 0.0
    %734 = vmatpush1.msra.mxu0 0.0
    %735 = vmatprep.mubr.f32.mxu0 0.0
    %736 = vmatmul.mubr.f32.gmra.mrb[0].mxu0 %v598
    %v737 = vpop.f32.mrb[0].mxu0
    %v738 = vadd.f32 0.0, %v737
    %v739 = vpop.f32.mrb[0].mxu0
    %v740 = vadd.f32 0.0, %v739
    %741 = vdwg.mxu0
    %742 = vmatprep.subr.mxu0 %v610
    %743 = vmatpush1.msra.mxu0 %v609
    %744 = vmatprep.subr.mxu0 %v614
    %745 = vmatpush1.msra.mxu0 %v613
    %746 = vmatprep.subr.mxu0 %v618
    %747 = vmatpush1.msra.mxu0 %v617
    %748 = vmatprep.subr.mxu0 %v622
    %749 = vmatpush1.msra.mxu0 %v621
    %750 = vmatprep.subr.mxu0 %v626
    %751 = vmatpush1.msra.mxu0 %v625
    %752 = vmatprep.subr.mxu0 %v630
    %753 = vmatpush1.msra.mxu0 %v629
    %754 = vmatprep.subr.mxu0 %v634
    %755 = vmatpush1.msra.mxu0 %v633
    %756 = vmatprep.subr.mxu0 %v638
    %757 = vmatpush1.msra.mxu0 %v637
    %758 = vmatprep.subr.mxu0 %v642
    %759 = vmatpush1.msra.mxu0 %v641
    %760 = vmatprep.subr.mxu0 %v646
    %761 = vmatpush1.msra.mxu0 %v645
    %762 = vmatprep.subr.mxu0 %v650
    %763 = vmatpush1.msra.mxu0 %v649
    %764 = vmatprep.subr.mxu0 %v654
    %765 = vmatpush1.msra.mxu0 %v653
    %766 = vmatprep.subr.mxu0 %v658
    %767 = vmatpush1.msra.mxu0 %v657
    %768 = vmatprep.subr.mxu0 %v662
    %769 = vmatpush1.msra.mxu0 %v661
    %770 = vmatprep.subr.mxu0 %v666
    %771 = vmatpush1.msra.mxu0 %v665
    %772 = vmatprep.subr.mxu0 %v670
    %773 = vmatpush1.msra.mxu0 %v669
    %774 = vmatprep.subr.mxu0 0.0
    %775 = vmatpush1.msra.mxu0 0.0
    %776 = vmatprep.subr.mxu0 0.0
    %777 = vmatpush1.msra.mxu0 0.0
    %778 = vmatprep.subr.mxu0 0.0
    %779 = vmatpush1.msra.mxu0 0.0
    %780 = vmatprep.subr.mxu0 0.0
    %781 = vmatpush1.msra.mxu0 0.0
    %782 = vmatprep.subr.mxu0 0.0
    %783 = vmatpush1.msra.mxu0 0.0
    %784 = vmatprep.subr.mxu0 0.0
    %785 = vmatpush1.msra.mxu0 0.0
    %786 = vmatprep.subr.mxu0 0.0
    %787 = vmatpush1.msra.mxu0 0.0
    %788 = vmatprep.subr.mxu0 0.0
    %789 = vmatpush1.msra.mxu0 0.0
    %790 = vmatprep.subr.mxu0 0.0
    %791 = vmatpush1.msra.mxu0 0.0
    %792 = vmatprep.subr.mxu0 0.0
    %793 = vmatpush1.msra.mxu0 0.0
    %794 = vmatprep.subr.mxu0 0.0
    %795 = vmatpush1.msra.mxu0 0.0
    %796 = vmatprep.subr.mxu0 0.0
    %797 = vmatpush1.msra.mxu0 0.0
    %798 = vmatprep.subr.mxu0 0.0
    %799 = vmatpush1.msra.mxu0 0.0
    %800 = vmatprep.subr.mxu0 0.0
    %801 = vmatpush1.msra.mxu0 0.0
    %802 = vmatprep.subr.mxu0 0.0
    %803 = vmatpush1.msra.mxu0 0.0
    %804 = vmatprep.subr.mxu0 0.0
    %805 = vmatpush1.msra.mxu0 0.0
    %806 = vmatprep.mubr.f32.mxu0 0.0
    %807 = vmatmul.mubr.f32.gmra.mrb[0].mxu0 %v598
    %v808 = vpop.f32.mrb[0].mxu0
    %v809 = vadd.f32 0.0, %v808
    %v810 = vpop.f32.mrb[0].mxu0
    %v811 = vadd.f32 0.0, %v810
    %812 = vdwg.mxu0
    %v813 = vadd.f32 %v603, %v738
    %v814 = vadd.f32 %v604, %v740
    %v815 = vadd.f32 %v605, %v809
    %v816 = vadd.f32 %v606, %v811
    %v817 = vxor.u32 %v813, 2147483648
    %v818 = vmul.f32 %v817, 1.442695
    %v819 = vpow.pop %v818
    %v820 = vadd.f32 %v819, 1.0
    %v821 = vrcp.pop %v820
    %v822 = vmul.f32 1.0, %v821
    %v823 = vxor.u32 %v814, 2147483648
    %v824 = vmul.f32 %v823, 1.442695
    %v825 = vpow.pop %v824
    %v826 = vadd.f32 %v825, 1.0
    %v827 = vrcp.pop %v826
    %v828 = vmul.f32 1.0, %v827
    %v829 = vtanh.pop %v815
    %v830 = vxor.u32 %v816, 2147483648
    %v831 = vmul.f32 %v830, 1.442695
    %v832 = vpow.pop %v831
    %v833 = vadd.f32 %v832, 1.0
    %v834 = vrcp.pop %v833
    %v835 = vmul.f32 1.0, %v834
    %v836 = vmul.f32 %v828, %v599
    %v837 = vmul.f32 %v822, %v829
    %v838 = vadd.f32 %v836, %v837
    %v839 = vtanh.pop %v838
    %v840 = vmul.f32 %v835, %v839
    %841 = vst [vmem:[#allocation3] sm:$0xff] %v840
    %s842 = scalar_lea.vmem %s1, 8
    %v843 = vld [vmem:[%s842] sm:$0xff]
    %v844 = vmul.f32 %v840, %v843
    %v845 = vmul.f32 %v838, %v843
    %s846 = smul.u32 1, 4
    %s847 = smul.addr %s846, 8
    %s848 = scalar_lea.vmem [#allocation2], %s847
    %v849 = vld [vmem:[%s848] sm:$0xff]
    %v850 = vld [vmem:[%s848 + $0x8] sm:$0xff]
    %v851 = vld [vmem:[%s848 + $0x10] sm:$0xff]
    %v852 = vld [vmem:[%s848 + $0x18] sm:$0xff]
    %v853 = vld [vmem:[#allocation9] sm:$0xff]
    %v854 = vld [vmem:[#allocation9 + $0x8] sm:$0xff]
    %v855 = vld [vmem:[#allocation9 + $0x10] sm:$0xff]
    %v856 = vld [vmem:[#allocation9 + $0x18] sm:$0xff]
    %v857 = vld [vmem:[#allocation9 + $0x20] sm:$0xff]
    %v858 = vld [vmem:[#allocation9 + $0x28] sm:$0xff]
    %v859 = vld [vmem:[#allocation9 + $0x30] sm:$0xff]
    %v860 = vld [vmem:[#allocation9 + $0x38] sm:$0xff]
    %v861 = vld [vmem:[#allocation9 + $0x40] sm:$0xff]
    %v862 = vld [vmem:[#allocation9 + $0x48] sm:$0xff]
    %v863 = vld [vmem:[#allocation9 + $0x50] sm:$0xff]
    %v864 = vld [vmem:[#allocation9 + $0x58] sm:$0xff]
    %v865 = vld [vmem:[#allocation9 + $0x60] sm:$0xff]
    %v866 = vld [vmem:[#allocation9 + $0x68] sm:$0xff]
    %v867 = vld [vmem:[#allocation9 + $0x70] sm:$0xff]
    %v868 = vld [vmem:[#allocation9 + $0x78] sm:$0xff]
    %v869 = vld [vmem:[#allocation9 + $0x80] sm:$0xff]
    %v870 = vld [vmem:[#allocation9 + $0x88] sm:$0xff]
    %v871 = vld [vmem:[#allocation9 + $0x90] sm:$0xff]
    %v872 = vld [vmem:[#allocation9 + $0x98] sm:$0xff]
    %v873 = vld [vmem:[#allocation9 + $0xa0] sm:$0xff]
    %v874 = vld [vmem:[#allocation9 + $0xa8] sm:$0xff]
    %v875 = vld [vmem:[#allocation9 + $0xb0] sm:$0xff]
    %v876 = vld [vmem:[#allocation9 + $0xb8] sm:$0xff]
    %v877 = vld [vmem:[#allocation9 + $0xc0] sm:$0xff]
    %v878 = vld [vmem:[#allocation9 + $0xc8] sm:$0xff]
    %v879 = vld [vmem:[#allocation9 + $0xd0] sm:$0xff]
    %v880 = vld [vmem:[#allocation9 + $0xd8] sm:$0xff]
    %v881 = vld [vmem:[#allocation9 + $0xe0] sm:$0xff]
    %v882 = vld [vmem:[#allocation9 + $0xe8] sm:$0xff]
    %v883 = vld [vmem:[#allocation9 + $0xf0] sm:$0xff]
    %v884 = vld [vmem:[#allocation9 + $0xf8] sm:$0xff]
    %v885 = vld [vmem:[#allocation9 + $0x100] sm:$0xff]
    %v886 = vld [vmem:[#allocation9 + $0x108] sm:$0xff]
    %v887 = vld [vmem:[#allocation9 + $0x110] sm:$0xff]
    %v888 = vld [vmem:[#allocation9 + $0x118] sm:$0xff]
    %v889 = vld [vmem:[#allocation9 + $0x120] sm:$0xff]
    %v890 = vld [vmem:[#allocation9 + $0x128] sm:$0xff]
    %v891 = vld [vmem:[#allocation9 + $0x130] sm:$0xff]
    %v892 = vld [vmem:[#allocation9 + $0x138] sm:$0xff]
    %v893 = vld [vmem:[#allocation9 + $0x140] sm:$0xff]
    %v894 = vld [vmem:[#allocation9 + $0x148] sm:$0xff]
    %v895 = vld [vmem:[#allocation9 + $0x150] sm:$0xff]
    %v896 = vld [vmem:[#allocation9 + $0x158] sm:$0xff]
    %v897 = vld [vmem:[#allocation9 + $0x160] sm:$0xff]
    %v898 = vld [vmem:[#allocation9 + $0x168] sm:$0xff]
    %v899 = vld [vmem:[#allocation9 + $0x170] sm:$0xff]
    %v900 = vld [vmem:[#allocation9 + $0x178] sm:$0xff]
    %v901 = vld [vmem:[#allocation9 + $0x180] sm:$0xff]
    %v902 = vld [vmem:[#allocation9 + $0x188] sm:$0xff]
    %v903 = vld [vmem:[#allocation9 + $0x190] sm:$0xff]
    %v904 = vld [vmem:[#allocation9 + $0x198] sm:$0xff]
    %v905 = vld [vmem:[#allocation9 + $0x1a0] sm:$0xff]
    %v906 = vld [vmem:[#allocation9 + $0x1a8] sm:$0xff]
    %v907 = vld [vmem:[#allocation9 + $0x1b0] sm:$0xff]
    %v908 = vld [vmem:[#allocation9 + $0x1b8] sm:$0xff]
    %v909 = vld [vmem:[#allocation9 + $0x1c0] sm:$0xff]
    %v910 = vld [vmem:[#allocation9 + $0x1c8] sm:$0xff]
    %v911 = vld [vmem:[#allocation9 + $0x1d0] sm:$0xff]
    %v912 = vld [vmem:[#allocation9 + $0x1d8] sm:$0xff]
    %v913 = vld [vmem:[#allocation9 + $0x1e0] sm:$0xff]
    %v914 = vld [vmem:[#allocation9 + $0x1e8] sm:$0xff]
    %v915 = vld [vmem:[#allocation9 + $0x1f0] sm:$0xff]
    %v916 = vld [vmem:[#allocation9 + $0x1f8] sm:$0xff]
    %917 = vmatprep.subr.mxu0 %v854
    %918 = vmatpush1.msra.mxu0 %v853
    %919 = vmatprep.subr.mxu0 %v858
    %920 = vmatpush1.msra.mxu0 %v857
    %921 = vmatprep.subr.mxu0 %v862
    %922 = vmatpush1.msra.mxu0 %v861
    %923 = vmatprep.subr.mxu0 %v866
    %924 = vmatpush1.msra.mxu0 %v865
    %925 = vmatprep.subr.mxu0 %v870
    %926 = vmatpush1.msra.mxu0 %v869
    %927 = vmatprep.subr.mxu0 %v874
    %928 = vmatpush1.msra.mxu0 %v873
    %929 = vmatprep.subr.mxu0 %v878
    %930 = vmatpush1.msra.mxu0 %v877
    %931 = vmatprep.subr.mxu0 %v882
    %932 = vmatpush1.msra.mxu0 %v881
    %933 = vmatprep.subr.mxu0 %v886
    %934 = vmatpush1.msra.mxu0 %v885
    %935 = vmatprep.subr.mxu0 %v890
    %936 = vmatpush1.msra.mxu0 %v889
    %937 = vmatprep.subr.mxu0 %v894
    %938 = vmatpush1.msra.mxu0 %v893
    %939 = vmatprep.subr.mxu0 %v898
    %940 = vmatpush1.msra.mxu0 %v897
    %941 = vmatprep.subr.mxu0 %v902
    %942 = vmatpush1.msra.mxu0 %v901
    %943 = vmatprep.subr.mxu0 %v906
    %944 = vmatpush1.msra.mxu0 %v905
    %945 = vmatprep.subr.mxu0 %v910
    %946 = vmatpush1.msra.mxu0 %v909
    %947 = vmatprep.subr.mxu0 %v914
    %948 = vmatpush1.msra.mxu0 %v913
    %949 = vmatprep.subr.mxu0 0.0
    %950 = vmatpush1.msra.mxu0 0.0
    %951 = vmatprep.subr.mxu0 0.0
    %952 = vmatpush1.msra.mxu0 0.0
    %953 = vmatprep.subr.mxu0 0.0
    %954 = vmatpush1.msra.mxu0 0.0
    %955 = vmatprep.subr.mxu0 0.0
    %956 = vmatpush1.msra.mxu0 0.0
    %957 = vmatprep.subr.mxu0 0.0
    %958 = vmatpush1.msra.mxu0 0.0
    %959 = vmatprep.subr.mxu0 0.0
    %960 = vmatpush1.msra.mxu0 0.0
    %961 = vmatprep.subr.mxu0 0.0
    %962 = vmatpush1.msra.mxu0 0.0
    %963 = vmatprep.subr.mxu0 0.0
    %964 = vmatpush1.msra.mxu0 0.0
    %965 = vmatprep.subr.mxu0 0.0
    %966 = vmatpush1.msra.mxu0 0.0
    %967 = vmatprep.subr.mxu0 0.0
    %968 = vmatpush1.msra.mxu0 0.0
    %969 = vmatprep.subr.mxu0 0.0
    %970 = vmatpush1.msra.mxu0 0.0
    %971 = vmatprep.subr.mxu0 0.0
    %972 = vmatpush1.msra.mxu0 0.0
    %973 = vmatprep.subr.mxu0 0.0
    %974 = vmatpush1.msra.mxu0 0.0
    %975 = vmatprep.subr.mxu0 0.0
    %976 = vmatpush1.msra.mxu0 0.0
    %977 = vmatprep.subr.mxu0 0.0
    %978 = vmatpush1.msra.mxu0 0.0
    %979 = vmatprep.subr.mxu0 0.0
    %980 = vmatpush1.msra.mxu0 0.0
    %981 = vmatprep.mubr.f32.mxu0 0.0
    %982 = vmatmul.mubr.f32.gmra.mrb[0].mxu0 %v844
    %v983 = vpop.f32.mrb[0].mxu0
    %v984 = vadd.f32 0.0, %v983
    %v985 = vpop.f32.mrb[0].mxu0
    %v986 = vadd.f32 0.0, %v985
    %987 = vdwg.mxu0
    %988 = vmatprep.subr.mxu0 %v856
    %989 = vmatpush1.msra.mxu0 %v855
    %990 = vmatprep.subr.mxu0 %v860
    %991 = vmatpush1.msra.mxu0 %v859
    %992 = vmatprep.subr.mxu0 %v864
    %993 = vmatpush1.msra.mxu0 %v863
    %994 = vmatprep.subr.mxu0 %v868
    %995 = vmatpush1.msra.mxu0 %v867
    %996 = vmatprep.subr.mxu0 %v872
    %997 = vmatpush1.msra.mxu0 %v871
    %998 = vmatprep.subr.mxu0 %v876
    %999 = vmatpush1.msra.mxu0 %v875
    %1000 = vmatprep.subr.mxu0 %v880
    %1001 = vmatpush1.msra.mxu0 %v879
    %1002 = vmatprep.subr.mxu0 %v884
    %1003 = vmatpush1.msra.mxu0 %v883
    %1004 = vmatprep.subr.mxu0 %v888
    %1005 = vmatpush1.msra.mxu0 %v887
    %1006 = vmatprep.subr.mxu0 %v892
    %1007 = vmatpush1.msra.mxu0 %v891
    %1008 = vmatprep.subr.mxu0 %v896
    %1009 = vmatpush1.msra.mxu0 %v895
    %1010 = vmatprep.subr.mxu0 %v900
    %1011 = vmatpush1.msra.mxu0 %v899
    %1012 = vmatprep.subr.mxu0 %v904
    %1013 = vmatpush1.msra.mxu0 %v903
    %1014 = vmatprep.subr.mxu0 %v908
    %1015 = vmatpush1.msra.mxu0 %v907
    %1016 = vmatprep.subr.mxu0 %v912
    %1017 = vmatpush1.msra.mxu0 %v911
    %1018 = vmatprep.subr.mxu0 %v916
    %1019 = vmatpush1.msra.mxu0 %v915
    %1020 = vmatprep.subr.mxu0 0.0
    %1021 = vmatpush1.msra.mxu0 0.0
    %1022 = vmatprep.subr.mxu0 0.0
    %1023 = vmatpush1.msra.mxu0 0.0
    %1024 = vmatprep.subr.mxu0 0.0
    %1025 = vmatpush1.msra.mxu0 0.0
    %1026 = vmatprep.subr.mxu0 0.0
    %1027 = vmatpush1.msra.mxu0 0.0
    %1028 = vmatprep.subr.mxu0 0.0
    %1029 = vmatpush1.msra.mxu0 0.0
    %1030 = vmatprep.subr.mxu0 0.0
    %1031 = vmatpush1.msra.mxu0 0.0
    %1032 = vmatprep.subr.mxu0 0.0
    %1033 = vmatpush1.msra.mxu0 0.0
    %1034 = vmatprep.subr.mxu0 0.0
    %1035 = vmatpush1.msra.mxu0 0.0
    %1036 = vmatprep.subr.mxu0 0.0
    %1037 = vmatpush1.msra.mxu0 0.0
    %1038 = vmatprep.subr.mxu0 0.0
    %1039 = vmatpush1.msra.mxu0 0.0
    %1040 = vmatprep.subr.mxu0 0.0
    %1041 = vmatpush1.msra.mxu0 0.0
    %1042 = vmatprep.subr.mxu0 0.0
    %1043 = vmatpush1.msra.mxu0 0.0
    %1044 = vmatprep.subr.mxu0 0.0
    %1045 = vmatpush1.msra.mxu0 0.0
    %1046 = vmatprep.subr.mxu0 0.0
    %1047 = vmatpush1.msra.mxu0 0.0
    %1048 = vmatprep.subr.mxu0 0.0
    %1049 = vmatpush1.msra.mxu0 0.0
    %1050 = vmatprep.subr.mxu0 0.0
    %1051 = vmatpush1.msra.mxu0 0.0
    %1052 = vmatprep.mubr.f32.mxu0 0.0
    %1053 = vmatmul.mubr.f32.gmra.mrb[0].mxu0 %v844
    %v1054 = vpop.f32.mrb[0].mxu0
    %v1055 = vadd.f32 0.0, %v1054
    %v1056 = vpop.f32.mrb[0].mxu0
    %v1057 = vadd.f32 0.0, %v1056
    %1058 = vdwg.mxu0
    %v1059 = vadd.f32 %v849, %v984
    %v1060 = vadd.f32 %v850, %v986
    %v1061 = vadd.f32 %v851, %v1055
    %v1062 = vadd.f32 %v852, %v1057
    %v1063 = vxor.u32 %v1059, 2147483648
    %v1064 = vmul.f32 %v1063, 1.442695
    %v1065 = vpow.pop %v1064
    %v1066 = vadd.f32 %v1065, 1.0
    %v1067 = vrcp.pop %v1066
    %v1068 = vmul.f32 1.0, %v1067
    %v1069 = vxor.u32 %v1060, 2147483648
    %v1070 = vmul.f32 %v1069, 1.442695
    %v1071 = vpow.pop %v1070
    %v1072 = vadd.f32 %v1071, 1.0
    %v1073 = vrcp.pop %v1072
    %v1074 = vmul.f32 1.0, %v1073
    %v1075 = vtanh.pop %v1061
    %v1076 = vxor.u32 %v1062, 2147483648
    %v1077 = vmul.f32 %v1076, 1.442695
    %v1078 = vpow.pop %v1077
    %v1079 = vadd.f32 %v1078, 1.0
    %v1080 = vrcp.pop %v1079
    %v1081 = vmul.f32 1.0, %v1080
    %v1082 = vmul.f32 %v1074, %v845
    %v1083 = vmul.f32 %v1068, %v1075
    %v1084 = vadd.f32 %v1082, %v1083
    %v1085 = vtanh.pop %v1084
    %v1086 = vmul.f32 %v1081, %v1085
    %s1087 = scalar_lea.vmem [#allocation3], 8
    %1088 = vst [vmem:[%s1087] sm:$0xff] %v1086
    %s1089 = scalar_lea.vmem %s1, 16
    %v1090 = vld [vmem:[%s1089] sm:$0xff]
    %v1091 = vmul.f32 %v1086, %v1090
    %v1092 = vmul.f32 %v1084, %v1090
    %s1093 = smul.u32 2, 4
    %s1094 = smul.addr %s1093, 8
    %s1095 = scalar_lea.vmem [#allocation2], %s1094
    %v1096 = vld [vmem:[%s1095] sm:$0xff]
    %v1097 = vld [vmem:[%s1095 + $0x8] sm:$0xff]
    %v1098 = vld [vmem:[%s1095 + $0x10] sm:$0xff]
    %v1099 = vld [vmem:[%s1095 + $0x18] sm:$0xff]
    %v1100 = vld [vmem:[#allocation9] sm:$0xff]
    %v1101 = vld [vmem:[#allocation9 + $0x8] sm:$0xff]
    %v1102 = vld [vmem:[#allocation9 + $0x10] sm:$0xff]
    %v1103 = vld [vmem:[#allocation9 + $0x18] sm:$0xff]
    %v1104 = vld [vmem:[#allocation9 + $0x20] sm:$0xff]
    %v1105 = vld [vmem:[#allocation9 + $0x28] sm:$0xff]
    %v1106 = vld [vmem:[#allocation9 + $0x30] sm:$0xff]
    %v1107 = vld [vmem:[#allocation9 + $0x38] sm:$0xff]
    %v1108 = vld [vmem:[#allocation9 + $0x40] sm:$0xff]
    %v1109 = vld [vmem:[#allocation9 + $0x48] sm:$0xff]
    %v1110 = vld [vmem:[#allocation9 + $0x50] sm:$0xff]
    %v1111 = vld [vmem:[#allocation9 + $0x58] sm:$0xff]
    %v1112 = vld [vmem:[#allocation9 + $0x60] sm:$0xff]
    %v1113 = vld [vmem:[#allocation9 + $0x68] sm:$0xff]
    %v1114 = vld [vmem:[#allocation9 + $0x70] sm:$0xff]
    %v1115 = vld [vmem:[#allocation9 + $0x78] sm:$0xff]
    %v1116 = vld [vmem:[#allocation9 + $0x80] sm:$0xff]
    %v1117 = vld [vmem:[#allocation9 + $0x88] sm:$0xff]
    %v1118 = vld [vmem:[#allocation9 + $0x90] sm:$0xff]
    %v1119 = vld [vmem:[#allocation9 + $0x98] sm:$0xff]
    %v1120 = vld [vmem:[#allocation9 + $0xa0] sm:$0xff]
    %v1121 = vld [vmem:[#allocation9 + $0xa8] sm:$0xff]
    %v1122 = vld [vmem:[#allocation9 + $0xb0] sm:$0xff]
    %v1123 = vld [vmem:[#allocation9 + $0xb8] sm:$0xff]
    %v1124 = vld [vmem:[#allocation9 + $0xc0] sm:$0xff]
    %v1125 = vld [vmem:[#allocation9 + $0xc8] sm:$0xff]
    %v1126 = vld [vmem:[#allocation9 + $0xd0] sm:$0xff]
    %v1127 = vld [vmem:[#allocation9 + $0xd8] sm:$0xff]
    %v1128 = vld [vmem:[#allocation9 + $0xe0] sm:$0xff]
    %v1129 = vld [vmem:[#allocation9 + $0xe8] sm:$0xff]
    %v1130 = vld [vmem:[#allocation9 + $0xf0] sm:$0xff]
    %v1131 = vld [vmem:[#allocation9 + $0xf8] sm:$0xff]
    %v1132 = vld [vmem:[#allocation9 + $0x100] sm:$0xff]
    %v1133 = vld [vmem:[#allocation9 + $0x108] sm:$0xff]
    %v1134 = vld [vmem:[#allocation9 + $0x110] sm:$0xff]
    %v1135 = vld [vmem:[#allocation9 + $0x118] sm:$0xff]
    %v1136 = vld [vmem:[#allocation9 + $0x120] sm:$0xff]
    %v1137 = vld [vmem:[#allocation9 + $0x128] sm:$0xff]
    %v1138 = vld [vmem:[#allocation9 + $0x130] sm:$0xff]
    %v1139 = vld [vmem:[#allocation9 + $0x138] sm:$0xff]
    %v1140 = vld [vmem:[#allocation9 + $0x140] sm:$0xff]
    %v1141 = vld [vmem:[#allocation9 + $0x148] sm:$0xff]
    %v1142 = vld [vmem:[#allocation9 + $0x150] sm:$0xff]
    %v1143 = vld [vmem:[#allocation9 + $0x158] sm:$0xff]
    %v1144 = vld [vmem:[#allocation9 + $0x160] sm:$0xff]
    %v1145 = vld [vmem:[#allocation9 + $0x168] sm:$0xff]
    %v1146 = vld [vmem:[#allocation9 + $0x170] sm:$0xff]
    %v1147 = vld [vmem:[#allocation9 + $0x178] sm:$0xff]
    %v1148 = vld [vmem:[#allocation9 + $0x180] sm:$0xff]
    %v1149 = vld [vmem:[#allocation9 + $0x188] sm:$0xff]
    %v1150 = vld [vmem:[#allocation9 + $0x190] sm:$0xff]
    %v1151 = vld [vmem:[#allocation9 + $0x198] sm:$0xff]
    %v1152 = vld [vmem:[#allocation9 + $0x1a0] sm:$0xff]
    %v1153 = vld [vmem:[#allocation9 + $0x1a8] sm:$0xff]
    %v1154 = vld [vmem:[#allocation9 + $0x1b0] sm:$0xff]
    %v1155 = vld [vmem:[#allocation9 + $0x1b8] sm:$0xff]
    %v1156 = vld [vmem:[#allocation9 + $0x1c0] sm:$0xff]
    %v1157 = vld [vmem:[#allocation9 + $0x1c8] sm:$0xff]
    %v1158 = vld [vmem:[#allocation9 + $0x1d0] sm:$0xff]
    %v1159 = vld [vmem:[#allocation9 + $0x1d8] sm:$0xff]
    %v1160 = vld [vmem:[#allocation9 + $0x1e0] sm:$0xff]
    %v1161 = vld [vmem:[#allocation9 + $0x1e8] sm:$0xff]
    %v1162 = vld [vmem:[#allocation9 + $0x1f0] sm:$0xff]
    %v1163 = vld [vmem:[#allocation9 + $0x1f8] sm:$0xff]
    %1164 = vmatprep.subr.mxu0 %v1101
    %1165 = vmatpush1.msra.mxu0 %v1100
    %1166 = vmatprep.subr.mxu0 %v1105
    %1167 = vmatpush1.msra.mxu0 %v1104
    %1168 = vmatprep.subr.mxu0 %v1109
    %1169 = vmatpush1.msra.mxu0 %v1108
    %1170 = vmatprep.subr.mxu0 %v1113
    %1171 = vmatpush1.msra.mxu0 %v1112
    %1172 = vmatprep.subr.mxu0 %v1117
    %1173 = vmatpush1.msra.mxu0 %v1116
    %1174 = vmatprep.subr.mxu0 %v1121
    %1175 = vmatpush1.msra.mxu0 %v1120
    %1176 = vmatprep.subr.mxu0 %v1125
    %1177 = vmatpush1.msra.mxu0 %v1124
    %1178 = vmatprep.subr.mxu0 %v1129
    %1179 = vmatpush1.msra.mxu0 %v1128
    %1180 = vmatprep.subr.mxu0 %v1133
    %1181 = vmatpush1.msra.mxu0 %v1132
    %1182 = vmatprep.subr.mxu0 %v1137
    %1183 = vmatpush1.msra.mxu0 %v1136
    %1184 = vmatprep.subr.mxu0 %v1141
    %1185 = vmatpush1.msra.mxu0 %v1140
    %1186 = vmatprep.subr.mxu0 %v1145
    %1187 = vmatpush1.msra.mxu0 %v1144
    %1188 = vmatprep.subr.mxu0 %v1149
    %1189 = vmatpush1.msra.mxu0 %v1148
    %1190 = vmatprep.subr.mxu0 %v1153
    %1191 = vmatpush1.msra.mxu0 %v1152
    %1192 = vmatprep.subr.mxu0 %v1157
    %1193 = vmatpush1.msra.mxu0 %v1156
    %1194 = vmatprep.subr.mxu0 %v1161
    %1195 = vmatpush1.msra.mxu0 %v1160
    %1196 = vmatprep.subr.mxu0 0.0
    %1197 = vmatpush1.msra.mxu0 0.0
    %1198 = vmatprep.subr.mxu0 0.0
    %1199 = vmatpush1.msra.mxu0 0.0
    %1200 = vmatprep.subr.mxu0 0.0
    %1201 = vmatpush1.msra.mxu0 0.0
    %1202 = vmatprep.subr.mxu0 0.0
    %1203 = vmatpush1.msra.mxu0 0.0
    %1204 = vmatprep.subr.mxu0 0.0
    %1205 = vmatpush1.msra.mxu0 0.0
    %1206 = vmatprep.subr.mxu0 0.0
    %1207 = vmatpush1.msra.mxu0 0.0
    %1208 = vmatprep.subr.mxu0 0.0
    %1209 = vmatpush1.msra.mxu0 0.0
    %1210 = vmatprep.subr.mxu0 0.0
    %1211 = vmatpush1.msra.mxu0 0.0
    %1212 = vmatprep.subr.mxu0 0.0
    %1213 = vmatpush1.msra.mxu0 0.0
    %1214 = vmatprep.subr.mxu0 0.0
    %1215 = vmatpush1.msra.mxu0 0.0
    %1216 = vmatprep.subr.mxu0 0.0
    %1217 = vmatpush1.msra.mxu0 0.0
    %1218 = vmatprep.subr.mxu0 0.0
    %1219 = vmatpush1.msra.mxu0 0.0
    %1220 = vmatprep.subr.mxu0 0.0
    %1221 = vmatpush1.msra.mxu0 0.0
    %1222 = vmatprep.subr.mxu0 0.0
    %1223 = vmatpush1.msra.mxu0 0.0
    %1224 = vmatprep.subr.mxu0 0.0
    %1225 = vmatpush1.msra.mxu0 0.0
    %1226 = vmatprep.subr.mxu0 0.0
    %1227 = vmatpush1.msra.mxu0 0.0
    %1228 = vmatprep.mubr.f32.mxu0 0.0
    %1229 = vmatmul.mubr.f32.gmra.mrb[0].mxu0 %v1091
    %v1230 = vpop.f32.mrb[0].mxu0
    %v1231 = vadd.f32 0.0, %v1230
    %v1232 = vpop.f32.mrb[0].mxu0
    %v1233 = vadd.f32 0.0, %v1232
    %1234 = vdwg.mxu0
    %1235 = vmatprep.subr.mxu0 %v1103
    %1236 = vmatpush1.msra.mxu0 %v1102
    %1237 = vmatprep.subr.mxu0 %v1107
    %1238 = vmatpush1.msra.mxu0 %v1106
    %1239 = vmatprep.subr.mxu0 %v1111
    %1240 = vmatpush1.msra.mxu0 %v1110
    %1241 = vmatprep.subr.mxu0 %v1115
    %1242 = vmatpush1.msra.mxu0 %v1114
    %1243 = vmatprep.subr.mxu0 %v1119
    %1244 = vmatpush1.msra.mxu0 %v1118
    %1245 = vmatprep.subr.mxu0 %v1123
    %1246 = vmatpush1.msra.mxu0 %v1122
    %1247 = vmatprep.subr.mxu0 %v1127
    %1248 = vmatpush1.msra.mxu0 %v1126
    %1249 = vmatprep.subr.mxu0 %v1131
    %1250 = vmatpush1.msra.mxu0 %v1130
    %1251 = vmatprep.subr.mxu0 %v1135
    %1252 = vmatpush1.msra.mxu0 %v1134
    %1253 = vmatprep.subr.mxu0 %v1139
    %1254 = vmatpush1.msra.mxu0 %v1138
    %1255 = vmatprep.subr.mxu0 %v1143
    %1256 = vmatpush1.msra.mxu0 %v1142
    %1257 = vmatprep.subr.mxu0 %v1147
    %1258 = vmatpush1.msra.mxu0 %v1146
    %1259 = vmatprep.subr.mxu0 %v1151
    %1260 = vmatpush1.msra.mxu0 %v1150
    %1261 = vmatprep.subr.mxu0 %v1155
    %1262 = vmatpush1.msra.mxu0 %v1154
    %1263 = vmatprep.subr.mxu0 %v1159
    %1264 = vmatpush1.msra.mxu0 %v1158
    %1265 = vmatprep.subr.mxu0 %v1163
    %1266 = vmatpush1.msra.mxu0 %v1162
    %1267 = vmatprep.subr.mxu0 0.0
    %1268 = vmatpush1.msra.mxu0 0.0
    %1269 = vmatprep.subr.mxu0 0.0
    %1270 = vmatpush1.msra.mxu0 0.0
    %1271 = vmatprep.subr.mxu0 0.0
    %1272 = vmatpush1.msra.mxu0 0.0
    %1273 = vmatprep.subr.mxu0 0.0
    %1274 = vmatpush1.msra.mxu0 0.0
    %1275 = vmatprep.subr.mxu0 0.0
    %1276 = vmatpush1.msra.mxu0 0.0
    %1277 = vmatprep.subr.mxu0 0.0
    %1278 = vmatpush1.msra.mxu0 0.0
    %1279 = vmatprep.subr.mxu0 0.0
    %1280 = vmatpush1.msra.mxu0 0.0
    %1281 = vmatprep.subr.mxu0 0.0
    %1282 = vmatpush1.msra.mxu0 0.0
    %1283 = vmatprep.subr.mxu0 0.0
    %1284 = vmatpush1.msra.mxu0 0.0
    %1285 = vmatprep.subr.mxu0 0.0
    %1286 = vmatpush1.msra.mxu0 0.0
    %1287 = vmatprep.subr.mxu0 0.0
    %1288 = vmatpush1.msra.mxu0 0.0
    %1289 = vmatprep.subr.mxu0 0.0
    %1290 = vmatpush1.msra.mxu0 0.0
    %1291 = vmatprep.subr.mxu0 0.0
    %1292 = vmatpush1.msra.mxu0 0.0
    %1293 = vmatprep.subr.mxu0 0.0
    %1294 = vmatpush1.msra.mxu0 0.0
    %1295 = vmatprep.subr.mxu0 0.0
    %1296 = vmatpush1.msra.mxu0 0.0
    %1297 = vmatprep.subr.mxu0 0.0
    %1298 = vmatpush1.msra.mxu0 0.0
    %1299 = vmatprep.mubr.f32.mxu0 0.0
    %1300 = vmatmul.mubr.f32.gmra.mrb[0].mxu0 %v1091
    %v1301 = vpop.f32.mrb[0].mxu0
    %v1302 = vadd.f32 0.0, %v1301
    %v1303 = vpop.f32.mrb[0].mxu0
    %v1304 = vadd.f32 0.0, %v1303
    %1305 = vdwg.mxu0
    %v1306 = vadd.f32 %v1096, %v1231
    %v1307 = vadd.f32 %v1097, %v1233
    %v1308 = vadd.f32 %v1098, %v1302
    %v1309 = vadd.f32 %v1099, %v1304
    %v1310 = vxor.u32 %v1306, 2147483648
    %v1311 = vmul.f32 %v1310, 1.442695
    %v1312 = vpow.pop %v1311
    %v1313 = vadd.f32 %v1312, 1.0
    %v1314 = vrcp.pop %v1313
    %v1315 = vmul.f32 1.0, %v1314
    %v1316 = vxor.u32 %v1307, 2147483648
    %v1317 = vmul.f32 %v1316, 1.442695
    %v1318 = vpow.pop %v1317
    %v1319 = vadd.f32 %v1318, 1.0
    %v1320 = vrcp.pop %v1319
    %v1321 = vmul.f32 1.0, %v1320
    %v1322 = vtanh.pop %v1308
    %v1323 = vxor.u32 %v1309, 2147483648
    %v1324 = vmul.f32 %v1323, 1.442695
    %v1325 = vpow.pop %v1324
    %v1326 = vadd.f32 %v1325, 1.0
    %v1327 = vrcp.pop %v1326
    %v1328 = vmul.f32 1.0, %v1327
    %v1329 = vmul.f32 %v1321, %v1092
    %v1330 = vmul.f32 %v1315, %v1322
    %v1331 = vadd.f32 %v1329, %v1330
    %v1332 = vtanh.pop %v1331
    %v1333 = vmul.f32 %v1328, %v1332
    %s1334 = scalar_lea.vmem [#allocation3], 16
    %1335 = vst [vmem:[%s1334] sm:$0xff] %v1333
    %s1336 = scalar_lea.vmem %s1, 24
    %v1337 = vld [vmem:[%s1336] sm:$0xff]
    %v1338 = vmul.f32 %v1333, %v1337
    %v1339 = vmul.f32 %v1331, %v1337
    %s1340 = smul.u32 3, 4
    %s1341 = smul.addr %s1340, 8
    %s1342 = scalar_lea.vmem [#allocation2], %s1341
    %v1343 = vld [vmem:[%s1342] sm:$0xff]
    %v1344 = vld [vmem:[%s1342 + $0x8] sm:$0xff]
    %v1345 = vld [vmem:[%s1342 + $0x10] sm:$0xff]
    %v1346 = vld [vmem:[%s1342 + $0x18] sm:$0xff]
    %v1347 = vld [vmem:[#allocation9] sm:$0xff]
    %v1348 = vld [vmem:[#allocation9 + $0x8] sm:$0xff]
    %v1349 = vld [vmem:[#allocation9 + $0x10] sm:$0xff]
    %v1350 = vld [vmem:[#allocation9 + $0x18] sm:$0xff]
    %v1351 = vld [vmem:[#allocation9 + $0x20] sm:$0xff]
    %v1352 = vld [vmem:[#allocation9 + $0x28] sm:$0xff]
    %v1353 = vld [vmem:[#allocation9 + $0x30] sm:$0xff]
    %v1354 = vld [vmem:[#allocation9 + $0x38] sm:$0xff]
    %v1355 = vld [vmem:[#allocation9 + $0x40] sm:$0xff]
    %v1356 = vld [vmem:[#allocation9 + $0x48] sm:$0xff]
    %v1357 = vld [vmem:[#allocation9 + $0x50] sm:$0xff]
    %v1358 = vld [vmem:[#allocation9 + $0x58] sm:$0xff]
    %v1359 = vld [vmem:[#allocation9 + $0x60] sm:$0xff]
    %v1360 = vld [vmem:[#allocation9 + $0x68] sm:$0xff]
    %v1361 = vld [vmem:[#allocation9 + $0x70] sm:$0xff]
    %v1362 = vld [vmem:[#allocation9 + $0x78] sm:$0xff]
    %v1363 = vld [vmem:[#allocation9 + $0x80] sm:$0xff]
    %v1364 = vld [vmem:[#allocation9 + $0x88] sm:$0xff]
    %v1365 = vld [vmem:[#allocation9 + $0x90] sm:$0xff]
    %v1366 = vld [vmem:[#allocation9 + $0x98] sm:$0xff]
    %v1367 = vld [vmem:[#allocation9 + $0xa0] sm:$0xff]
    %v1368 = vld [vmem:[#allocation9 + $0xa8] sm:$0xff]
    %v1369 = vld [vmem:[#allocation9 + $0xb0] sm:$0xff]
    %v1370 = vld [vmem:[#allocation9 + $0xb8] sm:$0xff]
    %v1371 = vld [vmem:[#allocation9 + $0xc0] sm:$0xff]
    %v1372 = vld [vmem:[#allocation9 + $0xc8] sm:$0xff]
    %v1373 = vld [vmem:[#allocation9 + $0xd0] sm:$0xff]
    %v1374 = vld [vmem:[#allocation9 + $0xd8] sm:$0xff]
    %v1375 = vld [vmem:[#allocation9 + $0xe0] sm:$0xff]
    %v1376 = vld [vmem:[#allocation9 + $0xe8] sm:$0xff]
    %v1377 = vld [vmem:[#allocation9 + $0xf0] sm:$0xff]
    %v1378 = vld [vmem:[#allocation9 + $0xf8] sm:$0xff]
    %v1379 = vld [vmem:[#allocation9 + $0x100] sm:$0xff]
    %v1380 = vld [vmem:[#allocation9 + $0x108] sm:$0xff]
    %v1381 = vld [vmem:[#allocation9 + $0x110] sm:$0xff]
    %v1382 = vld [vmem:[#allocation9 + $0x118] sm:$0xff]
    %v1383 = vld [vmem:[#allocation9 + $0x120] sm:$0xff]
    %v1384 = vld [vmem:[#allocation9 + $0x128] sm:$0xff]
    %v1385 = vld [vmem:[#allocation9 + $0x130] sm:$0xff]
    %v1386 = vld [vmem:[#allocation9 + $0x138] sm:$0xff]
    %v1387 = vld [vmem:[#allocation9 + $0x140] sm:$0xff]
    %v1388 = vld [vmem:[#allocation9 + $0x148] sm:$0xff]
    %v1389 = vld [vmem:[#allocation9 + $0x150] sm:$0xff]
    %v1390 = vld [vmem:[#allocation9 + $0x158] sm:$0xff]
    %v1391 = vld [vmem:[#allocation9 + $0x160] sm:$0xff]
    %v1392 = vld [vmem:[#allocation9 + $0x168] sm:$0xff]
    %v1393 = vld [vmem:[#allocation9 + $0x170] sm:$0xff]
    %v1394 = vld [vmem:[#allocation9 + $0x178] sm:$0xff]
    %v1395 = vld [vmem:[#allocation9 + $0x180] sm:$0xff]
    %v1396 = vld [vmem:[#allocation9 + $0x188] sm:$0xff]
    %v1397 = vld [vmem:[#allocation9 + $0x190] sm:$0xff]
    %v1398 = vld [vmem:[#allocation9 + $0x198] sm:$0xff]
    %v1399 = vld [vmem:[#allocation9 + $0x1a0] sm:$0xff]
    %v1400 = vld [vmem:[#allocation9 + $0x1a8] sm:$0xff]
    %v1401 = vld [vmem:[#allocation9 + $0x1b0] sm:$0xff]
    %v1402 = vld [vmem:[#allocation9 + $0x1b8] sm:$0xff]
    %v1403 = vld [vmem:[#allocation9 + $0x1c0] sm:$0xff]
    %v1404 = vld [vmem:[#allocation9 + $0x1c8] sm:$0xff]
    %v1405 = vld [vmem:[#allocation9 + $0x1d0] sm:$0xff]
    %v1406 = vld [vmem:[#allocation9 + $0x1d8] sm:$0xff]
    %v1407 = vld [vmem:[#allocation9 + $0x1e0] sm:$0xff]
    %v1408 = vld [vmem:[#allocation9 + $0x1e8] sm:$0xff]
    %v1409 = vld [vmem:[#allocation9 + $0x1f0] sm:$0xff]
    %v1410 = vld [vmem:[#allocation9 + $0x1f8] sm:$0xff]
    %1411 = vmatprep.subr.mxu0 %v1348
    %1412 = vmatpush1.msra.mxu0 %v1347
    %1413 = vmatprep.subr.mxu0 %v1352
    %1414 = vmatpush1.msra.mxu0 %v1351
    %1415 = vmatprep.subr.mxu0 %v1356
    %1416 = vmatpush1.msra.mxu0 %v1355
    %1417 = vmatprep.subr.mxu0 %v1360
    %1418 = vmatpush1.msra.mxu0 %v1359
    %1419 = vmatprep.subr.mxu0 %v1364
    %1420 = vmatpush1.msra.mxu0 %v1363
    %1421 = vmatprep.subr.mxu0 %v1368
    %1422 = vmatpush1.msra.mxu0 %v1367
    %1423 = vmatprep.subr.mxu0 %v1372
    %1424 = vmatpush1.msra.mxu0 %v1371
    %1425 = vmatprep.subr.mxu0 %v1376
    %1426 = vmatpush1.msra.mxu0 %v1375
    %1427 = vmatprep.subr.mxu0 %v1380
    %1428 = vmatpush1.msra.mxu0 %v1379
    %1429 = vmatprep.subr.mxu0 %v1384
    %1430 = vmatpush1.msra.mxu0 %v1383
    %1431 = vmatprep.subr.mxu0 %v1388
    %1432 = vmatpush1.msra.mxu0 %v1387
    %1433 = vmatprep.subr.mxu0 %v1392
    %1434 = vmatpush1.msra.mxu0 %v1391
    %1435 = vmatprep.subr.mxu0 %v1396
    %1436 = vmatpush1.msra.mxu0 %v1395
    %1437 = vmatprep.subr.mxu0 %v1400
    %1438 = vmatpush1.msra.mxu0 %v1399
    %1439 = vmatprep.subr.mxu0 %v1404
    %1440 = vmatpush1.msra.mxu0 %v1403
    %1441 = vmatprep.subr.mxu0 %v1408
    %1442 = vmatpush1.msra.mxu0 %v1407
    %1443 = vmatprep.subr.mxu0 0.0
    %1444 = vmatpush1.msra.mxu0 0.0
    %1445 = vmatprep.subr.mxu0 0.0
    %1446 = vmatpush1.msra.mxu0 0.0
    %1447 = vmatprep.subr.mxu0 0.0
    %1448 = vmatpush1.msra.mxu0 0.0
    %1449 = vmatprep.subr.mxu0 0.0
    %1450 = vmatpush1.msra.mxu0 0.0
    %1451 = vmatprep.subr.mxu0 0.0
    %1452 = vmatpush1.msra.mxu0 0.0
    %1453 = vmatprep.subr.mxu0 0.0
    %1454 = vmatpush1.msra.mxu0 0.0
    %1455 = vmatprep.subr.mxu0 0.0
    %1456 = vmatpush1.msra.mxu0 0.0
    %1457 = vmatprep.subr.mxu0 0.0
    %1458 = vmatpush1.msra.mxu0 0.0
    %1459 = vmatprep.subr.mxu0 0.0
    %1460 = vmatpush1.msra.mxu0 0.0
    %1461 = vmatprep.subr.mxu0 0.0
    %1462 = vmatpush1.msra.mxu0 0.0
    %1463 = vmatprep.subr.mxu0 0.0
    %1464 = vmatpush1.msra.mxu0 0.0
    %1465 = vmatprep.subr.mxu0 0.0
    %1466 = vmatpush1.msra.mxu0 0.0
    %1467 = vmatprep.subr.mxu0 0.0
    %1468 = vmatpush1.msra.mxu0 0.0
    %1469 = vmatprep.subr.mxu0 0.0
    %1470 = vmatpush1.msra.mxu0 0.0
    %1471 = vmatprep.subr.mxu0 0.0
    %1472 = vmatpush1.msra.mxu0 0.0
    %1473 = vmatprep.subr.mxu0 0.0
    %1474 = vmatpush1.msra.mxu0 0.0
    %1475 = vmatprep.mubr.f32.mxu0 0.0
    %1476 = vmatmul.mubr.f32.gmra.mrb[0].mxu0 %v1338
    %v1477 = vpop.f32.mrb[0].mxu0
    %v1478 = vadd.f32 0.0, %v1477
    %v1479 = vpop.f32.mrb[0].mxu0
    %v1480 = vadd.f32 0.0, %v1479
    %1481 = vdwg.mxu0
    %1482 = vmatprep.subr.mxu0 %v1350
    %1483 = vmatpush1.msra.mxu0 %v1349
    %1484 = vmatprep.subr.mxu0 %v1354
    %1485 = vmatpush1.msra.mxu0 %v1353
    %1486 = vmatprep.subr.mxu0 %v1358
    %1487 = vmatpush1.msra.mxu0 %v1357
    %1488 = vmatprep.subr.mxu0 %v1362
    %1489 = vmatpush1.msra.mxu0 %v1361
    %1490 = vmatprep.subr.mxu0 %v1366
    %1491 = vmatpush1.msra.mxu0 %v1365
    %1492 = vmatprep.subr.mxu0 %v1370
    %1493 = vmatpush1.msra.mxu0 %v1369
    %1494 = vmatprep.subr.mxu0 %v1374
    %1495 = vmatpush1.msra.mxu0 %v1373
    %1496 = vmatprep.subr.mxu0 %v1378
    %1497 = vmatpush1.msra.mxu0 %v1377
    %1498 = vmatprep.subr.mxu0 %v1382
    %1499 = vmatpush1.msra.mxu0 %v1381
    %1500 = vmatprep.subr.mxu0 %v1386
    %1501 = vmatpush1.msra.mxu0 %v1385
    %1502 = vmatprep.subr.mxu0 %v1390
    %1503 = vmatpush1.msra.mxu0 %v1389
    %1504 = vmatprep.subr.mxu0 %v1394
    %1505 = vmatpush1.msra.mxu0 %v1393
    %1506 = vmatprep.subr.mxu0 %v1398
    %1507 = vmatpush1.msra.mxu0 %v1397
    %1508 = vmatprep.subr.mxu0 %v1402
    %1509 = vmatpush1.msra.mxu0 %v1401
    %1510 = vmatprep.subr.mxu0 %v1406
    %1511 = vmatpush1.msra.mxu0 %v1405
    %1512 = vmatprep.subr.mxu0 %v1410
    %1513 = vmatpush1.msra.mxu0 %v1409
    %1514 = vmatprep.subr.mxu0 0.0
    %1515 = vmatpush1.msra.mxu0 0.0
    %1516 = vmatprep.subr.mxu0 0.0
    %1517 = vmatpush1.msra.mxu0 0.0
    %1518 = vmatprep.subr.mxu0 0.0
    %1519 = vmatpush1.msra.mxu0 0.0
    %1520 = vmatprep.subr.mxu0 0.0
    %1521 = vmatpush1.msra.mxu0 0.0
    %1522 = vmatprep.subr.mxu0 0.0
    %1523 = vmatpush1.msra.mxu0 0.0
    %1524 = vmatprep.subr.mxu0 0.0
    %1525 = vmatpush1.msra.mxu0 0.0
    %1526 = vmatprep.subr.mxu0 0.0
    %1527 = vmatpush1.msra.mxu0 0.0
    %1528 = vmatprep.subr.mxu0 0.0
    %1529 = vmatpush1.msra.mxu0 0.0
    %1530 = vmatprep.subr.mxu0 0.0
    %1531 = vmatpush1.msra.mxu0 0.0
    %1532 = vmatprep.subr.mxu0 0.0
    %1533 = vmatpush1.msra.mxu0 0.0
    %1534 = vmatprep.subr.mxu0 0.0
    %1535 = vmatpush1.msra.mxu0 0.0
    %1536 = vmatprep.subr.mxu0 0.0
    %1537 = vmatpush1.msra.mxu0 0.0
    %1538 = vmatprep.subr.mxu0 0.0
    %1539 = vmatpush1.msra.mxu0 0.0
    %1540 = vmatprep.subr.mxu0 0.0
    %1541 = vmatpush1.msra.mxu0 0.0
    %1542 = vmatprep.subr.mxu0 0.0
    %1543 = vmatpush1.msra.mxu0 0.0
    %1544 = vmatprep.subr.mxu0 0.0
    %1545 = vmatpush1.msra.mxu0 0.0
    %1546 = vmatprep.mubr.f32.mxu0 0.0
    %1547 = vmatmul.mubr.f32.gmra.mrb[0].mxu0 %v1338
    %v1548 = vpop.f32.mrb[0].mxu0
    %v1549 = vadd.f32 0.0, %v1548
    %v1550 = vpop.f32.mrb[0].mxu0
    %v1551 = vadd.f32 0.0, %v1550
    %1552 = vdwg.mxu0
    %v1553 = vadd.f32 %v1343, %v1478
    %v1554 = vadd.f32 %v1344, %v1480
    %v1555 = vadd.f32 %v1345, %v1549
    %v1556 = vadd.f32 %v1346, %v1551
    %v1557 = vxor.u32 %v1553, 2147483648
    %v1558 = vmul.f32 %v1557, 1.442695
    %v1559 = vpow.pop %v1558
    %v1560 = vadd.f32 %v1559, 1.0
    %v1561 = vrcp.pop %v1560
    %v1562 = vmul.f32 1.0, %v1561
    %v1563 = vxor.u32 %v1554, 2147483648
    %v1564 = vmul.f32 %v1563, 1.442695
    %v1565 = vpow.pop %v1564
    %v1566 = vadd.f32 %v1565, 1.0
    %v1567 = vrcp.pop %v1566
    %v1568 = vmul.f32 1.0, %v1567
    %v1569 = vtanh.pop %v1555
    %v1570 = vxor.u32 %v1556, 2147483648
    %v1571 = vmul.f32 %v1570, 1.442695
    %v1572 = vpow.pop %v1571
    %v1573 = vadd.f32 %v1572, 1.0
    %v1574 = vrcp.pop %v1573
    %v1575 = vmul.f32 1.0, %v1574
    %v1576 = vmul.f32 %v1568, %v1339
    %v1577 = vmul.f32 %v1562, %v1569
    %v1578 = vadd.f32 %v1576, %v1577
    %v1579 = vtanh.pop %v1578
    %v1580 = vmul.f32 %v1575, %v1579
    %s1581 = scalar_lea.vmem [#allocation3], 24
    %1582 = vst [vmem:[%s1581] sm:$0xff] %v1580
    %s1583 = scalar_lea.vmem %s1, 32
    %v1584 = vld [vmem:[%s1583] sm:$0xff]
    %v1585 = vmul.f32 %v1580, %v1584
    %v1586 = vmul.f32 %v1578, %v1584
    %s1587 = smul.u32 4, 4
    %s1588 = smul.addr %s1587, 8
    %s1589 = scalar_lea.vmem [#allocation2], %s1588
    %v1590 = vld [vmem:[%s1589] sm:$0xff]
    %v1591 = vld [vmem:[%s1589 + $0x8] sm:$0xff]
    %v1592 = vld [vmem:[%s1589 + $0x10] sm:$0xff]
    %v1593 = vld [vmem:[%s1589 + $0x18] sm:$0xff]
    %v1594 = vld [vmem:[#allocation9] sm:$0xff]
    %v1595 = vld [vmem:[#allocation9 + $0x8] sm:$0xff]
    %v1596 = vld [vmem:[#allocation9 + $0x10] sm:$0xff]
    %v1597 = vld [vmem:[#allocation9 + $0x18] sm:$0xff]
    %v1598 = vld [vmem:[#allocation9 + $0x20] sm:$0xff]
    %v1599 = vld [vmem:[#allocation9 + $0x28] sm:$0xff]
    %v1600 = vld [vmem:[#allocation9 + $0x30] sm:$0xff]
    %v1601 = vld [vmem:[#allocation9 + $0x38] sm:$0xff]
    %v1602 = vld [vmem:[#allocation9 + $0x40] sm:$0xff]
    %v1603 = vld [vmem:[#allocation9 + $0x48] sm:$0xff]
    %v1604 = vld [vmem:[#allocation9 + $0x50] sm:$0xff]
    %v1605 = vld [vmem:[#allocation9 + $0x58] sm:$0xff]
    %v1606 = vld [vmem:[#allocation9 + $0x60] sm:$0xff]
    %v1607 = vld [vmem:[#allocation9 + $0x68] sm:$0xff]
    %v1608 = vld [vmem:[#allocation9 + $0x70] sm:$0xff]
    %v1609 = vld [vmem:[#allocation9 + $0x78] sm:$0xff]
    %v1610 = vld [vmem:[#allocation9 + $0x80] sm:$0xff]
    %v1611 = vld [vmem:[#allocation9 + $0x88] sm:$0xff]
    %v1612 = vld [vmem:[#allocation9 + $0x90] sm:$0xff]
    %v1613 = vld [vmem:[#allocation9 + $0x98] sm:$0xff]
    %v1614 = vld [vmem:[#allocation9 + $0xa0] sm:$0xff]
    %v1615 = vld [vmem:[#allocation9 + $0xa8] sm:$0xff]
    %v1616 = vld [vmem:[#allocation9 + $0xb0] sm:$0xff]
    %v1617 = vld [vmem:[#allocation9 + $0xb8] sm:$0xff]
    %v1618 = vld [vmem:[#allocation9 + $0xc0] sm:$0xff]
    %v1619 = vld [vmem:[#allocation9 + $0xc8] sm:$0xff]
    %v1620 = vld [vmem:[#allocation9 + $0xd0] sm:$0xff]
    %v1621 = vld [vmem:[#allocation9 + $0xd8] sm:$0xff]
    %v1622 = vld [vmem:[#allocation9 + $0xe0] sm:$0xff]
    %v1623 = vld [vmem:[#allocation9 + $0xe8] sm:$0xff]
    %v1624 = vld [vmem:[#allocation9 + $0xf0] sm:$0xff]
    %v1625 = vld [vmem:[#allocation9 + $0xf8] sm:$0xff]
    %v1626 = vld [vmem:[#allocation9 + $0x100] sm:$0xff]
    %v1627 = vld [vmem:[#allocation9 + $0x108] sm:$0xff]
    %v1628 = vld [vmem:[#allocation9 + $0x110] sm:$0xff]
    %v1629 = vld [vmem:[#allocation9 + $0x118] sm:$0xff]
    %v1630 = vld [vmem:[#allocation9 + $0x120] sm:$0xff]
    %v1631 = vld [vmem:[#allocation9 + $0x128] sm:$0xff]
    %v1632 = vld [vmem:[#allocation9 + $0x130] sm:$0xff]
    %v1633 = vld [vmem:[#allocation9 + $0x138] sm:$0xff]
    %v1634 = vld [vmem:[#allocation9 + $0x140] sm:$0xff]
    %v1635 = vld [vmem:[#allocation9 + $0x148] sm:$0xff]
    %v1636 = vld [vmem:[#allocation9 + $0x150] sm:$0xff]
    %v1637 = vld [vmem:[#allocation9 + $0x158] sm:$0xff]
    %v1638 = vld [vmem:[#allocation9 + $0x160] sm:$0xff]
    %v1639 = vld [vmem:[#allocation9 + $0x168] sm:$0xff]
    %v1640 = vld [vmem:[#allocation9 + $0x170] sm:$0xff]
    %v1641 = vld [vmem:[#allocation9 + $0x178] sm:$0xff]
    %v1642 = vld [vmem:[#allocation9 + $0x180] sm:$0xff]
    %v1643 = vld [vmem:[#allocation9 + $0x188] sm:$0xff]
    %v1644 = vld [vmem:[#allocation9 + $0x190] sm:$0xff]
    %v1645 = vld [vmem:[#allocation9 + $0x198] sm:$0xff]
    %v1646 = vld [vmem:[#allocation9 + $0x1a0] sm:$0xff]
    %v1647 = vld [vmem:[#allocation9 + $0x1a8] sm:$0xff]
    %v1648 = vld [vmem:[#allocation9 + $0x1b0] sm:$0xff]
    %v1649 = vld [vmem:[#allocation9 + $0x1b8] sm:$0xff]
    %v1650 = vld [vmem:[#allocation9 + $0x1c0] sm:$0xff]
    %v1651 = vld [vmem:[#allocation9 + $0x1c8] sm:$0xff]
    %v1652 = vld [vmem:[#allocation9 + $0x1d0] sm:$0xff]
    %v1653 = vld [vmem:[#allocation9 + $0x1d8] sm:$0xff]
    %v1654 = vld [vmem:[#allocation9 + $0x1e0] sm:$0xff]
    %v1655 = vld [vmem:[#allocation9 + $0x1e8] sm:$0xff]
    %v1656 = vld [vmem:[#allocation9 + $0x1f0] sm:$0xff]
    %v1657 = vld [vmem:[#allocation9 + $0x1f8] sm:$0xff]
    %1658 = vmatprep.subr.mxu0 %v1595
    %1659 = vmatpush1.msra.mxu0 %v1594
    %1660 = vmatprep.subr.mxu0 %v1599
    %1661 = vmatpush1.msra.mxu0 %v1598
    %1662 = vmatprep.subr.mxu0 %v1603
    %1663 = vmatpush1.msra.mxu0 %v1602
    %1664 = vmatprep.subr.mxu0 %v1607
    %1665 = vmatpush1.msra.mxu0 %v1606
    %1666 = vmatprep.subr.mxu0 %v1611
    %1667 = vmatpush1.msra.mxu0 %v1610
    %1668 = vmatprep.subr.mxu0 %v1615
    %1669 = vmatpush1.msra.mxu0 %v1614
    %1670 = vmatprep.subr.mxu0 %v1619
    %1671 = vmatpush1.msra.mxu0 %v1618
    %1672 = vmatprep.subr.mxu0 %v1623
    %1673 = vmatpush1.msra.mxu0 %v1622
    %1674 = vmatprep.subr.mxu0 %v1627
    %1675 = vmatpush1.msra.mxu0 %v1626
    %1676 = vmatprep.subr.mxu0 %v1631
    %1677 = vmatpush1.msra.mxu0 %v1630
    %1678 = vmatprep.subr.mxu0 %v1635
    %1679 = vmatpush1.msra.mxu0 %v1634
    %1680 = vmatprep.subr.mxu0 %v1639
    %1681 = vmatpush1.msra.mxu0 %v1638
    %1682 = vmatprep.subr.mxu0 %v1643
    %1683 = vmatpush1.msra.mxu0 %v1642
    %1684 = vmatprep.subr.mxu0 %v1647
    %1685 = vmatpush1.msra.mxu0 %v1646
    %1686 = vmatprep.subr.mxu0 %v1651
    %1687 = vmatpush1.msra.mxu0 %v1650
    %1688 = vmatprep.subr.mxu0 %v1655
    %1689 = vmatpush1.msra.mxu0 %v1654
    %1690 = vmatprep.subr.mxu0 0.0
    %1691 = vmatpush1.msra.mxu0 0.0
    %1692 = vmatprep.subr.mxu0 0.0
    %1693 = vmatpush1.msra.mxu0 0.0
    %1694 = vmatprep.subr.mxu0 0.0
    %1695 = vmatpush1.msra.mxu0 0.0
    %1696 = vmatprep.subr.mxu0 0.0
    %1697 = vmatpush1.msra.mxu0 0.0
    %1698 = vmatprep.subr.mxu0 0.0
    %1699 = vmatpush1.msra.mxu0 0.0
    %1700 = vmatprep.subr.mxu0 0.0
    %1701 = vmatpush1.msra.mxu0 0.0
    %1702 = vmatprep.subr.mxu0 0.0
    %1703 = vmatpush1.msra.mxu0 0.0
    %1704 = vmatprep.subr.mxu0 0.0
    %1705 = vmatpush1.msra.mxu0 0.0
    %1706 = vmatprep.subr.mxu0 0.0
    %1707 = vmatpush1.msra.mxu0 0.0
    %1708 = vmatprep.subr.mxu0 0.0
    %1709 = vmatpush1.msra.mxu0 0.0
    %1710 = vmatprep.subr.mxu0 0.0
    %1711 = vmatpush1.msra.mxu0 0.0
    %1712 = vmatprep.subr.mxu0 0.0
    %1713 = vmatpush1.msra.mxu0 0.0
    %1714 = vmatprep.subr.mxu0 0.0
    %1715 = vmatpush1.msra.mxu0 0.0
    %1716 = vmatprep.subr.mxu0 0.0
    %1717 = vmatpush1.msra.mxu0 0.0
    %1718 = vmatprep.subr.mxu0 0.0
    %1719 = vmatpush1.msra.mxu0 0.0
    %1720 = vmatprep.subr.mxu0 0.0
    %1721 = vmatpush1.msra.mxu0 0.0
    %1722 = vmatprep.mubr.f32.mxu0 0.0
    %1723 = vmatmul.mubr.f32.gmra.mrb[0].mxu0 %v1585
    %v1724 = vpop.f32.mrb[0].mxu0
    %v1725 = vadd.f32 0.0, %v1724
    %v1726 = vpop.f32.mrb[0].mxu0
    %v1727 = vadd.f32 0.0, %v1726
    %1728 = vdwg.mxu0
    %1729 = vmatprep.subr.mxu0 %v1597
    %1730 = vmatpush1.msra.mxu0 %v1596
    %1731 = vmatprep.subr.mxu0 %v1601
    %1732 = vmatpush1.msra.mxu0 %v1600
    %1733 = vmatprep.subr.mxu0 %v1605
    %1734 = vmatpush1.msra.mxu0 %v1604
    %1735 = vmatprep.subr.mxu0 %v1609
    %1736 = vmatpush1.msra.mxu0 %v1608
    %1737 = vmatprep.subr.mxu0 %v1613
    %1738 = vmatpush1.msra.mxu0 %v1612
    %1739 = vmatprep.subr.mxu0 %v1617
    %1740 = vmatpush1.msra.mxu0 %v1616
    %1741 = vmatprep.subr.mxu0 %v1621
    %1742 = vmatpush1.msra.mxu0 %v1620
    %1743 = vmatprep.subr.mxu0 %v1625
    %1744 = vmatpush1.msra.mxu0 %v1624
    %1745 = vmatprep.subr.mxu0 %v1629
    %1746 = vmatpush1.msra.mxu0 %v1628
    %1747 = vmatprep.subr.mxu0 %v1633
    %1748 = vmatpush1.msra.mxu0 %v1632
    %1749 = vmatprep.subr.mxu0 %v1637
    %1750 = vmatpush1.msra.mxu0 %v1636
    %1751 = vmatprep.subr.mxu0 %v1641
    %1752 = vmatpush1.msra.mxu0 %v1640
    %1753 = vmatprep.subr.mxu0 %v1645
    %1754 = vmatpush1.msra.mxu0 %v1644
    %1755 = vmatprep.subr.mxu0 %v1649
    %1756 = vmatpush1.msra.mxu0 %v1648
    %1757 = vmatprep.subr.mxu0 %v1653
    %1758 = vmatpush1.msra.mxu0 %v1652
    %1759 = vmatprep.subr.mxu0 %v1657
    %1760 = vmatpush1.msra.mxu0 %v1656
    %1761 = vmatprep.subr.mxu0 0.0
    %1762 = vmatpush1.msra.mxu0 0.0
    %1763 = vmatprep.subr.mxu0 0.0
    %1764 = vmatpush1.msra.mxu0 0.0
    %1765 = vmatprep.subr.mxu0 0.0
    %1766 = vmatpush1.msra.mxu0 0.0
    %1767 = vmatprep.subr.mxu0 0.0
    %1768 = vmatpush1.msra.mxu0 0.0
    %1769 = vmatprep.subr.mxu0 0.0
    %1770 = vmatpush1.msra.mxu0 0.0
    %1771 = vmatprep.subr.mxu0 0.0
    %1772 = vmatpush1.msra.mxu0 0.0
    %1773 = vmatprep.subr.mxu0 0.0
    %1774 = vmatpush1.msra.mxu0 0.0
    %1775 = vmatprep.subr.mxu0 0.0
    %1776 = vmatpush1.msra.mxu0 0.0
    %1777 = vmatprep.subr.mxu0 0.0
    %1778 = vmatpush1.msra.mxu0 0.0
    %1779 = vmatprep.subr.mxu0 0.0
    %1780 = vmatpush1.msra.mxu0 0.0
    %1781 = vmatprep.subr.mxu0 0.0
    %1782 = vmatpush1.msra.mxu0 0.0
    %1783 = vmatprep.subr.mxu0 0.0
    %1784 = vmatpush1.msra.mxu0 0.0
    %1785 = vmatprep.subr.mxu0 0.0
    %1786 = vmatpush1.msra.mxu0 0.0
    %1787 = vmatprep.subr.mxu0 0.0
    %1788 = vmatpush1.msra.mxu0 0.0
    %1789 = vmatprep.subr.mxu0 0.0
    %1790 = vmatpush1.msra.mxu0 0.0
    %1791 = vmatprep.subr.mxu0 0.0
    %1792 = vmatpush1.msra.mxu0 0.0
    %1793 = vmatprep.mubr.f32.mxu0 0.0
    %1794 = vmatmul.mubr.f32.gmra.mrb[0].mxu0 %v1585
    %v1795 = vpop.f32.mrb[0].mxu0
    %v1796 = vadd.f32 0.0, %v1795
    %v1797 = vpop.f32.mrb[0].mxu0
    %v1798 = vadd.f32 0.0, %v1797
    %1799 = vdwg.mxu0
    %v1800 = vadd.f32 %v1590, %v1725
    %v1801 = vadd.f32 %v1591, %v1727
    %v1802 = vadd.f32 %v1592, %v1796
    %v1803 = vadd.f32 %v1593, %v1798
    %v1804 = vxor.u32 %v1800, 2147483648
    %v1805 = vmul.f32 %v1804, 1.442695
    %v1806 = vpow.pop %v1805
    %v1807 = vadd.f32 %v1806, 1.0
    %v1808 = vrcp.pop %v1807
    %v1809 = vmul.f32 1.0, %v1808
    %v1810 = vxor.u32 %v1801, 2147483648
    %v1811 = vmul.f32 %v1810, 1.442695
    %v1812 = vpow.pop %v1811
    %v1813 = vadd.f32 %v1812, 1.0
    %v1814 = vrcp.pop %v1813
    %v1815 = vmul.f32 1.0, %v1814
    %v1816 = vtanh.pop %v1802
    %v1817 = vxor.u32 %v1803, 2147483648
    %v1818 = vmul.f32 %v1817, 1.442695
    %v1819 = vpow.pop %v1818
    %v1820 = vadd.f32 %v1819, 1.0
    %v1821 = vrcp.pop %v1820
    %v1822 = vmul.f32 1.0, %v1821
    %v1823 = vmul.f32 %v1815, %v1586
    %v1824 = vmul.f32 %v1809, %v1816
    %v1825 = vadd.f32 %v1823, %v1824
    %v1826 = vtanh.pop %v1825
    %v1827 = vmul.f32 %v1822, %v1826
    %s1828 = scalar_lea.vmem [#allocation3], 32
    %1829 = vst [vmem:[%s1828] sm:$0xff] %v1827
    %s1830 = scalar_lea.vmem %s1, 40
    %v1831 = vld [vmem:[%s1830] sm:$0xff]
    %v1832 = vmul.f32 %v1827, %v1831
    %v1833 = vmul.f32 %v1825, %v1831
    %s1834 = smul.u32 5, 4
    %s1835 = smul.addr %s1834, 8
    %s1836 = scalar_lea.vmem [#allocation2], %s1835
    %v1837 = vld [vmem:[%s1836] sm:$0xff]
    %v1838 = vld [vmem:[%s1836 + $0x8] sm:$0xff]
    %v1839 = vld [vmem:[%s1836 + $0x10] sm:$0xff]
    %v1840 = vld [vmem:[%s1836 + $0x18] sm:$0xff]
    %v1841 = vld [vmem:[#allocation9] sm:$0xff]
    %v1842 = vld [vmem:[#allocation9 + $0x8] sm:$0xff]
    %v1843 = vld [vmem:[#allocation9 + $0x10] sm:$0xff]
    %v1844 = vld [vmem:[#allocation9 + $0x18] sm:$0xff]
    %v1845 = vld [vmem:[#allocation9 + $0x20] sm:$0xff]
    %v1846 = vld [vmem:[#allocation9 + $0x28] sm:$0xff]
    %v1847 = vld [vmem:[#allocation9 + $0x30] sm:$0xff]
    %v1848 = vld [vmem:[#allocation9 + $0x38] sm:$0xff]
    %v1849 = vld [vmem:[#allocation9 + $0x40] sm:$0xff]
    %v1850 = vld [vmem:[#allocation9 + $0x48] sm:$0xff]
    %v1851 = vld [vmem:[#allocation9 + $0x50] sm:$0xff]
    %v1852 = vld [vmem:[#allocation9 + $0x58] sm:$0xff]
    %v1853 = vld [vmem:[#allocation9 + $0x60] sm:$0xff]
    %v1854 = vld [vmem:[#allocation9 + $0x68] sm:$0xff]
    %v1855 = vld [vmem:[#allocation9 + $0x70] sm:$0xff]
    %v1856 = vld [vmem:[#allocation9 + $0x78] sm:$0xff]
    %v1857 = vld [vmem:[#allocation9 + $0x80] sm:$0xff]
    %v1858 = vld [vmem:[#allocation9 + $0x88] sm:$0xff]
    %v1859 = vld [vmem:[#allocation9 + $0x90] sm:$0xff]
    %v1860 = vld [vmem:[#allocation9 + $0x98] sm:$0xff]
    %v1861 = vld [vmem:[#allocation9 + $0xa0] sm:$0xff]
    %v1862 = vld [vmem:[#allocation9 + $0xa8] sm:$0xff]
    %v1863 = vld [vmem:[#allocation9 + $0xb0] sm:$0xff]
    %v1864 = vld [vmem:[#allocation9 + $0xb8] sm:$0xff]
    %v1865 = vld [vmem:[#allocation9 + $0xc0] sm:$0xff]
    %v1866 = vld [vmem:[#allocation9 + $0xc8] sm:$0xff]
    %v1867 = vld [vmem:[#allocation9 + $0xd0] sm:$0xff]
    %v1868 = vld [vmem:[#allocation9 + $0xd8] sm:$0xff]
    %v1869 = vld [vmem:[#allocation9 + $0xe0] sm:$0xff]
    %v1870 = vld [vmem:[#allocation9 + $0xe8] sm:$0xff]
    %v1871 = vld [vmem:[#allocation9 + $0xf0] sm:$0xff]
    %v1872 = vld [vmem:[#allocation9 + $0xf8] sm:$0xff]
    %v1873 = vld [vmem:[#allocation9 + $0x100] sm:$0xff]
    %v1874 = vld [vmem:[#allocation9 + $0x108] sm:$0xff]
    %v1875 = vld [vmem:[#allocation9 + $0x110] sm:$0xff]
    %v1876 = vld [vmem:[#allocation9 + $0x118] sm:$0xff]
    %v1877 = vld [vmem:[#allocation9 + $0x120] sm:$0xff]
    %v1878 = vld [vmem:[#allocation9 + $0x128] sm:$0xff]
    %v1879 = vld [vmem:[#allocation9 + $0x130] sm:$0xff]
    %v1880 = vld [vmem:[#allocation9 + $0x138] sm:$0xff]
    %v1881 = vld [vmem:[#allocation9 + $0x140] sm:$0xff]
    %v1882 = vld [vmem:[#allocation9 + $0x148] sm:$0xff]
    %v1883 = vld [vmem:[#allocation9 + $0x150] sm:$0xff]
    %v1884 = vld [vmem:[#allocation9 + $0x158] sm:$0xff]
    %v1885 = vld [vmem:[#allocation9 + $0x160] sm:$0xff]
    %v1886 = vld [vmem:[#allocation9 + $0x168] sm:$0xff]
    %v1887 = vld [vmem:[#allocation9 + $0x170] sm:$0xff]
    %v1888 = vld [vmem:[#allocation9 + $0x178] sm:$0xff]
    %v1889 = vld [vmem:[#allocation9 + $0x180] sm:$0xff]
    %v1890 = vld [vmem:[#allocation9 + $0x188] sm:$0xff]
    %v1891 = vld [vmem:[#allocation9 + $0x190] sm:$0xff]
    %v1892 = vld [vmem:[#allocation9 + $0x198] sm:$0xff]
    %v1893 = vld [vmem:[#allocation9 + $0x1a0] sm:$0xff]
    %v1894 = vld [vmem:[#allocation9 + $0x1a8] sm:$0xff]
    %v1895 = vld [vmem:[#allocation9 + $0x1b0] sm:$0xff]
    %v1896 = vld [vmem:[#allocation9 + $0x1b8] sm:$0xff]
    %v1897 = vld [vmem:[#allocation9 + $0x1c0] sm:$0xff]
    %v1898 = vld [vmem:[#allocation9 + $0x1c8] sm:$0xff]
    %v1899 = vld [vmem:[#allocation9 + $0x1d0] sm:$0xff]
    %v1900 = vld [vmem:[#allocation9 + $0x1d8] sm:$0xff]
    %v1901 = vld [vmem:[#allocation9 + $0x1e0] sm:$0xff]
    %v1902 = vld [vmem:[#allocation9 + $0x1e8] sm:$0xff]
    %v1903 = vld [vmem:[#allocation9 + $0x1f0] sm:$0xff]
    %v1904 = vld [vmem:[#allocation9 + $0x1f8] sm:$0xff]
    %1905 = vmatprep.subr.mxu0 %v1842
    %1906 = vmatpush1.msra.mxu0 %v1841
    %1907 = vmatprep.subr.mxu0 %v1846
    %1908 = vmatpush1.msra.mxu0 %v1845
    %1909 = vmatprep.subr.mxu0 %v1850
    %1910 = vmatpush1.msra.mxu0 %v1849
    %1911 = vmatprep.subr.mxu0 %v1854
    %1912 = vmatpush1.msra.mxu0 %v1853
    %1913 = vmatprep.subr.mxu0 %v1858
    %1914 = vmatpush1.msra.mxu0 %v1857
    %1915 = vmatprep.subr.mxu0 %v1862
    %1916 = vmatpush1.msra.mxu0 %v1861
    %1917 = vmatprep.subr.mxu0 %v1866
    %1918 = vmatpush1.msra.mxu0 %v1865
    %1919 = vmatprep.subr.mxu0 %v1870
    %1920 = vmatpush1.msra.mxu0 %v1869
    %1921 = vmatprep.subr.mxu0 %v1874
    %1922 = vmatpush1.msra.mxu0 %v1873
    %1923 = vmatprep.subr.mxu0 %v1878
    %1924 = vmatpush1.msra.mxu0 %v1877
    %1925 = vmatprep.subr.mxu0 %v1882
    %1926 = vmatpush1.msra.mxu0 %v1881
    %1927 = vmatprep.subr.mxu0 %v1886
    %1928 = vmatpush1.msra.mxu0 %v1885
    %1929 = vmatprep.subr.mxu0 %v1890
    %1930 = vmatpush1.msra.mxu0 %v1889
    %1931 = vmatprep.subr.mxu0 %v1894
    %1932 = vmatpush1.msra.mxu0 %v1893
    %1933 = vmatprep.subr.mxu0 %v1898
    %1934 = vmatpush1.msra.mxu0 %v1897
    %1935 = vmatprep.subr.mxu0 %v1902
    %1936 = vmatpush1.msra.mxu0 %v1901
    %1937 = vmatprep.subr.mxu0 0.0
    %1938 = vmatpush1.msra.mxu0 0.0
    %1939 = vmatprep.subr.mxu0 0.0
    %1940 = vmatpush1.msra.mxu0 0.0
    %1941 = vmatprep.subr.mxu0 0.0
    %1942 = vmatpush1.msra.mxu0 0.0
    %1943 = vmatprep.subr.mxu0 0.0
    %1944 = vmatpush1.msra.mxu0 0.0
    %1945 = vmatprep.subr.mxu0 0.0
    %1946 = vmatpush1.msra.mxu0 0.0
    %1947 = vmatprep.subr.mxu0 0.0
    %1948 = vmatpush1.msra.mxu0 0.0
    %1949 = vmatprep.subr.mxu0 0.0
    %1950 = vmatpush1.msra.mxu0 0.0
    %1951 = vmatprep.subr.mxu0 0.0
    %1952 = vmatpush1.msra.mxu0 0.0
    %1953 = vmatprep.subr.mxu0 0.0
    %1954 = vmatpush1.msra.mxu0 0.0
    %1955 = vmatprep.subr.mxu0 0.0
    %1956 = vmatpush1.msra.mxu0 0.0
    %1957 = vmatprep.subr.mxu0 0.0
    %1958 = vmatpush1.msra.mxu0 0.0
    %1959 = vmatprep.subr.mxu0 0.0
    %1960 = vmatpush1.msra.mxu0 0.0
    %1961 = vmatprep.subr.mxu0 0.0
    %1962 = vmatpush1.msra.mxu0 0.0
    %1963 = vmatprep.subr.mxu0 0.0
    %1964 = vmatpush1.msra.mxu0 0.0
    %1965 = vmatprep.subr.mxu0 0.0
    %1966 = vmatpush1.msra.mxu0 0.0
    %1967 = vmatprep.subr.mxu0 0.0
    %1968 = vmatpush1.msra.mxu0 0.0
    %1969 = vmatprep.mubr.f32.mxu0 0.0
    %1970 = vmatmul.mubr.f32.gmra.mrb[0].mxu0 %v1832
    %v1971 = vpop.f32.mrb[0].mxu0
    %v1972 = vadd.f32 0.0, %v1971
    %v1973 = vpop.f32.mrb[0].mxu0
    %v1974 = vadd.f32 0.0, %v1973
    %1975 = vdwg.mxu0
    %1976 = vmatprep.subr.mxu0 %v1844
    %1977 = vmatpush1.msra.mxu0 %v1843
    %1978 = vmatprep.subr.mxu0 %v1848
    %1979 = vmatpush1.msra.mxu0 %v1847
    %1980 = vmatprep.subr.mxu0 %v1852
    %1981 = vmatpush1.msra.mxu0 %v1851
    %1982 = vmatprep.subr.mxu0 %v1856
    %1983 = vmatpush1.msra.mxu0 %v1855
    %1984 = vmatprep.subr.mxu0 %v1860
    %1985 = vmatpush1.msra.mxu0 %v1859
    %1986 = vmatprep.subr.mxu0 %v1864
    %1987 = vmatpush1.msra.mxu0 %v1863
    %1988 = vmatprep.subr.mxu0 %v1868
    %1989 = vmatpush1.msra.mxu0 %v1867
    %1990 = vmatprep.subr.mxu0 %v1872
    %1991 = vmatpush1.msra.mxu0 %v1871
    %1992 = vmatprep.subr.mxu0 %v1876
    %1993 = vmatpush1.msra.mxu0 %v1875
    %1994 = vmatprep.subr.mxu0 %v1880
    %1995 = vmatpush1.msra.mxu0 %v1879
    %1996 = vmatprep.subr.mxu0 %v1884
    %1997 = vmatpush1.msra.mxu0 %v1883
    %1998 = vmatprep.subr.mxu0 %v1888
    %1999 = vmatpush1.msra.mxu0 %v1887
    %2000 = vmatprep.subr.mxu0 %v1892
    %2001 = vmatpush1.msra.mxu0 %v1891
    %2002 = vmatprep.subr.mxu0 %v1896
    %2003 = vmatpush1.msra.mxu0 %v1895
    %2004 = vmatprep.subr.mxu0 %v1900
    %2005 = vmatpush1.msra.mxu0 %v1899
    %2006 = vmatprep.subr.mxu0 %v1904
    %2007 = vmatpush1.msra.mxu0 %v1903
    %2008 = vmatprep.subr.mxu0 0.0
    %2009 = vmatpush1.msra.mxu0 0.0
    %2010 = vmatprep.subr.mxu0 0.0
    %2011 = vmatpush1.msra.mxu0 0.0
    %2012 = vmatprep.subr.mxu0 0.0
    %2013 = vmatpush1.msra.mxu0 0.0
    %2014 = vmatprep.subr.mxu0 0.0
    %2015 = vmatpush1.msra.mxu0 0.0
    %2016 = vmatprep.subr.mxu0 0.0
    %2017 = vmatpush1.msra.mxu0 0.0
    %2018 = vmatprep.subr.mxu0 0.0
    %2019 = vmatpush1.msra.mxu0 0.0
    %2020 = vmatprep.subr.mxu0 0.0
    %2021 = vmatpush1.msra.mxu0 0.0
    %2022 = vmatprep.subr.mxu0 0.0
    %2023 = vmatpush1.msra.mxu0 0.0
    %2024 = vmatprep.subr.mxu0 0.0
    %2025 = vmatpush1.msra.mxu0 0.0
    %2026 = vmatprep.subr.mxu0 0.0
    %2027 = vmatpush1.msra.mxu0 0.0
    %2028 = vmatprep.subr.mxu0 0.0
    %2029 = vmatpush1.msra.mxu0 0.0
    %2030 = vmatprep.subr.mxu0 0.0
    %2031 = vmatpush1.msra.mxu0 0.0
    %2032 = vmatprep.subr.mxu0 0.0
    %2033 = vmatpush1.msra.mxu0 0.0
    %2034 = vmatprep.subr.mxu0 0.0
    %2035 = vmatpush1.msra.mxu0 0.0
    %2036 = vmatprep.subr.mxu0 0.0
    %2037 = vmatpush1.msra.mxu0 0.0
    %2038 = vmatprep.subr.mxu0 0.0
    %2039 = vmatpush1.msra.mxu0 0.0
    %2040 = vmatprep.mubr.f32.mxu0 0.0
    %2041 = vmatmul.mubr.f32.gmra.mrb[0].mxu0 %v1832
    %v2042 = vpop.f32.mrb[0].mxu0
    %v2043 = vadd.f32 0.0, %v2042
    %v2044 = vpop.f32.mrb[0].mxu0
    %v2045 = vadd.f32 0.0, %v2044
    %2046 = vdwg.mxu0
    %v2047 = vadd.f32 %v1837, %v1972
    %v2048 = vadd.f32 %v1838, %v1974
    %v2049 = vadd.f32 %v1839, %v2043
    %v2050 = vadd.f32 %v1840, %v2045
    %v2051 = vxor.u32 %v2047, 2147483648
    %v2052 = vmul.f32 %v2051, 1.442695
    %v2053 = vpow.pop %v2052
    %v2054 = vadd.f32 %v2053, 1.0
    %v2055 = vrcp.pop %v2054
    %v2056 = vmul.f32 1.0, %v2055
    %v2057 = vxor.u32 %v2048, 2147483648
    %v2058 = vmul.f32 %v2057, 1.442695
    %v2059 = vpow.pop %v2058
    %v2060 = vadd.f32 %v2059, 1.0
    %v2061 = vrcp.pop %v2060
    %v2062 = vmul.f32 1.0, %v2061
    %v2063 = vtanh.pop %v2049
    %v2064 = vxor.u32 %v2050, 2147483648
    %v2065 = vmul.f32 %v2064, 1.442695
    %v2066 = vpow.pop %v2065
    %v2067 = vadd.f32 %v2066, 1.0
    %v2068 = vrcp.pop %v2067
    %v2069 = vmul.f32 1.0, %v2068
    %v2070 = vmul.f32 %v2062, %v1833
    %v2071 = vmul.f32 %v2056, %v2063
    %v2072 = vadd.f32 %v2070, %v2071
    %v2073 = vtanh.pop %v2072
    %v2074 = vmul.f32 %v2069, %v2073
    %s2075 = scalar_lea.vmem [#allocation3], 40
    %2076 = vst [vmem:[%s2075] sm:$0xff] %v2074
    %s2077 = scalar_lea.vmem %s1, 48
    %v2078 = vld [vmem:[%s2077] sm:$0xff]
    %v2079 = vmul.f32 %v2074, %v2078
    %v2080 = vmul.f32 %v2072, %v2078
    %s2081 = smul.u32 6, 4
    %s2082 = smul.addr %s2081, 8
    %s2083 = scalar_lea.vmem [#allocation2], %s2082
    %v2084 = vld [vmem:[%s2083] sm:$0xff]
    %v2085 = vld [vmem:[%s2083 + $0x8] sm:$0xff]
    %v2086 = vld [vmem:[%s2083 + $0x10] sm:$0xff]
    %v2087 = vld [vmem:[%s2083 + $0x18] sm:$0xff]
    %v2088 = vld [vmem:[#allocation9] sm:$0xff]
    %v2089 = vld [vmem:[#allocation9 + $0x8] sm:$0xff]
    %v2090 = vld [vmem:[#allocation9 + $0x10] sm:$0xff]
    %v2091 = vld [vmem:[#allocation9 + $0x18] sm:$0xff]
    %v2092 = vld [vmem:[#allocation9 + $0x20] sm:$0xff]
    %v2093 = vld [vmem:[#allocation9 + $0x28] sm:$0xff]
    %v2094 = vld [vmem:[#allocation9 + $0x30] sm:$0xff]
    %v2095 = vld [vmem:[#allocation9 + $0x38] sm:$0xff]
    %v2096 = vld [vmem:[#allocation9 + $0x40] sm:$0xff]
    %v2097 = vld [vmem:[#allocation9 + $0x48] sm:$0xff]
    %v2098 = vld [vmem:[#allocation9 + $0x50] sm:$0xff]
    %v2099 = vld [vmem:[#allocation9 + $0x58] sm:$0xff]
    %v2100 = vld [vmem:[#allocation9 + $0x60] sm:$0xff]
    %v2101 = vld [vmem:[#allocation9 + $0x68] sm:$0xff]
    %v2102 = vld [vmem:[#allocation9 + $0x70] sm:$0xff]
    %v2103 = vld [vmem:[#allocation9 + $0x78] sm:$0xff]
    %v2104 = vld [vmem:[#allocation9 + $0x80] sm:$0xff]
    %v2105 = vld [vmem:[#allocation9 + $0x88] sm:$0xff]
    %v2106 = vld [vmem:[#allocation9 + $0x90] sm:$0xff]
    %v2107 = vld [vmem:[#allocation9 + $0x98] sm:$0xff]
    %v2108 = vld [vmem:[#allocation9 + $0xa0] sm:$0xff]
    %v2109 = vld [vmem:[#allocation9 + $0xa8] sm:$0xff]
    %v2110 = vld [vmem:[#allocation9 + $0xb0] sm:$0xff]
    %v2111 = vld [vmem:[#allocation9 + $0xb8] sm:$0xff]
    %v2112 = vld [vmem:[#allocation9 + $0xc0] sm:$0xff]
    %v2113 = vld [vmem:[#allocation9 + $0xc8] sm:$0xff]
    %v2114 = vld [vmem:[#allocation9 + $0xd0] sm:$0xff]
    %v2115 = vld [vmem:[#allocation9 + $0xd8] sm:$0xff]
    %v2116 = vld [vmem:[#allocation9 + $0xe0] sm:$0xff]
    %v2117 = vld [vmem:[#allocation9 + $0xe8] sm:$0xff]
    %v2118 = vld [vmem:[#allocation9 + $0xf0] sm:$0xff]
    %v2119 = vld [vmem:[#allocation9 + $0xf8] sm:$0xff]
    %v2120 = vld [vmem:[#allocation9 + $0x100] sm:$0xff]
    %v2121 = vld [vmem:[#allocation9 + $0x108] sm:$0xff]
    %v2122 = vld [vmem:[#allocation9 + $0x110] sm:$0xff]
    %v2123 = vld [vmem:[#allocation9 + $0x118] sm:$0xff]
    %v2124 = vld [vmem:[#allocation9 + $0x120] sm:$0xff]
    %v2125 = vld [vmem:[#allocation9 + $0x128] sm:$0xff]
    %v2126 = vld [vmem:[#allocation9 + $0x130] sm:$0xff]
    %v2127 = vld [vmem:[#allocation9 + $0x138] sm:$0xff]
    %v2128 = vld [vmem:[#allocation9 + $0x140] sm:$0xff]
    %v2129 = vld [vmem:[#allocation9 + $0x148] sm:$0xff]
    %v2130 = vld [vmem:[#allocation9 + $0x150] sm:$0xff]
    %v2131 = vld [vmem:[#allocation9 + $0x158] sm:$0xff]
    %v2132 = vld [vmem:[#allocation9 + $0x160] sm:$0xff]
    %v2133 = vld [vmem:[#allocation9 + $0x168] sm:$0xff]
    %v2134 = vld [vmem:[#allocation9 + $0x170] sm:$0xff]
    %v2135 = vld [vmem:[#allocation9 + $0x178] sm:$0xff]
    %v2136 = vld [vmem:[#allocation9 + $0x180] sm:$0xff]
    %v2137 = vld [vmem:[#allocation9 + $0x188] sm:$0xff]
    %v2138 = vld [vmem:[#allocation9 + $0x190] sm:$0xff]
    %v2139 = vld [vmem:[#allocation9 + $0x198] sm:$0xff]
    %v2140 = vld [vmem:[#allocation9 + $0x1a0] sm:$0xff]
    %v2141 = vld [vmem:[#allocation9 + $0x1a8] sm:$0xff]
    %v2142 = vld [vmem:[#allocation9 + $0x1b0] sm:$0xff]
    %v2143 = vld [vmem:[#allocation9 + $0x1b8] sm:$0xff]
    %v2144 = vld [vmem:[#allocation9 + $0x1c0] sm:$0xff]
    %v2145 = vld [vmem:[#allocation9 + $0x1c8] sm:$0xff]
    %v2146 = vld [vmem:[#allocation9 + $0x1d0] sm:$0xff]
    %v2147 = vld [vmem:[#allocation9 + $0x1d8] sm:$0xff]
    %v2148 = vld [vmem:[#allocation9 + $0x1e0] sm:$0xff]
    %v2149 = vld [vmem:[#allocation9 + $0x1e8] sm:$0xff]
    %v2150 = vld [vmem:[#allocation9 + $0x1f0] sm:$0xff]
    %v2151 = vld [vmem:[#allocation9 + $0x1f8] sm:$0xff]
    %2152 = vmatprep.subr.mxu0 %v2089
    %2153 = vmatpush1.msra.mxu0 %v2088
    %2154 = vmatprep.subr.mxu0 %v2093
    %2155 = vmatpush1.msra.mxu0 %v2092
    %2156 = vmatprep.subr.mxu0 %v2097
    %2157 = vmatpush1.msra.mxu0 %v2096
    %2158 = vmatprep.subr.mxu0 %v2101
    %2159 = vmatpush1.msra.mxu0 %v2100
    %2160 = vmatprep.subr.mxu0 %v2105
    %2161 = vmatpush1.msra.mxu0 %v2104
    %2162 = vmatprep.subr.mxu0 %v2109
    %2163 = vmatpush1.msra.mxu0 %v2108
    %2164 = vmatprep.subr.mxu0 %v2113
    %2165 = vmatpush1.msra.mxu0 %v2112
    %2166 = vmatprep.subr.mxu0 %v2117
    %2167 = vmatpush1.msra.mxu0 %v2116
    %2168 = vmatprep.subr.mxu0 %v2121
    %2169 = vmatpush1.msra.mxu0 %v2120
    %2170 = vmatprep.subr.mxu0 %v2125
    %2171 = vmatpush1.msra.mxu0 %v2124
    %2172 = vmatprep.subr.mxu0 %v2129
    %2173 = vmatpush1.msra.mxu0 %v2128
    %2174 = vmatprep.subr.mxu0 %v2133
    %2175 = vmatpush1.msra.mxu0 %v2132
    %2176 = vmatprep.subr.mxu0 %v2137
    %2177 = vmatpush1.msra.mxu0 %v2136
    %2178 = vmatprep.subr.mxu0 %v2141
    %2179 = vmatpush1.msra.mxu0 %v2140
    %2180 = vmatprep.subr.mxu0 %v2145
    %2181 = vmatpush1.msra.mxu0 %v2144
    %2182 = vmatprep.subr.mxu0 %v2149
    %2183 = vmatpush1.msra.mxu0 %v2148
    %2184 = vmatprep.subr.mxu0 0.0
    %2185 = vmatpush1.msra.mxu0 0.0
    %2186 = vmatprep.subr.mxu0 0.0
    %2187 = vmatpush1.msra.mxu0 0.0
    %2188 = vmatprep.subr.mxu0 0.0
    %2189 = vmatpush1.msra.mxu0 0.0
    %2190 = vmatprep.subr.mxu0 0.0
    %2191 = vmatpush1.msra.mxu0 0.0
    %2192 = vmatprep.subr.mxu0 0.0
    %2193 = vmatpush1.msra.mxu0 0.0
    %2194 = vmatprep.subr.mxu0 0.0
    %2195 = vmatpush1.msra.mxu0 0.0
    %2196 = vmatprep.subr.mxu0 0.0
    %2197 = vmatpush1.msra.mxu0 0.0
    %2198 = vmatprep.subr.mxu0 0.0
    %2199 = vmatpush1.msra.mxu0 0.0
    %2200 = vmatprep.subr.mxu0 0.0
    %2201 = vmatpush1.msra.mxu0 0.0
    %2202 = vmatprep.subr.mxu0 0.0
    %2203 = vmatpush1.msra.mxu0 0.0
    %2204 = vmatprep.subr.mxu0 0.0
    %2205 = vmatpush1.msra.mxu0 0.0
    %2206 = vmatprep.subr.mxu0 0.0
    %2207 = vmatpush1.msra.mxu0 0.0
    %2208 = vmatprep.subr.mxu0 0.0
    %2209 = vmatpush1.msra.mxu0 0.0
    %2210 = vmatprep.subr.mxu0 0.0
    %2211 = vmatpush1.msra.mxu0 0.0
    %2212 = vmatprep.subr.mxu0 0.0
    %2213 = vmatpush1.msra.mxu0 0.0
    %2214 = vmatprep.subr.mxu0 0.0
    %2215 = vmatpush1.msra.mxu0 0.0
    %2216 = vmatprep.mubr.f32.mxu0 0.0
    %2217 = vmatmul.mubr.f32.gmra.mrb[0].mxu0 %v2079
    %v2218 = vpop.f32.mrb[0].mxu0
    %v2219 = vadd.f32 0.0, %v2218
    %v2220 = vpop.f32.mrb[0].mxu0
    %v2221 = vadd.f32 0.0, %v2220
    %2222 = vdwg.mxu0
    %2223 = vmatprep.subr.mxu0 %v2091
    %2224 = vmatpush1.msra.mxu0 %v2090
    %2225 = vmatprep.subr.mxu0 %v2095
    %2226 = vmatpush1.msra.mxu0 %v2094
    %2227 = vmatprep.subr.mxu0 %v2099
    %2228 = vmatpush1.msra.mxu0 %v2098
    %2229 = vmatprep.subr.mxu0 %v2103
    %2230 = vmatpush1.msra.mxu0 %v2102
    %2231 = vmatprep.subr.mxu0 %v2107
    %2232 = vmatpush1.msra.mxu0 %v2106
    %2233 = vmatprep.subr.mxu0 %v2111
    %2234 = vmatpush1.msra.mxu0 %v2110
    %2235 = vmatprep.subr.mxu0 %v2115
    %2236 = vmatpush1.msra.mxu0 %v2114
    %2237 = vmatprep.subr.mxu0 %v2119
    %2238 = vmatpush1.msra.mxu0 %v2118
    %2239 = vmatprep.subr.mxu0 %v2123
    %2240 = vmatpush1.msra.mxu0 %v2122
    %2241 = vmatprep.subr.mxu0 %v2127
    %2242 = vmatpush1.msra.mxu0 %v2126
    %2243 = vmatprep.subr.mxu0 %v2131
    %2244 = vmatpush1.msra.mxu0 %v2130
    %2245 = vmatprep.subr.mxu0 %v2135
    %2246 = vmatpush1.msra.mxu0 %v2134
    %2247 = vmatprep.subr.mxu0 %v2139
    %2248 = vmatpush1.msra.mxu0 %v2138
    %2249 = vmatprep.subr.mxu0 %v2143
    %2250 = vmatpush1.msra.mxu0 %v2142
    %2251 = vmatprep.subr.mxu0 %v2147
    %2252 = vmatpush1.msra.mxu0 %v2146
    %2253 = vmatprep.subr.mxu0 %v2151
    %2254 = vmatpush1.msra.mxu0 %v2150
    %2255 = vmatprep.subr.mxu0 0.0
    %2256 = vmatpush1.msra.mxu0 0.0
    %2257 = vmatprep.subr.mxu0 0.0
    %2258 = vmatpush1.msra.mxu0 0.0
    %2259 = vmatprep.subr.mxu0 0.0
    %2260 = vmatpush1.msra.mxu0 0.0
    %2261 = vmatprep.subr.mxu0 0.0
    %2262 = vmatpush1.msra.mxu0 0.0
    %2263 = vmatprep.subr.mxu0 0.0
    %2264 = vmatpush1.msra.mxu0 0.0
    %2265 = vmatprep.subr.mxu0 0.0
    %2266 = vmatpush1.msra.mxu0 0.0
    %2267 = vmatprep.subr.mxu0 0.0
    %2268 = vmatpush1.msra.mxu0 0.0
    %2269 = vmatprep.subr.mxu0 0.0
    %2270 = vmatpush1.msra.mxu0 0.0
    %2271 = vmatprep.subr.mxu0 0.0
    %2272 = vmatpush1.msra.mxu0 0.0
    %2273 = vmatprep.subr.mxu0 0.0
    %2274 = vmatpush1.msra.mxu0 0.0
    %2275 = vmatprep.subr.mxu0 0.0
    %2276 = vmatpush1.msra.mxu0 0.0
    %2277 = vmatprep.subr.mxu0 0.0
    %2278 = vmatpush1.msra.mxu0 0.0
    %2279 = vmatprep.subr.mxu0 0.0
    %2280 = vmatpush1.msra.mxu0 0.0
    %2281 = vmatprep.subr.mxu0 0.0
    %2282 = vmatpush1.msra.mxu0 0.0
    %2283 = vmatprep.subr.mxu0 0.0
    %2284 = vmatpush1.msra.mxu0 0.0
    %2285 = vmatprep.subr.mxu0 0.0
    %2286 = vmatpush1.msra.mxu0 0.0
    %2287 = vmatprep.mubr.f32.mxu0 0.0
    %2288 = vmatmul.mubr.f32.gmra.mrb[0].mxu0 %v2079
    %v2289 = vpop.f32.mrb[0].mxu0
    %v2290 = vadd.f32 0.0, %v2289
    %v2291 = vpop.f32.mrb[0].mxu0
    %v2292 = vadd.f32 0.0, %v2291
    %2293 = vdwg.mxu0
    %v2294 = vadd.f32 %v2084, %v2219
    %v2295 = vadd.f32 %v2085, %v2221
    %v2296 = vadd.f32 %v2086, %v2290
    %v2297 = vadd.f32 %v2087, %v2292
    %v2298 = vxor.u32 %v2294, 2147483648
    %v2299 = vmul.f32 %v2298, 1.442695
    %v2300 = vpow.pop %v2299
    %v2301 = vadd.f32 %v2300, 1.0
    %v2302 = vrcp.pop %v2301
    %v2303 = vmul.f32 1.0, %v2302
    %v2304 = vxor.u32 %v2295, 2147483648
    %v2305 = vmul.f32 %v2304, 1.442695
    %v2306 = vpow.pop %v2305
    %v2307 = vadd.f32 %v2306, 1.0
    %v2308 = vrcp.pop %v2307
    %v2309 = vmul.f32 1.0, %v2308
    %v2310 = vtanh.pop %v2296
    %v2311 = vxor.u32 %v2297, 2147483648
    %v2312 = vmul.f32 %v2311, 1.442695
    %v2313 = vpow.pop %v2312
    %v2314 = vadd.f32 %v2313, 1.0
    %v2315 = vrcp.pop %v2314
    %v2316 = vmul.f32 1.0, %v2315
    %v2317 = vmul.f32 %v2309, %v2080
    %v2318 = vmul.f32 %v2303, %v2310
    %v2319 = vadd.f32 %v2317, %v2318
    %v2320 = vtanh.pop %v2319
    %v2321 = vmul.f32 %v2316, %v2320
    %s2322 = scalar_lea.vmem [#allocation3], 48
    %2323 = vst [vmem:[%s2322] sm:$0xff] %v2321
    %s2324 = scalar_lea.vmem %s1, 56
    %v2325 = vld [vmem:[%s2324] sm:$0xff]
    %v2326 = vmul.f32 %v2321, %v2325
    %v2327 = vmul.f32 %v2319, %v2325
    %s2328 = smul.u32 7, 4
    %s2329 = smul.addr %s2328, 8
    %s2330 = scalar_lea.vmem [#allocation2], %s2329
    %v2331 = vld [vmem:[%s2330] sm:$0xff]
    %v2332 = vld [vmem:[%s2330 + $0x8] sm:$0xff]
    %v2333 = vld [vmem:[%s2330 + $0x10] sm:$0xff]
    %v2334 = vld [vmem:[%s2330 + $0x18] sm:$0xff]
    %v2335 = vld [vmem:[#allocation9] sm:$0xff]
    %v2336 = vld [vmem:[#allocation9 + $0x8] sm:$0xff]
    %v2337 = vld [vmem:[#allocation9 + $0x10] sm:$0xff]
    %v2338 = vld [vmem:[#allocation9 + $0x18] sm:$0xff]
    %v2339 = vld [vmem:[#allocation9 + $0x20] sm:$0xff]
    %v2340 = vld [vmem:[#allocation9 + $0x28] sm:$0xff]
    %v2341 = vld [vmem:[#allocation9 + $0x30] sm:$0xff]
    %v2342 = vld [vmem:[#allocation9 + $0x38] sm:$0xff]
    %v2343 = vld [vmem:[#allocation9 + $0x40] sm:$0xff]
    %v2344 = vld [vmem:[#allocation9 + $0x48] sm:$0xff]
    %v2345 = vld [vmem:[#allocation9 + $0x50] sm:$0xff]
    %v2346 = vld [vmem:[#allocation9 + $0x58] sm:$0xff]
    %v2347 = vld [vmem:[#allocation9 + $0x60] sm:$0xff]
    %v2348 = vld [vmem:[#allocation9 + $0x68] sm:$0xff]
    %v2349 = vld [vmem:[#allocation9 + $0x70] sm:$0xff]
    %v2350 = vld [vmem:[#allocation9 + $0x78] sm:$0xff]
    %v2351 = vld [vmem:[#allocation9 + $0x80] sm:$0xff]
    %v2352 = vld [vmem:[#allocation9 + $0x88] sm:$0xff]
    %v2353 = vld [vmem:[#allocation9 + $0x90] sm:$0xff]
    %v2354 = vld [vmem:[#allocation9 + $0x98] sm:$0xff]
    %v2355 = vld [vmem:[#allocation9 + $0xa0] sm:$0xff]
    %v2356 = vld [vmem:[#allocation9 + $0xa8] sm:$0xff]
    %v2357 = vld [vmem:[#allocation9 + $0xb0] sm:$0xff]
    %v2358 = vld [vmem:[#allocation9 + $0xb8] sm:$0xff]
    %v2359 = vld [vmem:[#allocation9 + $0xc0] sm:$0xff]
    %v2360 = vld [vmem:[#allocation9 + $0xc8] sm:$0xff]
    %v2361 = vld [vmem:[#allocation9 + $0xd0] sm:$0xff]
    %v2362 = vld [vmem:[#allocation9 + $0xd8] sm:$0xff]
    %v2363 = vld [vmem:[#allocation9 + $0xe0] sm:$0xff]
    %v2364 = vld [vmem:[#allocation9 + $0xe8] sm:$0xff]
    %v2365 = vld [vmem:[#allocation9 + $0xf0] sm:$0xff]
    %v2366 = vld [vmem:[#allocation9 + $0xf8] sm:$0xff]
    %v2367 = vld [vmem:[#allocation9 + $0x100] sm:$0xff]
    %v2368 = vld [vmem:[#allocation9 + $0x108] sm:$0xff]
    %v2369 = vld [vmem:[#allocation9 + $0x110] sm:$0xff]
    %v2370 = vld [vmem:[#allocation9 + $0x118] sm:$0xff]
    %v2371 = vld [vmem:[#allocation9 + $0x120] sm:$0xff]
    %v2372 = vld [vmem:[#allocation9 + $0x128] sm:$0xff]
    %v2373 = vld [vmem:[#allocation9 + $0x130] sm:$0xff]
    %v2374 = vld [vmem:[#allocation9 + $0x138] sm:$0xff]
    %v2375 = vld [vmem:[#allocation9 + $0x140] sm:$0xff]
    %v2376 = vld [vmem:[#allocation9 + $0x148] sm:$0xff]
    %v2377 = vld [vmem:[#allocation9 + $0x150] sm:$0xff]
    %v2378 = vld [vmem:[#allocation9 + $0x158] sm:$0xff]
    %v2379 = vld [vmem:[#allocation9 + $0x160] sm:$0xff]
    %v2380 = vld [vmem:[#allocation9 + $0x168] sm:$0xff]
    %v2381 = vld [vmem:[#allocation9 + $0x170] sm:$0xff]
    %v2382 = vld [vmem:[#allocation9 + $0x178] sm:$0xff]
    %v2383 = vld [vmem:[#allocation9 + $0x180] sm:$0xff]
    %v2384 = vld [vmem:[#allocation9 + $0x188] sm:$0xff]
    %v2385 = vld [vmem:[#allocation9 + $0x190] sm:$0xff]
    %v2386 = vld [vmem:[#allocation9 + $0x198] sm:$0xff]
    %v2387 = vld [vmem:[#allocation9 + $0x1a0] sm:$0xff]
    %v2388 = vld [vmem:[#allocation9 + $0x1a8] sm:$0xff]
    %v2389 = vld [vmem:[#allocation9 + $0x1b0] sm:$0xff]
    %v2390 = vld [vmem:[#allocation9 + $0x1b8] sm:$0xff]
    %v2391 = vld [vmem:[#allocation9 + $0x1c0] sm:$0xff]
    %v2392 = vld [vmem:[#allocation9 + $0x1c8] sm:$0xff]
    %v2393 = vld [vmem:[#allocation9 + $0x1d0] sm:$0xff]
    %v2394 = vld [vmem:[#allocation9 + $0x1d8] sm:$0xff]
    %v2395 = vld [vmem:[#allocation9 + $0x1e0] sm:$0xff]
    %v2396 = vld [vmem:[#allocation9 + $0x1e8] sm:$0xff]
    %v2397 = vld [vmem:[#allocation9 + $0x1f0] sm:$0xff]
    %v2398 = vld [vmem:[#allocation9 + $0x1f8] sm:$0xff]
    %2399 = vmatprep.subr.mxu0 %v2336
    %2400 = vmatpush1.msra.mxu0 %v2335
    %2401 = vmatprep.subr.mxu0 %v2340
    %2402 = vmatpush1.msra.mxu0 %v2339
    %2403 = vmatprep.subr.mxu0 %v2344
    %2404 = vmatpush1.msra.mxu0 %v2343
    %2405 = vmatprep.subr.mxu0 %v2348
    %2406 = vmatpush1.msra.mxu0 %v2347
    %2407 = vmatprep.subr.mxu0 %v2352
    %2408 = vmatpush1.msra.mxu0 %v2351
    %2409 = vmatprep.subr.mxu0 %v2356
    %2410 = vmatpush1.msra.mxu0 %v2355
    %2411 = vmatprep.subr.mxu0 %v2360
    %2412 = vmatpush1.msra.mxu0 %v2359
    %2413 = vmatprep.subr.mxu0 %v2364
    %2414 = vmatpush1.msra.mxu0 %v2363
    %2415 = vmatprep.subr.mxu0 %v2368
    %2416 = vmatpush1.msra.mxu0 %v2367
    %2417 = vmatprep.subr.mxu0 %v2372
    %2418 = vmatpush1.msra.mxu0 %v2371
    %2419 = vmatprep.subr.mxu0 %v2376
    %2420 = vmatpush1.msra.mxu0 %v2375
    %2421 = vmatprep.subr.mxu0 %v2380
    %2422 = vmatpush1.msra.mxu0 %v2379
    %2423 = vmatprep.subr.mxu0 %v2384
    %2424 = vmatpush1.msra.mxu0 %v2383
    %2425 = vmatprep.subr.mxu0 %v2388
    %2426 = vmatpush1.msra.mxu0 %v2387
    %2427 = vmatprep.subr.mxu0 %v2392
    %2428 = vmatpush1.msra.mxu0 %v2391
    %2429 = vmatprep.subr.mxu0 %v2396
    %2430 = vmatpush1.msra.mxu0 %v2395
    %2431 = vmatprep.subr.mxu0 0.0
    %2432 = vmatpush1.msra.mxu0 0.0
    %2433 = vmatprep.subr.mxu0 0.0
    %2434 = vmatpush1.msra.mxu0 0.0
    %2435 = vmatprep.subr.mxu0 0.0
    %2436 = vmatpush1.msra.mxu0 0.0
    %2437 = vmatprep.subr.mxu0 0.0
    %2438 = vmatpush1.msra.mxu0 0.0
    %2439 = vmatprep.subr.mxu0 0.0
    %2440 = vmatpush1.msra.mxu0 0.0
    %2441 = vmatprep.subr.mxu0 0.0
    %2442 = vmatpush1.msra.mxu0 0.0
    %2443 = vmatprep.subr.mxu0 0.0
    %2444 = vmatpush1.msra.mxu0 0.0
    %2445 = vmatprep.subr.mxu0 0.0
    %2446 = vmatpush1.msra.mxu0 0.0
    %2447 = vmatprep.subr.mxu0 0.0
    %2448 = vmatpush1.msra.mxu0 0.0
    %2449 = vmatprep.subr.mxu0 0.0
    %2450 = vmatpush1.msra.mxu0 0.0
    %2451 = vmatprep.subr.mxu0 0.0
    %2452 = vmatpush1.msra.mxu0 0.0
    %2453 = vmatprep.subr.mxu0 0.0
    %2454 = vmatpush1.msra.mxu0 0.0
    %2455 = vmatprep.subr.mxu0 0.0
    %2456 = vmatpush1.msra.mxu0 0.0
    %2457 = vmatprep.subr.mxu0 0.0
    %2458 = vmatpush1.msra.mxu0 0.0
    %2459 = vmatprep.subr.mxu0 0.0
    %2460 = vmatpush1.msra.mxu0 0.0
    %2461 = vmatprep.subr.mxu0 0.0
    %2462 = vmatpush1.msra.mxu0 0.0
    %2463 = vmatprep.mubr.f32.mxu0 0.0
    %2464 = vmatmul.mubr.f32.gmra.mrb[0].mxu0 %v2326
    %v2465 = vpop.f32.mrb[0].mxu0
    %v2466 = vadd.f32 0.0, %v2465
    %v2467 = vpop.f32.mrb[0].mxu0
    %v2468 = vadd.f32 0.0, %v2467
    %2469 = vdwg.mxu0
    %2470 = vmatprep.subr.mxu0 %v2338
    %2471 = vmatpush1.msra.mxu0 %v2337
    %2472 = vmatprep.subr.mxu0 %v2342
    %2473 = vmatpush1.msra.mxu0 %v2341
    %2474 = vmatprep.subr.mxu0 %v2346
    %2475 = vmatpush1.msra.mxu0 %v2345
    %2476 = vmatprep.subr.mxu0 %v2350
    %2477 = vmatpush1.msra.mxu0 %v2349
    %2478 = vmatprep.subr.mxu0 %v2354
    %2479 = vmatpush1.msra.mxu0 %v2353
    %2480 = vmatprep.subr.mxu0 %v2358
    %2481 = vmatpush1.msra.mxu0 %v2357
    %2482 = vmatprep.subr.mxu0 %v2362
    %2483 = vmatpush1.msra.mxu0 %v2361
    %2484 = vmatprep.subr.mxu0 %v2366
    %2485 = vmatpush1.msra.mxu0 %v2365
    %2486 = vmatprep.subr.mxu0 %v2370
    %2487 = vmatpush1.msra.mxu0 %v2369
    %2488 = vmatprep.subr.mxu0 %v2374
    %2489 = vmatpush1.msra.mxu0 %v2373
    %2490 = vmatprep.subr.mxu0 %v2378
    %2491 = vmatpush1.msra.mxu0 %v2377
    %2492 = vmatprep.subr.mxu0 %v2382
    %2493 = vmatpush1.msra.mxu0 %v2381
    %2494 = vmatprep.subr.mxu0 %v2386
    %2495 = vmatpush1.msra.mxu0 %v2385
    %2496 = vmatprep.subr.mxu0 %v2390
    %2497 = vmatpush1.msra.mxu0 %v2389
    %2498 = vmatprep.subr.mxu0 %v2394
    %2499 = vmatpush1.msra.mxu0 %v2393
    %2500 = vmatprep.subr.mxu0 %v2398
    %2501 = vmatpush1.msra.mxu0 %v2397
    %2502 = vmatprep.subr.mxu0 0.0
    %2503 = vmatpush1.msra.mxu0 0.0
    %2504 = vmatprep.subr.mxu0 0.0
    %2505 = vmatpush1.msra.mxu0 0.0
    %2506 = vmatprep.subr.mxu0 0.0
    %2507 = vmatpush1.msra.mxu0 0.0
    %2508 = vmatprep.subr.mxu0 0.0
    %2509 = vmatpush1.msra.mxu0 0.0
    %2510 = vmatprep.subr.mxu0 0.0
    %2511 = vmatpush1.msra.mxu0 0.0
    %2512 = vmatprep.subr.mxu0 0.0
    %2513 = vmatpush1.msra.mxu0 0.0
    %2514 = vmatprep.subr.mxu0 0.0
    %2515 = vmatpush1.msra.mxu0 0.0
    %2516 = vmatprep.subr.mxu0 0.0
    %2517 = vmatpush1.msra.mxu0 0.0
    %2518 = vmatprep.subr.mxu0 0.0
    %2519 = vmatpush1.msra.mxu0 0.0
    %2520 = vmatprep.subr.mxu0 0.0
    %2521 = vmatpush1.msra.mxu0 0.0
    %2522 = vmatprep.subr.mxu0 0.0
    %2523 = vmatpush1.msra.mxu0 0.0
    %2524 = vmatprep.subr.mxu0 0.0
    %2525 = vmatpush1.msra.mxu0 0.0
    %2526 = vmatprep.subr.mxu0 0.0
    %2527 = vmatpush1.msra.mxu0 0.0
    %2528 = vmatprep.subr.mxu0 0.0
    %2529 = vmatpush1.msra.mxu0 0.0
    %2530 = vmatprep.subr.mxu0 0.0
    %2531 = vmatpush1.msra.mxu0 0.0
    %2532 = vmatprep.subr.mxu0 0.0
    %2533 = vmatpush1.msra.mxu0 0.0
    %2534 = vmatprep.mubr.f32.mxu0 0.0
    %2535 = vmatmul.mubr.f32.gmra.mrb[0].mxu0 %v2326
    %v2536 = vpop.f32.mrb[0].mxu0
    %v2537 = vadd.f32 0.0, %v2536
    %v2538 = vpop.f32.mrb[0].mxu0
    %v2539 = vadd.f32 0.0, %v2538
    %2540 = vdwg.mxu0
    %v2541 = vadd.f32 %v2331, %v2466
    %v2542 = vadd.f32 %v2332, %v2468
    %v2543 = vadd.f32 %v2333, %v2537
    %v2544 = vadd.f32 %v2334, %v2539
    %v2545 = vxor.u32 %v2541, 2147483648
    %v2546 = vmul.f32 %v2545, 1.442695
    %v2547 = vpow.pop %v2546
    %v2548 = vadd.f32 %v2547, 1.0
    %v2549 = vrcp.pop %v2548
    %v2550 = vmul.f32 1.0, %v2549
    %v2551 = vxor.u32 %v2542, 2147483648
    %v2552 = vmul.f32 %v2551, 1.442695
    %v2553 = vpow.pop %v2552
    %v2554 = vadd.f32 %v2553, 1.0
    %v2555 = vrcp.pop %v2554
    %v2556 = vmul.f32 1.0, %v2555
    %v2557 = vtanh.pop %v2543
    %v2558 = vxor.u32 %v2544, 2147483648
    %v2559 = vmul.f32 %v2558, 1.442695
    %v2560 = vpow.pop %v2559
    %v2561 = vadd.f32 %v2560, 1.0
    %v2562 = vrcp.pop %v2561
    %v2563 = vmul.f32 1.0, %v2562
    %v2564 = vmul.f32 %v2556, %v2327
    %v2565 = vmul.f32 %v2550, %v2557
    %v2566 = vadd.f32 %v2564, %v2565
    %v2567 = vtanh.pop %v2566
    %v2568 = vmul.f32 %v2563, %v2567
    %s2569 = scalar_lea.vmem [#allocation3], 56
    %2570 = vst [vmem:[%s2569] sm:$0xff] %v2568
    %2571 = vst [vmem:[#allocation13] sm:$0xff] %v2568
    %2572 = vst [vmem:[#allocation15] sm:$0xff] %v2566
    %v2573 = vld [vmem:[#allocation3] sm:$0xff]
    %v2574 = vld [vmem:[#allocation3 + $0x8] sm:$0xff]
    %v2575 = vld [vmem:[#allocation3 + $0x10] sm:$0xff]
    %v2576 = vld [vmem:[#allocation3 + $0x18] sm:$0xff]
    %v2577 = vld [vmem:[#allocation3 + $0x20] sm:$0xff]
    %v2578 = vld [vmem:[#allocation3 + $0x28] sm:$0xff]
    %v2579 = vld [vmem:[#allocation3 + $0x30] sm:$0xff]
    %v2580 = vld [vmem:[#allocation3 + $0x38] sm:$0xff]
    %v2581 = vld [vmem:[#allocation10] sm:$0xff]
    %v2582 = vld [vmem:[#allocation10 + $0x8] sm:$0xff]
    %v2583 = vld [vmem:[#allocation10 + $0x10] sm:$0xff]
    %v2584 = vld [vmem:[#allocation10 + $0x18] sm:$0xff]
    %v2585 = vld [vmem:[#allocation10 + $0x20] sm:$0xff]
    %v2586 = vld [vmem:[#allocation10 + $0x28] sm:$0xff]
    %v2587 = vld [vmem:[#allocation10 + $0x30] sm:$0xff]
    %v2588 = vld [vmem:[#allocation10 + $0x38] sm:$0xff]
    %v2589 = vld [vmem:[#allocation10 + $0x40] sm:$0xff]
    %v2590 = vld [vmem:[#allocation10 + $0x48] sm:$0xff]
    %v2591 = vld [vmem:[#allocation10 + $0x50] sm:$0xff]
    %v2592 = vld [vmem:[#allocation10 + $0x58] sm:$0xff]
    %v2593 = vld [vmem:[#allocation10 + $0x60] sm:$0xff]
    %v2594 = vld [vmem:[#allocation10 + $0x68] sm:$0xff]
    %v2595 = vld [vmem:[#allocation10 + $0x70] sm:$0xff]
    %v2596 = vld [vmem:[#allocation10 + $0x78] sm:$0xff]
    %v2597 = vld [vmem:[%s10] sm:$0x1]
    %v2599 = vlaneseq
    %v2600 = vshrl.u32 %v2599, 7
    %v2601 = vsub.s32 0, %v2600
    %v2602 = vrot.slane %v2597, %v2601
    %2604 = vmatprep.subr.mxu0 0.0
    %2605 = vmatpush1.msra.mxu0 %v2581
    %2606 = vmatprep.subr.mxu0 0.0
    %2607 = vmatpush1.msra.mxu0 %v2582
    %2608 = vmatprep.subr.mxu0 0.0
    %2609 = vmatpush1.msra.mxu0 %v2583
    %2610 = vmatprep.subr.mxu0 0.0
    %2611 = vmatpush1.msra.mxu0 %v2584
    %2612 = vmatprep.subr.mxu0 0.0
    %2613 = vmatpush1.msra.mxu0 %v2585
    %2614 = vmatprep.subr.mxu0 0.0
    %2615 = vmatpush1.msra.mxu0 %v2586
    %2616 = vmatprep.subr.mxu0 0.0
    %2617 = vmatpush1.msra.mxu0 %v2587
    %2618 = vmatprep.subr.mxu0 0.0
    %2619 = vmatpush1.msra.mxu0 %v2588
    %2620 = vmatprep.subr.mxu0 0.0
    %2621 = vmatpush1.msra.mxu0 %v2589
    %2622 = vmatprep.subr.mxu0 0.0
    %2623 = vmatpush1.msra.mxu0 %v2590
    %2624 = vmatprep.subr.mxu0 0.0
    %2625 = vmatpush1.msra.mxu0 %v2591
    %2626 = vmatprep.subr.mxu0 0.0
    %2627 = vmatpush1.msra.mxu0 %v2592
    %2628 = vmatprep.subr.mxu0 0.0
    %2629 = vmatpush1.msra.mxu0 %v2593
    %2630 = vmatprep.subr.mxu0 0.0
    %2631 = vmatpush1.msra.mxu0 %v2594
    %2632 = vmatprep.subr.mxu0 0.0
    %2633 = vmatpush1.msra.mxu0 %v2595
    %2634 = vmatprep.subr.mxu0 0.0
    %2635 = vmatpush1.msra.mxu0 %v2596
    %2636 = vmatprep.subr.mxu0 0.0
    %2637 = vmatpush1.msra.mxu0 0.0
    %2638 = vmatprep.subr.mxu0 0.0
    %2639 = vmatpush1.msra.mxu0 0.0
    %2640 = vmatprep.subr.mxu0 0.0
    %2641 = vmatpush1.msra.mxu0 0.0
    %2642 = vmatprep.subr.mxu0 0.0
    %2643 = vmatpush1.msra.mxu0 0.0
    %2644 = vmatprep.subr.mxu0 0.0
    %2645 = vmatpush1.msra.mxu0 0.0
    %2646 = vmatprep.subr.mxu0 0.0
    %2647 = vmatpush1.msra.mxu0 0.0
    %2648 = vmatprep.subr.mxu0 0.0
    %2649 = vmatpush1.msra.mxu0 0.0
    %2650 = vmatprep.subr.mxu0 0.0
    %2651 = vmatpush1.msra.mxu0 0.0
    %2652 = vmatprep.subr.mxu0 0.0
    %2653 = vmatpush1.msra.mxu0 0.0
    %2654 = vmatprep.subr.mxu0 0.0
    %2655 = vmatpush1.msra.mxu0 0.0
    %2656 = vmatprep.subr.mxu0 0.0
    %2657 = vmatpush1.msra.mxu0 0.0
    %2658 = vmatprep.subr.mxu0 0.0
    %2659 = vmatpush1.msra.mxu0 0.0
    %2660 = vmatprep.subr.mxu0 0.0
    %2661 = vmatpush1.msra.mxu0 0.0
    %2662 = vmatprep.subr.mxu0 0.0
    %2663 = vmatpush1.msra.mxu0 0.0
    %2664 = vmatprep.subr.mxu0 0.0
    %2665 = vmatpush1.msra.mxu0 0.0
    %2666 = vmatprep.subr.mxu0 0.0
    %2667 = vmatpush1.msra.mxu0 0.0
    %2668 = vmatprep.mubr.f32.mxu0 0.0
    %2669 = vmatmul.mubr.f32.gmra.mrb[0].mxu0 %v2573
    %v2670 = vpop.f32.mrb[0].mxu0
    %v2671 = vadd.f32 %v2602, %v2670
    %v2672 = vpop.f32.mrb[0].mxu0
    %2673 = vmatprep.mubr.f32.mxu0 0.0
    %2674 = vmatmul.mubr.f32.gmra.mrb[0].mxu0 %v2574
    %v2675 = vpop.f32.mrb[0].mxu0
    %v2676 = vadd.f32 %v2602, %v2675
    %v2677 = vpop.f32.mrb[0].mxu0
    %2678 = vmatprep.mubr.f32.mxu0 0.0
    %2679 = vmatmul.mubr.f32.gmra.mrb[0].mxu0 %v2575
    %v2680 = vpop.f32.mrb[0].mxu0
    %v2681 = vadd.f32 %v2602, %v2680
    %v2682 = vpop.f32.mrb[0].mxu0
    %2683 = vmatprep.mubr.f32.mxu0 0.0
    %2684 = vmatmul.mubr.f32.gmra.mrb[0].mxu0 %v2576
    %v2685 = vpop.f32.mrb[0].mxu0
    %v2686 = vadd.f32 %v2602, %v2685
    %v2687 = vpop.f32.mrb[0].mxu0
    %2688 = vmatprep.mubr.f32.mxu0 0.0
    %2689 = vmatmul.mubr.f32.gmra.mrb[0].mxu0 %v2577
    %v2690 = vpop.f32.mrb[0].mxu0
    %v2691 = vadd.f32 %v2602, %v2690
    %v2692 = vpop.f32.mrb[0].mxu0
    %2693 = vmatprep.mubr.f32.mxu0 0.0
    %2694 = vmatmul.mubr.f32.gmra.mrb[0].mxu0 %v2578
    %v2695 = vpop.f32.mrb[0].mxu0
    %v2696 = vadd.f32 %v2602, %v2695
    %v2697 = vpop.f32.mrb[0].mxu0
    %2698 = vmatprep.mubr.f32.mxu0 0.0
    %2699 = vmatmul.mubr.f32.gmra.mrb[0].mxu0 %v2579
    %v2700 = vpop.f32.mrb[0].mxu0
    %v2701 = vadd.f32 %v2602, %v2700
    %v2702 = vpop.f32.mrb[0].mxu0
    %2703 = vmatprep.mubr.f32.mxu0 0.0
    %2704 = vmatmul.mubr.f32.gmra.mrb[0].mxu0 %v2580
    %v2705 = vpop.f32.mrb[0].mxu0
    %v2706 = vadd.f32 %v2602, %v2705
    %v2707 = vpop.f32.mrb[0].mxu0
    %2708 = vdwg.mxu0
    %v2709 = vtanh.pop %v2671
    %v2710 = vtanh.pop %v2676
    %v2711 = vtanh.pop %v2681
    %v2712 = vtanh.pop %v2686
    %v2713 = vtanh.pop %v2691
    %v2714 = vtanh.pop %v2696
    %v2715 = vtanh.pop %v2701
    %v2716 = vtanh.pop %v2706
    %2717 = vst [vmem:[#allocation12] sm:$0xff] %v2709
    %2718 = vst [vmem:[#allocation12 + $0x8] sm:$0xff] %v2710
    %2719 = vst [vmem:[#allocation12 + $0x10] sm:$0xff] %v2711
    %2720 = vst [vmem:[#allocation12 + $0x18] sm:$0xff] %v2712
    %2721 = vst [vmem:[#allocation12 + $0x20] sm:$0xff] %v2713
    %2722 = vst [vmem:[#allocation12 + $0x28] sm:$0xff] %v2714
    %2723 = vst [vmem:[#allocation12 + $0x30] sm:$0xff] %v2715
    %2724 = vst [vmem:[#allocation12 + $0x38] sm:$0xff] %v2716
    // Predicated region
    $region62: #{tpu_custom_call.1} parent=1 // pred_check
      _
    $region63: #{tpu_custom_call.1} parent=1 // pred_check_branch
      %2726 = sbr.rel (0) target = $region65
    $region64: #{tpu_custom_call.1} parent=1 // pred_region
      %s2728 = ssub.s32 1024, 1024
      %2729 = vsyncadd [#allocation6], %s2728
      %s2730 = sshll.u32 [#allocation12], 4
      %s2731 = int_to_ptr.vmem [resolvable:$true] %s2730
      %2736 = dma.vmem_to_hbm [thread:$0]  %s2731, 1024, %s11, [#allocation6], 128, 128, 8
    $region65: #{tpu_custom_call.1} parent=1 // pred_fallthru
      _
    // Predicated region
    $region66: #{tpu_custom_call.1} parent=1 // pred_check
      _
    $region67: #{tpu_custom_call.1} parent=1 // pred_check_branch
      %2738 = sbr.rel (0) target = $region69
    $region68: #{tpu_custom_call.1} parent=1 // pred_region
      %s2740 = ssub.s32 128, 128
      %2741 = vsyncadd [#allocation14], %s2740
      %s2743 = sshll.u32 [#allocation13], 4
      %s2744 = int_to_ptr.vmem [resolvable:$true] %s2743
      %2746 = dma.vmem_to_hbm [thread:$0]  %s2744, 128, %s12, [#allocation14]
    $region69: #{tpu_custom_call.1} parent=1 // pred_fallthru
      _
    // Predicated region
    $region70: #{tpu_custom_call.1} parent=1 // pred_check
      _
    $region71: #{tpu_custom_call.1} parent=1 // pred_check_branch
      %2748 = sbr.rel (0) target = $region73
    $region72: #{tpu_custom_call.1} parent=1 // pred_region
      %s2750 = ssub.s32 128, 128
      %2751 = vsyncadd [#allocation14], %s2750
      %s2753 = sshll.u32 [#allocation15], 4
      %s2754 = int_to_ptr.vmem [resolvable:$true] %s2753
      %2756 = dma.vmem_to_hbm [thread:$0]  %s2754, 128, %s13, [#allocation14]
    $region73: #{tpu_custom_call.1} parent=1 // pred_fallthru
      _
    // Predicated region
    $region74: #{tpu_custom_call.1} parent=1 // pred_check
      _
    $region75: #{tpu_custom_call.1} parent=1 // pred_check_branch
      %2758 = sbr.rel (0) target = $region77
    $region76: #{tpu_custom_call.1} parent=1 // pred_region
      %2759 = dma.done [#allocation6], 1024
    $region77: #{tpu_custom_call.1} parent=1 // pred_fallthru
      _
    // Predicated region
    $region78: #{tpu_custom_call.1} parent=1 // pred_check
      _
    $region79: #{tpu_custom_call.1} parent=1 // pred_check_branch
      %2761 = sbr.rel (0) target = $region81
    $region80: #{tpu_custom_call.1} parent=1 // pred_region
      %2762 = dma.done [#allocation14], 128
    $region81: #{tpu_custom_call.1} parent=1 // pred_fallthru
      _
    // Predicated region
    $region82: #{tpu_custom_call.1} parent=1 // pred_check
      _
    $region83: #{tpu_custom_call.1} parent=1 // pred_check_branch
      %2764 = sbr.rel (0) target = $region85
    $region84: #{tpu_custom_call.1} parent=1 // pred_region
      %2765 = dma.done [#allocation14], 128
    $region85: #{tpu_custom_call.1} parent=1 // pred_fallthru
      _
    %2766 = vsyncpa [#allocation5], 1
    %2767 = vsyncpa [#allocation8], 1
    %2768 = vsyncpa [#allocation11], 1
    %2769 = vsyncpa [#allocation6], 1
    %2770 = vsyncpa [#allocation14], 1

</llo_original>
